<compile_context>
chip_gen: v6e
topology: v6e:2x2x1
jax: 0.10.0
libtpu: 0.0.40
codegen_flags: <defaults>
</compile_context>

<pallas_src>
import functools

import jax
import jax.numpy as jnp
from jax.experimental import pallas as pl
from jax.experimental.pallas import tpu as pltpu  # noqa: F401  (TPU backend assumed)


# ------------------------- Fused LSTM-stack + FC kernel -------------------------
def make_fused_lstm_fc_kernel(num_layers, T, Bp, H):
    """Builds the fused kernel.

    Kernel inputs (in order):
      gx0   : (Bp, T, 4H)  precomputed x @ W_ih0^T + b0   (layer-0 input projection)
      whh0  : (H, 4H)      layer-0 recurrent weight, pre-transposed
      per layer l = 1..num_layers-1:  wih_l (H, 4H), whh_l (H, 4H), b_l (1, 4H)
      wfc   : (H, O), bfc : (1, O)
    Output: (Bp, O)
    """

    def kernel(*refs):
        in_refs, out_ref = refs[:-1], refs[-1]
        it = iter(in_refs)
        gx0_ref = next(it)
        whh = [next(it)[...]]      # hoisted weight loads (single VMEM copies)
        wih = [None]
        bias = [None]
        for _ in range(num_layers - 1):
            wih.append(next(it)[...])
            whh.append(next(it)[...])
            bias.append(next(it)[...])
        wfc = next(it)[...]
        bfc = next(it)[...]

        def run_layer(gate_x_at, whh_l, collect_seq):
            # Time recurrence; T is static & small -> fully unrolled, so every
            # slice below is static (no dynamic lane/sublane indexing).
            h = jnp.zeros((Bp, H), jnp.float32)
            c = jnp.zeros((Bp, H), jnp.float32)
            hs = []
            for t in range(T):
                # Only the recurrent matmul sits on the serial critical path.
                gates = gate_x_at(t) + jnp.dot(
                    h, whh_l, preferred_element_type=jnp.float32)       # (Bp, 4H)
                # PyTorch gate order [i, f, g, o]; 4H is a lane-dense slab,
                # per-gate extraction is a static lane slice (H < 128 here).
                i_g = jax.nn.sigmoid(gates[:, 0 * H:1 * H])
                f_g = jax.nn.sigmoid(gates[:, 1 * H:2 * H])
                g_g = jnp.tanh(gates[:, 2 * H:3 * H])
                o_g = jax.nn.sigmoid(gates[:, 3 * H:4 * H])
                c = f_g * c + i_g * g_g
                h = o_g * jnp.tanh(c)
                if collect_seq:
                    hs.append(h)
            return h, hs

        gx0 = gx0_ref[...]                                   # (Bp, T, 4H), VMEM resident
        h_fin, hs = run_layer(lambda t: gx0[:, t, :], whh[0],
                              collect_seq=num_layers > 1)

        for l in range(1, num_layers):
            # Hoisted input projection for layer l: ONE (T*Bp, H) x (H, 4H) matmul
            # over the previous layer's hidden sequence (rows ordered t-major).
            seq_flat = jnp.concatenate(hs, axis=0)                       # (T*Bp, H)
            gx_flat = jnp.dot(seq_flat, wih[l],
                              preferred_element_type=jnp.float32) + bias[l]
            h_fin, hs = run_layer(
                lambda t, gxf=gx_flat: gxf[t * Bp:(t + 1) * Bp, :],
                whh[l], collect_seq=l < num_layers - 1)

        # Final FC on the last timestep only (== out[:, -1, :] @ W_fc^T + b_fc).
        out_ref[...] = jnp.dot(h_fin, wfc,
                               preferred_element_type=jnp.float32) + bfc

    return kernel


# --------------------------------- Model wrapper ---------------------------------
def prediction_model_forward(x, params):
    """x: (B, T, input_dim), batch_first like PyTorch. Returns (B, output_dim)."""
    B, T, D = x.shape
    lstm_params = params["lstm"]
    num_layers = len(lstm_params)
    H = lstm_params[0][1].shape[1]          # whh: (4H, H)
    w_fc, b_fc = params["fc"]
    O = w_fc.shape[0]

    # Pad batch to a sublane multiple (>=8). Rows are independent; dropped below.
    Bp = max(8, -(-B // 8) * 8)
    x_p = jnp.zeros((Bp, T, D), jnp.float32).at[:B].set(x.astype(jnp.float32))

    # Hoisted layer-0 input projection: one big (Bp*T, D) x (D, 4H) MXU matmul in XLA,
    # keeping batch_first layout (no explicit transpose of x).
    wih0, whh0, bih0, bhh0 = lstm_params[0]
    gx0 = (jnp.einsum("btd,dg->btg", x_p, wih0.T.astype(jnp.float32))
           + (bih0 + bhh0).astype(jnp.float32))

    inputs = [gx0, whh0.T.astype(jnp.float32)]
    for (wih, whh, bih, bhh) in lstm_params[1:]:
        inputs += [wih.T.astype(jnp.float32),
                   whh.T.astype(jnp.float32),
                   (bih + bhh).reshape(1, -1).astype(jnp.float32)]
    inputs += [w_fc.T.astype(jnp.float32), b_fc.reshape(1, -1).astype(jnp.float32)]

    kernel = make_fused_lstm_fc_kernel(num_layers, T, Bp, H)
    # No grid: single invocation, all operands/outputs are whole-array VMEM blocks
    # (total footprint << VMEM on v5e/v6e/v7x), no pipelining / double-buffering.
    out_p = pl.pallas_call(
        kernel,
        out_shape=jax.ShapeDtypeStruct((Bp, O), jnp.float32),
    )(*inputs)
    return out_p[:B]


# ------------------------------ Pure-JAX reference --------------------------------
def reference_forward(x_btd, params):
    def cell(carry, x_t, wih, whh, b):
        h, c = carry
        gates = x_t @ wih.T + h @ whh.T + b
        H = h.shape[1]
        i = jax.nn.sigmoid(gates[:, :H])
        f = jax.nn.sigmoid(gates[:, H:2 * H])
        g = jnp.tanh(gates[:, 2 * H:3 * H])
        o = jax.nn.sigmoid(gates[:, 3 * H:])
        c = f * c + i * g
        h = o * jnp.tanh(c)
        return (h, c), h

    seq = jnp.transpose(x_btd, (1, 0, 2)).astype(jnp.float32)  # (T, B, D)
    B = x_btd.shape[0]
    for (wih, whh, bih, bhh) in params["lstm"]:
        H = whh.shape[1]
        h0 = jnp.zeros((B, H), jnp.float32)
        c0 = jnp.zeros((B, H), jnp.float32)
        b = bih + bhh
        (_, _), seq = jax.lax.scan(
            functools.partial(cell, wih=wih, whh=whh, b=b), (h0, c0), seq
        )
    w_fc, b_fc = params["fc"]
    return seq[-1] @ w_fc.T + b_fc


# ----------------------------------- Param init ------------------------------------
def init_params(key, input_dim, hidden_dim, num_layers, output_dim):
    k = 1.0 / jnp.sqrt(hidden_dim)
    lstm = []
    for layer in range(num_layers):
        d_in = input_dim if layer == 0 else hidden_dim
        key, k1, k2, k3, k4 = jax.random.split(key, 5)
        wih = jax.random.uniform(k1, (4 * hidden_dim, d_in), jnp.float32, -k, k)
        whh = jax.random.uniform(k2, (4 * hidden_dim, hidden_dim), jnp.float32, -k, k)
        bih = jax.random.uniform(k3, (4 * hidden_dim,), jnp.float32, -k, k)
        bhh = jax.random.uniform(k4, (4 * hidden_dim,), jnp.float32, -k, k)
        lstm.append((wih, whh, bih, bhh))
    key, k5, k6 = jax.random.split(key, 3)
    w_fc = jax.random.uniform(k5, (output_dim, hidden_dim), jnp.float32, -k, k)
    b_fc = jax.random.uniform(k6, (output_dim,), jnp.float32, -k, k)
    return {"lstm": lstm, "fc": (w_fc, b_fc)}


if __name__ == "__main__":
    B, T = 2, 8
    input_dim, hidden_dim, num_layers, output_dim = 8, 32, 2, 4

    key = jax.random.PRNGKey(0)
    key, pkey, xkey = jax.random.split(key, 3)
    params = init_params(pkey, input_dim, hidden_dim, num_layers, output_dim)
    x = jax.random.normal(xkey, (B, T, input_dim), jnp.float32)

    fwd = jax.jit(prediction_model_forward)
    out = jax.block_until_ready(fwd(x, params))

    ref = jax.block_until_ready(reference_forward(x, params))
    assert out.shape == (B, output_dim)
    assert jnp.allclose(out, ref, atol=1e-4, rtol=1e-4), (out, ref)

    print("KERNEL_OK")
</pallas_src>

<mosaic_0001>
module attributes {stable_mosaic.version = 11 : i64} {
  func.func @kernel(%arg0: memref<8x8x128xf32, #tpu.memory_space<vmem>>, %arg1: memref<32x128xf32, #tpu.memory_space<vmem>>, %arg2: memref<32x128xf32, #tpu.memory_space<vmem>>, %arg3: memref<32x128xf32, #tpu.memory_space<vmem>>, %arg4: memref<1x128xf32, #tpu.memory_space<vmem>>, %arg5: memref<32x4xf32, #tpu.memory_space<vmem>>, %arg6: memref<1x4xf32, #tpu.memory_space<vmem>>, %arg7: memref<8x4xf32, #tpu.memory_space<vmem>>) attributes {dimension_semantics = [], scalar_prefetch = 0 : i64, scratch_operands = 0 : i64, tpu.core_type = #tpu.core_type<tc>} {
    %c0 = arith.constant 0 : index
    %c0_0 = arith.constant 0 : index
    %0 = vector.load %arg1[%c0, %c0_0] : memref<32x128xf32, #tpu.memory_space<vmem>>, vector<32x128xf32>
    %c0_1 = arith.constant 0 : index
    %c0_2 = arith.constant 0 : index
    %1 = vector.load %arg2[%c0_1, %c0_2] : memref<32x128xf32, #tpu.memory_space<vmem>>, vector<32x128xf32>
    %c0_3 = arith.constant 0 : index
    %c0_4 = arith.constant 0 : index
    %2 = vector.load %arg3[%c0_3, %c0_4] : memref<32x128xf32, #tpu.memory_space<vmem>>, vector<32x128xf32>
    %c0_5 = arith.constant 0 : index
    %c0_6 = arith.constant 0 : index
    %3 = vector.load %arg4[%c0_5, %c0_6] : memref<1x128xf32, #tpu.memory_space<vmem>>, vector<1x128xf32>
    %c0_7 = arith.constant 0 : index
    %c0_8 = arith.constant 0 : index
    %4 = vector.load %arg5[%c0_7, %c0_8] : memref<32x4xf32, #tpu.memory_space<vmem>>, vector<32x4xf32>
    %c0_9 = arith.constant 0 : index
    %c0_10 = arith.constant 0 : index
    %5 = vector.load %arg6[%c0_9, %c0_10] : memref<1x4xf32, #tpu.memory_space<vmem>>, vector<1x4xf32>
    %c0_11 = arith.constant 0 : index
    %c0_12 = arith.constant 0 : index
    %c0_13 = arith.constant 0 : index
    %6 = vector.load %arg0[%c0_11, %c0_12, %c0_13] : memref<8x8x128xf32, #tpu.memory_space<vmem>>, vector<8x8x128xf32>
    %cst = arith.constant 0.000000e+00 : f32
    %7 = vector.broadcast %cst : f32 to vector<8x32xf32>
    %cst_14 = arith.constant 0.000000e+00 : f32
    %8 = vector.broadcast %cst_14 : f32 to vector<8x32xf32>
    %9 = vector.extract_strided_slice %6 {offsets = [0, 0, 0], sizes = [8, 1, 128], strides = [1, 1, 1]} : vector<8x8x128xf32> to vector<8x1x128xf32>
    %10 = vector.shape_cast %9 : vector<8x1x128xf32> to vector<8x128xf32>
    %cst_15 = arith.constant dense<0.000000e+00> : vector<8x128xf32>
    %11 = tpu.matmul %7, %0, %cst_15 {dimension_numbers = #tpu.dot_dimension_numbers<[1], [0], [0], [1], [0, 0, 1, 1], [], []>} : vector<8x32xf32>, vector<32x128xf32>, vector<8x128xf32> -> vector<8x128xf32>
    %12 = arith.addf %10, %11 : vector<8x128xf32>
    %13 = vector.extract_strided_slice %12 {offsets = [0, 0], sizes = [8, 32], strides = [1, 1]} : vector<8x128xf32> to vector<8x32xf32>
    %14 = arith.negf %13 : vector<8x32xf32>
    %15 = math.exp %14 : vector<8x32xf32>
    %cst_16 = arith.constant 1.000000e+00 : f32
    %16 = vector.broadcast %cst_16 : f32 to vector<8x32xf32>
    %17 = arith.addf %16, %15 : vector<8x32xf32>
    %18 = arith.divf %16, %17 : vector<8x32xf32>
    %19 = vector.extract_strided_slice %12 {offsets = [0, 32], sizes = [8, 32], strides = [1, 1]} : vector<8x128xf32> to vector<8x32xf32>
    %20 = arith.negf %19 : vector<8x32xf32>
    %21 = math.exp %20 : vector<8x32xf32>
    %cst_17 = arith.constant 1.000000e+00 : f32
    %22 = vector.broadcast %cst_17 : f32 to vector<8x32xf32>
    %23 = arith.addf %22, %21 : vector<8x32xf32>
    %24 = arith.divf %22, %23 : vector<8x32xf32>
    %25 = vector.extract_strided_slice %12 {offsets = [0, 64], sizes = [8, 32], strides = [1, 1]} : vector<8x128xf32> to vector<8x32xf32>
    %26 = math.tanh %25 : vector<8x32xf32>
    %27 = vector.extract_strided_slice %12 {offsets = [0, 96], sizes = [8, 32], strides = [1, 1]} : vector<8x128xf32> to vector<8x32xf32>
    %28 = arith.negf %27 : vector<8x32xf32>
    %29 = math.exp %28 : vector<8x32xf32>
    %cst_18 = arith.constant 1.000000e+00 : f32
    %30 = vector.broadcast %cst_18 : f32 to vector<8x32xf32>
    %31 = arith.addf %30, %29 : vector<8x32xf32>
    %32 = arith.divf %30, %31 : vector<8x32xf32>
    %33 = arith.mulf %24, %8 : vector<8x32xf32>
    %34 = arith.mulf %18, %26 : vector<8x32xf32>
    %35 = arith.addf %33, %34 : vector<8x32xf32>
    %36 = math.tanh %35 : vector<8x32xf32>
    %37 = arith.mulf %32, %36 : vector<8x32xf32>
    %38 = vector.extract_strided_slice %6 {offsets = [0, 1, 0], sizes = [8, 1, 128], strides = [1, 1, 1]} : vector<8x8x128xf32> to vector<8x1x128xf32>
    %39 = vector.shape_cast %38 : vector<8x1x128xf32> to vector<8x128xf32>
    %cst_19 = arith.constant dense<0.000000e+00> : vector<8x128xf32>
    %40 = tpu.matmul %37, %0, %cst_19 {dimension_numbers = #tpu.dot_dimension_numbers<[1], [0], [0], [1], [0, 0, 1, 1], [], []>} : vector<8x32xf32>, vector<32x128xf32>, vector<8x128xf32> -> vector<8x128xf32>
    %41 = arith.addf %39, %40 : vector<8x128xf32>
    %42 = vector.extract_strided_slice %41 {offsets = [0, 0], sizes = [8, 32], strides = [1, 1]} : vector<8x128xf32> to vector<8x32xf32>
    %43 = arith.negf %42 : vector<8x32xf32>
    %44 = math.exp %43 : vector<8x32xf32>
    %cst_20 = arith.constant 1.000000e+00 : f32
    %45 = vector.broadcast %cst_20 : f32 to vector<8x32xf32>
    %46 = arith.addf %45, %44 : vector<8x32xf32>
    %47 = arith.divf %45, %46 : vector<8x32xf32>
    %48 = vector.extract_strided_slice %41 {offsets = [0, 32], sizes = [8, 32], strides = [1, 1]} : vector<8x128xf32> to vector<8x32xf32>
    %49 = arith.negf %48 : vector<8x32xf32>
    %50 = math.exp %49 : vector<8x32xf32>
    %cst_21 = arith.constant 1.000000e+00 : f32
    %51 = vector.broadcast %cst_21 : f32 to vector<8x32xf32>
    %52 = arith.addf %51, %50 : vector<8x32xf32>
    %53 = arith.divf %51, %52 : vector<8x32xf32>
    %54 = vector.extract_strided_slice %41 {offsets = [0, 64], sizes = [8, 32], strides = [1, 1]} : vector<8x128xf32> to vector<8x32xf32>
    %55 = math.tanh %54 : vector<8x32xf32>
    %56 = vector.extract_strided_slice %41 {offsets = [0, 96], sizes = [8, 32], strides = [1, 1]} : vector<8x128xf32> to vector<8x32xf32>
    %57 = arith.negf %56 : vector<8x32xf32>
    %58 = math.exp %57 : vector<8x32xf32>
    %cst_22 = arith.constant 1.000000e+00 : f32
    %59 = vector.broadcast %cst_22 : f32 to vector<8x32xf32>
    %60 = arith.addf %59, %58 : vector<8x32xf32>
    %61 = arith.divf %59, %60 : vector<8x32xf32>
    %62 = arith.mulf %53, %35 : vector<8x32xf32>
    %63 = arith.mulf %47, %55 : vector<8x32xf32>
    %64 = arith.addf %62, %63 : vector<8x32xf32>
    %65 = math.tanh %64 : vector<8x32xf32>
    %66 = arith.mulf %61, %65 : vector<8x32xf32>
    %67 = vector.extract_strided_slice %6 {offsets = [0, 2, 0], sizes = [8, 1, 128], strides = [1, 1, 1]} : vector<8x8x128xf32> to vector<8x1x128xf32>
    %68 = vector.shape_cast %67 : vector<8x1x128xf32> to vector<8x128xf32>
    %cst_23 = arith.constant dense<0.000000e+00> : vector<8x128xf32>
    %69 = tpu.matmul %66, %0, %cst_23 {dimension_numbers = #tpu.dot_dimension_numbers<[1], [0], [0], [1], [0, 0, 1, 1], [], []>} : vector<8x32xf32>, vector<32x128xf32>, vector<8x128xf32> -> vector<8x128xf32>
    %70 = arith.addf %68, %69 : vector<8x128xf32>
    %71 = vector.extract_strided_slice %70 {offsets = [0, 0], sizes = [8, 32], strides = [1, 1]} : vector<8x128xf32> to vector<8x32xf32>
    %72 = arith.negf %71 : vector<8x32xf32>
    %73 = math.exp %72 : vector<8x32xf32>
    %cst_24 = arith.constant 1.000000e+00 : f32
    %74 = vector.broadcast %cst_24 : f32 to vector<8x32xf32>
    %75 = arith.addf %74, %73 : vector<8x32xf32>
    %76 = arith.divf %74, %75 : vector<8x32xf32>
    %77 = vector.extract_strided_slice %70 {offsets = [0, 32], sizes = [8, 32], strides = [1, 1]} : vector<8x128xf32> to vector<8x32xf32>
    %78 = arith.negf %77 : vector<8x32xf32>
    %79 = math.exp %78 : vector<8x32xf32>
    %cst_25 = arith.constant 1.000000e+00 : f32
    %80 = vector.broadcast %cst_25 : f32 to vector<8x32xf32>
    %81 = arith.addf %80, %79 : vector<8x32xf32>
    %82 = arith.divf %80, %81 : vector<8x32xf32>
    %83 = vector.extract_strided_slice %70 {offsets = [0, 64], sizes = [8, 32], strides = [1, 1]} : vector<8x128xf32> to vector<8x32xf32>
    %84 = math.tanh %83 : vector<8x32xf32>
    %85 = vector.extract_strided_slice %70 {offsets = [0, 96], sizes = [8, 32], strides = [1, 1]} : vector<8x128xf32> to vector<8x32xf32>
    %86 = arith.negf %85 : vector<8x32xf32>
    %87 = math.exp %86 : vector<8x32xf32>
    %cst_26 = arith.constant 1.000000e+00 : f32
    %88 = vector.broadcast %cst_26 : f32 to vector<8x32xf32>
    %89 = arith.addf %88, %87 : vector<8x32xf32>
    %90 = arith.divf %88, %89 : vector<8x32xf32>
    %91 = arith.mulf %82, %64 : vector<8x32xf32>
    %92 = arith.mulf %76, %84 : vector<8x32xf32>
    %93 = arith.addf %91, %92 : vector<8x32xf32>
    %94 = math.tanh %93 : vector<8x32xf32>
    %95 = arith.mulf %90, %94 : vector<8x32xf32>
    %96 = vector.extract_strided_slice %6 {offsets = [0, 3, 0], sizes = [8, 1, 128], strides = [1, 1, 1]} : vector<8x8x128xf32> to vector<8x1x128xf32>
    %97 = vector.shape_cast %96 : vector<8x1x128xf32> to vector<8x128xf32>
    %cst_27 = arith.constant dense<0.000000e+00> : vector<8x128xf32>
    %98 = tpu.matmul %95, %0, %cst_27 {dimension_numbers = #tpu.dot_dimension_numbers<[1], [0], [0], [1], [0, 0, 1, 1], [], []>} : vector<8x32xf32>, vector<32x128xf32>, vector<8x128xf32> -> vector<8x128xf32>
    %99 = arith.addf %97, %98 : vector<8x128xf32>
    %100 = vector.extract_strided_slice %99 {offsets = [0, 0], sizes = [8, 32], strides = [1, 1]} : vector<8x128xf32> to vector<8x32xf32>
    %101 = arith.negf %100 : vector<8x32xf32>
    %102 = math.exp %101 : vector<8x32xf32>
    %cst_28 = arith.constant 1.000000e+00 : f32
    %103 = vector.broadcast %cst_28 : f32 to vector<8x32xf32>
    %104 = arith.addf %103, %102 : vector<8x32xf32>
    %105 = arith.divf %103, %104 : vector<8x32xf32>
    %106 = vector.extract_strided_slice %99 {offsets = [0, 32], sizes = [8, 32], strides = [1, 1]} : vector<8x128xf32> to vector<8x32xf32>
    %107 = arith.negf %106 : vector<8x32xf32>
    %108 = math.exp %107 : vector<8x32xf32>
    %cst_29 = arith.constant 1.000000e+00 : f32
    %109 = vector.broadcast %cst_29 : f32 to vector<8x32xf32>
    %110 = arith.addf %109, %108 : vector<8x32xf32>
    %111 = arith.divf %109, %110 : vector<8x32xf32>
    %112 = vector.extract_strided_slice %99 {offsets = [0, 64], sizes = [8, 32], strides = [1, 1]} : vector<8x128xf32> to vector<8x32xf32>
    %113 = math.tanh %112 : vector<8x32xf32>
    %114 = vector.extract_strided_slice %99 {offsets = [0, 96], sizes = [8, 32], strides = [1, 1]} : vector<8x128xf32> to vector<8x32xf32>
    %115 = arith.negf %114 : vector<8x32xf32>
    %116 = math.exp %115 : vector<8x32xf32>
    %cst_30 = arith.constant 1.000000e+00 : f32
    %117 = vector.broadcast %cst_30 : f32 to vector<8x32xf32>
    %118 = arith.addf %117, %116 : vector<8x32xf32>
    %119 = arith.divf %117, %118 : vector<8x32xf32>
    %120 = arith.mulf %111, %93 : vector<8x32xf32>
    %121 = arith.mulf %105, %113 : vector<8x32xf32>
    %122 = arith.addf %120, %121 : vector<8x32xf32>
    %123 = math.tanh %122 : vector<8x32xf32>
    %124 = arith.mulf %119, %123 : vector<8x32xf32>
    %125 = vector.extract_strided_slice %6 {offsets = [0, 4, 0], sizes = [8, 1, 128], strides = [1, 1, 1]} : vector<8x8x128xf32> to vector<8x1x128xf32>
    %126 = vector.shape_cast %125 : vector<8x1x128xf32> to vector<8x128xf32>
    %cst_31 = arith.constant dense<0.000000e+00> : vector<8x128xf32>
    %127 = tpu.matmul %124, %0, %cst_31 {dimension_numbers = #tpu.dot_dimension_numbers<[1], [0], [0], [1], [0, 0, 1, 1], [], []>} : vector<8x32xf32>, vector<32x128xf32>, vector<8x128xf32> -> vector<8x128xf32>
    %128 = arith.addf %126, %127 : vector<8x128xf32>
    %129 = vector.extract_strided_slice %128 {offsets = [0, 0], sizes = [8, 32], strides = [1, 1]} : vector<8x128xf32> to vector<8x32xf32>
    %130 = arith.negf %129 : vector<8x32xf32>
    %131 = math.exp %130 : vector<8x32xf32>
    %cst_32 = arith.constant 1.000000e+00 : f32
    %132 = vector.broadcast %cst_32 : f32 to vector<8x32xf32>
    %133 = arith.addf %132, %131 : vector<8x32xf32>
    %134 = arith.divf %132, %133 : vector<8x32xf32>
    %135 = vector.extract_strided_slice %128 {offsets = [0, 32], sizes = [8, 32], strides = [1, 1]} : vector<8x128xf32> to vector<8x32xf32>
    %136 = arith.negf %135 : vector<8x32xf32>
    %137 = math.exp %136 : vector<8x32xf32>
    %cst_33 = arith.constant 1.000000e+00 : f32
    %138 = vector.broadcast %cst_33 : f32 to vector<8x32xf32>
    %139 = arith.addf %138, %137 : vector<8x32xf32>
    %140 = arith.divf %138, %139 : vector<8x32xf32>
    %141 = vector.extract_strided_slice %128 {offsets = [0, 64], sizes = [8, 32], strides = [1, 1]} : vector<8x128xf32> to vector<8x32xf32>
    %142 = math.tanh %141 : vector<8x32xf32>
    %143 = vector.extract_strided_slice %128 {offsets = [0, 96], sizes = [8, 32], strides = [1, 1]} : vector<8x128xf32> to vector<8x32xf32>
    %144 = arith.negf %143 : vector<8x32xf32>
    %145 = math.exp %144 : vector<8x32xf32>
    %cst_34 = arith.constant 1.000000e+00 : f32
    %146 = vector.broadcast %cst_34 : f32 to vector<8x32xf32>
    %147 = arith.addf %146, %145 : vector<8x32xf32>
    %148 = arith.divf %146, %147 : vector<8x32xf32>
    %149 = arith.mulf %140, %122 : vector<8x32xf32>
    %150 = arith.mulf %134, %142 : vector<8x32xf32>
    %151 = arith.addf %149, %150 : vector<8x32xf32>
    %152 = math.tanh %151 : vector<8x32xf32>
    %153 = arith.mulf %148, %152 : vector<8x32xf32>
    %154 = vector.extract_strided_slice %6 {offsets = [0, 5, 0], sizes = [8, 1, 128], strides = [1, 1, 1]} : vector<8x8x128xf32> to vector<8x1x128xf32>
    %155 = vector.shape_cast %154 : vector<8x1x128xf32> to vector<8x128xf32>
    %cst_35 = arith.constant dense<0.000000e+00> : vector<8x128xf32>
    %156 = tpu.matmul %153, %0, %cst_35 {dimension_numbers = #tpu.dot_dimension_numbers<[1], [0], [0], [1], [0, 0, 1, 1], [], []>} : vector<8x32xf32>, vector<32x128xf32>, vector<8x128xf32> -> vector<8x128xf32>
    %157 = arith.addf %155, %156 : vector<8x128xf32>
    %158 = vector.extract_strided_slice %157 {offsets = [0, 0], sizes = [8, 32], strides = [1, 1]} : vector<8x128xf32> to vector<8x32xf32>
    %159 = arith.negf %158 : vector<8x32xf32>
    %160 = math.exp %159 : vector<8x32xf32>
    %cst_36 = arith.constant 1.000000e+00 : f32
    %161 = vector.broadcast %cst_36 : f32 to vector<8x32xf32>
    %162 = arith.addf %161, %160 : vector<8x32xf32>
    %163 = arith.divf %161, %162 : vector<8x32xf32>
    %164 = vector.extract_strided_slice %157 {offsets = [0, 32], sizes = [8, 32], strides = [1, 1]} : vector<8x128xf32> to vector<8x32xf32>
    %165 = arith.negf %164 : vector<8x32xf32>
    %166 = math.exp %165 : vector<8x32xf32>
    %cst_37 = arith.constant 1.000000e+00 : f32
    %167 = vector.broadcast %cst_37 : f32 to vector<8x32xf32>
    %168 = arith.addf %167, %166 : vector<8x32xf32>
    %169 = arith.divf %167, %168 : vector<8x32xf32>
    %170 = vector.extract_strided_slice %157 {offsets = [0, 64], sizes = [8, 32], strides = [1, 1]} : vector<8x128xf32> to vector<8x32xf32>
    %171 = math.tanh %170 : vector<8x32xf32>
    %172 = vector.extract_strided_slice %157 {offsets = [0, 96], sizes = [8, 32], strides = [1, 1]} : vector<8x128xf32> to vector<8x32xf32>
    %173 = arith.negf %172 : vector<8x32xf32>
    %174 = math.exp %173 : vector<8x32xf32>
    %cst_38 = arith.constant 1.000000e+00 : f32
    %175 = vector.broadcast %cst_38 : f32 to vector<8x32xf32>
    %176 = arith.addf %175, %174 : vector<8x32xf32>
    %177 = arith.divf %175, %176 : vector<8x32xf32>
    %178 = arith.mulf %169, %151 : vector<8x32xf32>
    %179 = arith.mulf %163, %171 : vector<8x32xf32>
    %180 = arith.addf %178, %179 : vector<8x32xf32>
    %181 = math.tanh %180 : vector<8x32xf32>
    %182 = arith.mulf %177, %181 : vector<8x32xf32>
    %183 = vector.extract_strided_slice %6 {offsets = [0, 6, 0], sizes = [8, 1, 128], strides = [1, 1, 1]} : vector<8x8x128xf32> to vector<8x1x128xf32>
    %184 = vector.shape_cast %183 : vector<8x1x128xf32> to vector<8x128xf32>
    %cst_39 = arith.constant dense<0.000000e+00> : vector<8x128xf32>
    %185 = tpu.matmul %182, %0, %cst_39 {dimension_numbers = #tpu.dot_dimension_numbers<[1], [0], [0], [1], [0, 0, 1, 1], [], []>} : vector<8x32xf32>, vector<32x128xf32>, vector<8x128xf32> -> vector<8x128xf32>
    %186 = arith.addf %184, %185 : vector<8x128xf32>
    %187 = vector.extract_strided_slice %186 {offsets = [0, 0], sizes = [8, 32], strides = [1, 1]} : vector<8x128xf32> to vector<8x32xf32>
    %188 = arith.negf %187 : vector<8x32xf32>
    %189 = math.exp %188 : vector<8x32xf32>
    %cst_40 = arith.constant 1.000000e+00 : f32
    %190 = vector.broadcast %cst_40 : f32 to vector<8x32xf32>
    %191 = arith.addf %190, %189 : vector<8x32xf32>
    %192 = arith.divf %190, %191 : vector<8x32xf32>
    %193 = vector.extract_strided_slice %186 {offsets = [0, 32], sizes = [8, 32], strides = [1, 1]} : vector<8x128xf32> to vector<8x32xf32>
    %194 = arith.negf %193 : vector<8x32xf32>
    %195 = math.exp %194 : vector<8x32xf32>
    %cst_41 = arith.constant 1.000000e+00 : f32
    %196 = vector.broadcast %cst_41 : f32 to vector<8x32xf32>
    %197 = arith.addf %196, %195 : vector<8x32xf32>
    %198 = arith.divf %196, %197 : vector<8x32xf32>
    %199 = vector.extract_strided_slice %186 {offsets = [0, 64], sizes = [8, 32], strides = [1, 1]} : vector<8x128xf32> to vector<8x32xf32>
    %200 = math.tanh %199 : vector<8x32xf32>
    %201 = vector.extract_strided_slice %186 {offsets = [0, 96], sizes = [8, 32], strides = [1, 1]} : vector<8x128xf32> to vector<8x32xf32>
    %202 = arith.negf %201 : vector<8x32xf32>
    %203 = math.exp %202 : vector<8x32xf32>
    %cst_42 = arith.constant 1.000000e+00 : f32
    %204 = vector.broadcast %cst_42 : f32 to vector<8x32xf32>
    %205 = arith.addf %204, %203 : vector<8x32xf32>
    %206 = arith.divf %204, %205 : vector<8x32xf32>
    %207 = arith.mulf %198, %180 : vector<8x32xf32>
    %208 = arith.mulf %192, %200 : vector<8x32xf32>
    %209 = arith.addf %207, %208 : vector<8x32xf32>
    %210 = math.tanh %209 : vector<8x32xf32>
    %211 = arith.mulf %206, %210 : vector<8x32xf32>
    %212 = vector.extract_strided_slice %6 {offsets = [0, 7, 0], sizes = [8, 1, 128], strides = [1, 1, 1]} : vector<8x8x128xf32> to vector<8x1x128xf32>
    %213 = vector.shape_cast %212 : vector<8x1x128xf32> to vector<8x128xf32>
    %cst_43 = arith.constant dense<0.000000e+00> : vector<8x128xf32>
    %214 = tpu.matmul %211, %0, %cst_43 {dimension_numbers = #tpu.dot_dimension_numbers<[1], [0], [0], [1], [0, 0, 1, 1], [], []>} : vector<8x32xf32>, vector<32x128xf32>, vector<8x128xf32> -> vector<8x128xf32>
    %215 = arith.addf %213, %214 : vector<8x128xf32>
    %216 = vector.extract_strided_slice %215 {offsets = [0, 0], sizes = [8, 32], strides = [1, 1]} : vector<8x128xf32> to vector<8x32xf32>
    %217 = arith.negf %216 : vector<8x32xf32>
    %218 = math.exp %217 : vector<8x32xf32>
    %cst_44 = arith.constant 1.000000e+00 : f32
    %219 = vector.broadcast %cst_44 : f32 to vector<8x32xf32>
    %220 = arith.addf %219, %218 : vector<8x32xf32>
    %221 = arith.divf %219, %220 : vector<8x32xf32>
    %222 = vector.extract_strided_slice %215 {offsets = [0, 32], sizes = [8, 32], strides = [1, 1]} : vector<8x128xf32> to vector<8x32xf32>
    %223 = arith.negf %222 : vector<8x32xf32>
    %224 = math.exp %223 : vector<8x32xf32>
    %cst_45 = arith.constant 1.000000e+00 : f32
    %225 = vector.broadcast %cst_45 : f32 to vector<8x32xf32>
    %226 = arith.addf %225, %224 : vector<8x32xf32>
    %227 = arith.divf %225, %226 : vector<8x32xf32>
    %228 = vector.extract_strided_slice %215 {offsets = [0, 64], sizes = [8, 32], strides = [1, 1]} : vector<8x128xf32> to vector<8x32xf32>
    %229 = math.tanh %228 : vector<8x32xf32>
    %230 = vector.extract_strided_slice %215 {offsets = [0, 96], sizes = [8, 32], strides = [1, 1]} : vector<8x128xf32> to vector<8x32xf32>
    %231 = arith.negf %230 : vector<8x32xf32>
    %232 = math.exp %231 : vector<8x32xf32>
    %cst_46 = arith.constant 1.000000e+00 : f32
    %233 = vector.broadcast %cst_46 : f32 to vector<8x32xf32>
    %234 = arith.addf %233, %232 : vector<8x32xf32>
    %235 = arith.divf %233, %234 : vector<8x32xf32>
    %236 = arith.mulf %227, %209 : vector<8x32xf32>
    %237 = arith.mulf %221, %229 : vector<8x32xf32>
    %238 = arith.addf %236, %237 : vector<8x32xf32>
    %239 = math.tanh %238 : vector<8x32xf32>
    %240 = arith.mulf %235, %239 : vector<8x32xf32>
    %241 = tpu.concatenate %37, %66, %95, %124, %153, %182, %211, %240 in 0 : vector<8x32xf32>, vector<8x32xf32>, vector<8x32xf32>, vector<8x32xf32>, vector<8x32xf32>, vector<8x32xf32>, vector<8x32xf32>, vector<8x32xf32> -> vector<64x32xf32>
    %cst_47 = arith.constant dense<0.000000e+00> : vector<64x128xf32>
    %242 = tpu.matmul %241, %1, %cst_47 {dimension_numbers = #tpu.dot_dimension_numbers<[1], [0], [0], [1], [0, 0, 1, 1], [], []>} : vector<64x32xf32>, vector<32x128xf32>, vector<64x128xf32> -> vector<64x128xf32>
    %243 = vector.broadcast %3 : vector<1x128xf32> to vector<64x128xf32>
    %244 = arith.addf %242, %243 : vector<64x128xf32>
    %cst_48 = arith.constant 0.000000e+00 : f32
    %245 = vector.broadcast %cst_48 : f32 to vector<8x32xf32>
    %cst_49 = arith.constant 0.000000e+00 : f32
    %246 = vector.broadcast %cst_49 : f32 to vector<8x32xf32>
    %247 = vector.extract_strided_slice %244 {offsets = [0, 0], sizes = [8, 128], strides = [1, 1]} : vector<64x128xf32> to vector<8x128xf32>
    %cst_50 = arith.constant dense<0.000000e+00> : vector<8x128xf32>
    %248 = tpu.matmul %245, %2, %cst_50 {dimension_numbers = #tpu.dot_dimension_numbers<[1], [0], [0], [1], [0, 0, 1, 1], [], []>} : vector<8x32xf32>, vector<32x128xf32>, vector<8x128xf32> -> vector<8x128xf32>
    %249 = arith.addf %247, %248 : vector<8x128xf32>
    %250 = vector.extract_strided_slice %249 {offsets = [0, 0], sizes = [8, 32], strides = [1, 1]} : vector<8x128xf32> to vector<8x32xf32>
    %251 = arith.negf %250 : vector<8x32xf32>
    %252 = math.exp %251 : vector<8x32xf32>
    %cst_51 = arith.constant 1.000000e+00 : f32
    %253 = vector.broadcast %cst_51 : f32 to vector<8x32xf32>
    %254 = arith.addf %253, %252 : vector<8x32xf32>
    %255 = arith.divf %253, %254 : vector<8x32xf32>
    %256 = vector.extract_strided_slice %249 {offsets = [0, 32], sizes = [8, 32], strides = [1, 1]} : vector<8x128xf32> to vector<8x32xf32>
    %257 = arith.negf %256 : vector<8x32xf32>
    %258 = math.exp %257 : vector<8x32xf32>
    %cst_52 = arith.constant 1.000000e+00 : f32
    %259 = vector.broadcast %cst_52 : f32 to vector<8x32xf32>
    %260 = arith.addf %259, %258 : vector<8x32xf32>
    %261 = arith.divf %259, %260 : vector<8x32xf32>
    %262 = vector.extract_strided_slice %249 {offsets = [0, 64], sizes = [8, 32], strides = [1, 1]} : vector<8x128xf32> to vector<8x32xf32>
    %263 = math.tanh %262 : vector<8x32xf32>
    %264 = vector.extract_strided_slice %249 {offsets = [0, 96], sizes = [8, 32], strides = [1, 1]} : vector<8x128xf32> to vector<8x32xf32>
    %265 = arith.negf %264 : vector<8x32xf32>
    %266 = math.exp %265 : vector<8x32xf32>
    %cst_53 = arith.constant 1.000000e+00 : f32
    %267 = vector.broadcast %cst_53 : f32 to vector<8x32xf32>
    %268 = arith.addf %267, %266 : vector<8x32xf32>
    %269 = arith.divf %267, %268 : vector<8x32xf32>
    %270 = arith.mulf %261, %246 : vector<8x32xf32>
    %271 = arith.mulf %255, %263 : vector<8x32xf32>
    %272 = arith.addf %270, %271 : vector<8x32xf32>
    %273 = math.tanh %272 : vector<8x32xf32>
    %274 = arith.mulf %269, %273 : vector<8x32xf32>
    %275 = vector.extract_strided_slice %244 {offsets = [8, 0], sizes = [8, 128], strides = [1, 1]} : vector<64x128xf32> to vector<8x128xf32>
    %cst_54 = arith.constant dense<0.000000e+00> : vector<8x128xf32>
    %276 = tpu.matmul %274, %2, %cst_54 {dimension_numbers = #tpu.dot_dimension_numbers<[1], [0], [0], [1], [0, 0, 1, 1], [], []>} : vector<8x32xf32>, vector<32x128xf32>, vector<8x128xf32> -> vector<8x128xf32>
    %277 = arith.addf %275, %276 : vector<8x128xf32>
    %278 = vector.extract_strided_slice %277 {offsets = [0, 0], sizes = [8, 32], strides = [1, 1]} : vector<8x128xf32> to vector<8x32xf32>
    %279 = arith.negf %278 : vector<8x32xf32>
    %280 = math.exp %279 : vector<8x32xf32>
    %cst_55 = arith.constant 1.000000e+00 : f32
    %281 = vector.broadcast %cst_55 : f32 to vector<8x32xf32>
    %282 = arith.addf %281, %280 : vector<8x32xf32>
    %283 = arith.divf %281, %282 : vector<8x32xf32>
    %284 = vector.extract_strided_slice %277 {offsets = [0, 32], sizes = [8, 32], strides = [1, 1]} : vector<8x128xf32> to vector<8x32xf32>
    %285 = arith.negf %284 : vector<8x32xf32>
    %286 = math.exp %285 : vector<8x32xf32>
    %cst_56 = arith.constant 1.000000e+00 : f32
    %287 = vector.broadcast %cst_56 : f32 to vector<8x32xf32>
    %288 = arith.addf %287, %286 : vector<8x32xf32>
    %289 = arith.divf %287, %288 : vector<8x32xf32>
    %290 = vector.extract_strided_slice %277 {offsets = [0, 64], sizes = [8, 32], strides = [1, 1]} : vector<8x128xf32> to vector<8x32xf32>
    %291 = math.tanh %290 : vector<8x32xf32>
    %292 = vector.extract_strided_slice %277 {offsets = [0, 96], sizes = [8, 32], strides = [1, 1]} : vector<8x128xf32> to vector<8x32xf32>
    %293 = arith.negf %292 : vector<8x32xf32>
    %294 = math.exp %293 : vector<8x32xf32>
    %cst_57 = arith.constant 1.000000e+00 : f32
    %295 = vector.broadcast %cst_57 : f32 to vector<8x32xf32>
    %296 = arith.addf %295, %294 : vector<8x32xf32>
    %297 = arith.divf %295, %296 : vector<8x32xf32>
    %298 = arith.mulf %289, %272 : vector<8x32xf32>
    %299 = arith.mulf %283, %291 : vector<8x32xf32>
    %300 = arith.addf %298, %299 : vector<8x32xf32>
    %301 = math.tanh %300 : vector<8x32xf32>
    %302 = arith.mulf %297, %301 : vector<8x32xf32>
    %303 = vector.extract_strided_slice %244 {offsets = [16, 0], sizes = [8, 128], strides = [1, 1]} : vector<64x128xf32> to vector<8x128xf32>
    %cst_58 = arith.constant dense<0.000000e+00> : vector<8x128xf32>
    %304 = tpu.matmul %302, %2, %cst_58 {dimension_numbers = #tpu.dot_dimension_numbers<[1], [0], [0], [1], [0, 0, 1, 1], [], []>} : vector<8x32xf32>, vector<32x128xf32>, vector<8x128xf32> -> vector<8x128xf32>
    %305 = arith.addf %303, %304 : vector<8x128xf32>
    %306 = vector.extract_strided_slice %305 {offsets = [0, 0], sizes = [8, 32], strides = [1, 1]} : vector<8x128xf32> to vector<8x32xf32>
    %307 = arith.negf %306 : vector<8x32xf32>
    %308 = math.exp %307 : vector<8x32xf32>
    %cst_59 = arith.constant 1.000000e+00 : f32
    %309 = vector.broadcast %cst_59 : f32 to vector<8x32xf32>
    %310 = arith.addf %309, %308 : vector<8x32xf32>
    %311 = arith.divf %309, %310 : vector<8x32xf32>
    %312 = vector.extract_strided_slice %305 {offsets = [0, 32], sizes = [8, 32], strides = [1, 1]} : vector<8x128xf32> to vector<8x32xf32>
    %313 = arith.negf %312 : vector<8x32xf32>
    %314 = math.exp %313 : vector<8x32xf32>
    %cst_60 = arith.constant 1.000000e+00 : f32
    %315 = vector.broadcast %cst_60 : f32 to vector<8x32xf32>
    %316 = arith.addf %315, %314 : vector<8x32xf32>
    %317 = arith.divf %315, %316 : vector<8x32xf32>
    %318 = vector.extract_strided_slice %305 {offsets = [0, 64], sizes = [8, 32], strides = [1, 1]} : vector<8x128xf32> to vector<8x32xf32>
    %319 = math.tanh %318 : vector<8x32xf32>
    %320 = vector.extract_strided_slice %305 {offsets = [0, 96], sizes = [8, 32], strides = [1, 1]} : vector<8x128xf32> to vector<8x32xf32>
    %321 = arith.negf %320 : vector<8x32xf32>
    %322 = math.exp %321 : vector<8x32xf32>
    %cst_61 = arith.constant 1.000000e+00 : f32
    %323 = vector.broadcast %cst_61 : f32 to vector<8x32xf32>
    %324 = arith.addf %323, %322 : vector<8x32xf32>
    %325 = arith.divf %323, %324 : vector<8x32xf32>
    %326 = arith.mulf %317, %300 : vector<8x32xf32>
    %327 = arith.mulf %311, %319 : vector<8x32xf32>
    %328 = arith.addf %326, %327 : vector<8x32xf32>
    %329 = math.tanh %328 : vector<8x32xf32>
    %330 = arith.mulf %325, %329 : vector<8x32xf32>
    %331 = vector.extract_strided_slice %244 {offsets = [24, 0], sizes = [8, 128], strides = [1, 1]} : vector<64x128xf32> to vector<8x128xf32>
    %cst_62 = arith.constant dense<0.000000e+00> : vector<8x128xf32>
    %332 = tpu.matmul %330, %2, %cst_62 {dimension_numbers = #tpu.dot_dimension_numbers<[1], [0], [0], [1], [0, 0, 1, 1], [], []>} : vector<8x32xf32>, vector<32x128xf32>, vector<8x128xf32> -> vector<8x128xf32>
    %333 = arith.addf %331, %332 : vector<8x128xf32>
    %334 = vector.extract_strided_slice %333 {offsets = [0, 0], sizes = [8, 32], strides = [1, 1]} : vector<8x128xf32> to vector<8x32xf32>
    %335 = arith.negf %334 : vector<8x32xf32>
    %336 = math.exp %335 : vector<8x32xf32>
    %cst_63 = arith.constant 1.000000e+00 : f32
    %337 = vector.broadcast %cst_63 : f32 to vector<8x32xf32>
    %338 = arith.addf %337, %336 : vector<8x32xf32>
    %339 = arith.divf %337, %338 : vector<8x32xf32>
    %340 = vector.extract_strided_slice %333 {offsets = [0, 32], sizes = [8, 32], strides = [1, 1]} : vector<8x128xf32> to vector<8x32xf32>
    %341 = arith.negf %340 : vector<8x32xf32>
    %342 = math.exp %341 : vector<8x32xf32>
    %cst_64 = arith.constant 1.000000e+00 : f32
    %343 = vector.broadcast %cst_64 : f32 to vector<8x32xf32>
    %344 = arith.addf %343, %342 : vector<8x32xf32>
    %345 = arith.divf %343, %344 : vector<8x32xf32>
    %346 = vector.extract_strided_slice %333 {offsets = [0, 64], sizes = [8, 32], strides = [1, 1]} : vector<8x128xf32> to vector<8x32xf32>
    %347 = math.tanh %346 : vector<8x32xf32>
    %348 = vector.extract_strided_slice %333 {offsets = [0, 96], sizes = [8, 32], strides = [1, 1]} : vector<8x128xf32> to vector<8x32xf32>
    %349 = arith.negf %348 : vector<8x32xf32>
    %350 = math.exp %349 : vector<8x32xf32>
    %cst_65 = arith.constant 1.000000e+00 : f32
    %351 = vector.broadcast %cst_65 : f32 to vector<8x32xf32>
    %352 = arith.addf %351, %350 : vector<8x32xf32>
    %353 = arith.divf %351, %352 : vector<8x32xf32>
    %354 = arith.mulf %345, %328 : vector<8x32xf32>
    %355 = arith.mulf %339, %347 : vector<8x32xf32>
    %356 = arith.addf %354, %355 : vector<8x32xf32>
    %357 = math.tanh %356 : vector<8x32xf32>
    %358 = arith.mulf %353, %357 : vector<8x32xf32>
    %359 = vector.extract_strided_slice %244 {offsets = [32, 0], sizes = [8, 128], strides = [1, 1]} : vector<64x128xf32> to vector<8x128xf32>
    %cst_66 = arith.constant dense<0.000000e+00> : vector<8x128xf32>
    %360 = tpu.matmul %358, %2, %cst_66 {dimension_numbers = #tpu.dot_dimension_numbers<[1], [0], [0], [1], [0, 0, 1, 1], [], []>} : vector<8x32xf32>, vector<32x128xf32>, vector<8x128xf32> -> vector<8x128xf32>
    %361 = arith.addf %359, %360 : vector<8x128xf32>
    %362 = vector.extract_strided_slice %361 {offsets = [0, 0], sizes = [8, 32], strides = [1, 1]} : vector<8x128xf32> to vector<8x32xf32>
    %363 = arith.negf %362 : vector<8x32xf32>
    %364 = math.exp %363 : vector<8x32xf32>
    %cst_67 = arith.constant 1.000000e+00 : f32
    %365 = vector.broadcast %cst_67 : f32 to vector<8x32xf32>
    %366 = arith.addf %365, %364 : vector<8x32xf32>
    %367 = arith.divf %365, %366 : vector<8x32xf32>
    %368 = vector.extract_strided_slice %361 {offsets = [0, 32], sizes = [8, 32], strides = [1, 1]} : vector<8x128xf32> to vector<8x32xf32>
    %369 = arith.negf %368 : vector<8x32xf32>
    %370 = math.exp %369 : vector<8x32xf32>
    %cst_68 = arith.constant 1.000000e+00 : f32
    %371 = vector.broadcast %cst_68 : f32 to vector<8x32xf32>
    %372 = arith.addf %371, %370 : vector<8x32xf32>
    %373 = arith.divf %371, %372 : vector<8x32xf32>
    %374 = vector.extract_strided_slice %361 {offsets = [0, 64], sizes = [8, 32], strides = [1, 1]} : vector<8x128xf32> to vector<8x32xf32>
    %375 = math.tanh %374 : vector<8x32xf32>
    %376 = vector.extract_strided_slice %361 {offsets = [0, 96], sizes = [8, 32], strides = [1, 1]} : vector<8x128xf32> to vector<8x32xf32>
    %377 = arith.negf %376 : vector<8x32xf32>
    %378 = math.exp %377 : vector<8x32xf32>
    %cst_69 = arith.constant 1.000000e+00 : f32
    %379 = vector.broadcast %cst_69 : f32 to vector<8x32xf32>
    %380 = arith.addf %379, %378 : vector<8x32xf32>
    %381 = arith.divf %379, %380 : vector<8x32xf32>
    %382 = arith.mulf %373, %356 : vector<8x32xf32>
    %383 = arith.mulf %367, %375 : vector<8x32xf32>
    %384 = arith.addf %382, %383 : vector<8x32xf32>
    %385 = math.tanh %384 : vector<8x32xf32>
    %386 = arith.mulf %381, %385 : vector<8x32xf32>
    %387 = vector.extract_strided_slice %244 {offsets = [40, 0], sizes = [8, 128], strides = [1, 1]} : vector<64x128xf32> to vector<8x128xf32>
    %cst_70 = arith.constant dense<0.000000e+00> : vector<8x128xf32>
    %388 = tpu.matmul %386, %2, %cst_70 {dimension_numbers = #tpu.dot_dimension_numbers<[1], [0], [0], [1], [0, 0, 1, 1], [], []>} : vector<8x32xf32>, vector<32x128xf32>, vector<8x128xf32> -> vector<8x128xf32>
    %389 = arith.addf %387, %388 : vector<8x128xf32>
    %390 = vector.extract_strided_slice %389 {offsets = [0, 0], sizes = [8, 32], strides = [1, 1]} : vector<8x128xf32> to vector<8x32xf32>
    %391 = arith.negf %390 : vector<8x32xf32>
    %392 = math.exp %391 : vector<8x32xf32>
    %cst_71 = arith.constant 1.000000e+00 : f32
    %393 = vector.broadcast %cst_71 : f32 to vector<8x32xf32>
    %394 = arith.addf %393, %392 : vector<8x32xf32>
    %395 = arith.divf %393, %394 : vector<8x32xf32>
    %396 = vector.extract_strided_slice %389 {offsets = [0, 32], sizes = [8, 32], strides = [1, 1]} : vector<8x128xf32> to vector<8x32xf32>
    %397 = arith.negf %396 : vector<8x32xf32>
    %398 = math.exp %397 : vector<8x32xf32>
    %cst_72 = arith.constant 1.000000e+00 : f32
    %399 = vector.broadcast %cst_72 : f32 to vector<8x32xf32>
    %400 = arith.addf %399, %398 : vector<8x32xf32>
    %401 = arith.divf %399, %400 : vector<8x32xf32>
    %402 = vector.extract_strided_slice %389 {offsets = [0, 64], sizes = [8, 32], strides = [1, 1]} : vector<8x128xf32> to vector<8x32xf32>
    %403 = math.tanh %402 : vector<8x32xf32>
    %404 = vector.extract_strided_slice %389 {offsets = [0, 96], sizes = [8, 32], strides = [1, 1]} : vector<8x128xf32> to vector<8x32xf32>
    %405 = arith.negf %404 : vector<8x32xf32>
    %406 = math.exp %405 : vector<8x32xf32>
    %cst_73 = arith.constant 1.000000e+00 : f32
    %407 = vector.broadcast %cst_73 : f32 to vector<8x32xf32>
    %408 = arith.addf %407, %406 : vector<8x32xf32>
    %409 = arith.divf %407, %408 : vector<8x32xf32>
    %410 = arith.mulf %401, %384 : vector<8x32xf32>
    %411 = arith.mulf %395, %403 : vector<8x32xf32>
    %412 = arith.addf %410, %411 : vector<8x32xf32>
    %413 = math.tanh %412 : vector<8x32xf32>
    %414 = arith.mulf %409, %413 : vector<8x32xf32>
    %415 = vector.extract_strided_slice %244 {offsets = [48, 0], sizes = [8, 128], strides = [1, 1]} : vector<64x128xf32> to vector<8x128xf32>
    %cst_74 = arith.constant dense<0.000000e+00> : vector<8x128xf32>
    %416 = tpu.matmul %414, %2, %cst_74 {dimension_numbers = #tpu.dot_dimension_numbers<[1], [0], [0], [1], [0, 0, 1, 1], [], []>} : vector<8x32xf32>, vector<32x128xf32>, vector<8x128xf32> -> vector<8x128xf32>
    %417 = arith.addf %415, %416 : vector<8x128xf32>
    %418 = vector.extract_strided_slice %417 {offsets = [0, 0], sizes = [8, 32], strides = [1, 1]} : vector<8x128xf32> to vector<8x32xf32>
    %419 = arith.negf %418 : vector<8x32xf32>
    %420 = math.exp %419 : vector<8x32xf32>
    %cst_75 = arith.constant 1.000000e+00 : f32
    %421 = vector.broadcast %cst_75 : f32 to vector<8x32xf32>
    %422 = arith.addf %421, %420 : vector<8x32xf32>
    %423 = arith.divf %421, %422 : vector<8x32xf32>
    %424 = vector.extract_strided_slice %417 {offsets = [0, 32], sizes = [8, 32], strides = [1, 1]} : vector<8x128xf32> to vector<8x32xf32>
    %425 = arith.negf %424 : vector<8x32xf32>
    %426 = math.exp %425 : vector<8x32xf32>
    %cst_76 = arith.constant 1.000000e+00 : f32
    %427 = vector.broadcast %cst_76 : f32 to vector<8x32xf32>
    %428 = arith.addf %427, %426 : vector<8x32xf32>
    %429 = arith.divf %427, %428 : vector<8x32xf32>
    %430 = vector.extract_strided_slice %417 {offsets = [0, 64], sizes = [8, 32], strides = [1, 1]} : vector<8x128xf32> to vector<8x32xf32>
    %431 = math.tanh %430 : vector<8x32xf32>
    %432 = vector.extract_strided_slice %417 {offsets = [0, 96], sizes = [8, 32], strides = [1, 1]} : vector<8x128xf32> to vector<8x32xf32>
    %433 = arith.negf %432 : vector<8x32xf32>
    %434 = math.exp %433 : vector<8x32xf32>
    %cst_77 = arith.constant 1.000000e+00 : f32
    %435 = vector.broadcast %cst_77 : f32 to vector<8x32xf32>
    %436 = arith.addf %435, %434 : vector<8x32xf32>
    %437 = arith.divf %435, %436 : vector<8x32xf32>
    %438 = arith.mulf %429, %412 : vector<8x32xf32>
    %439 = arith.mulf %423, %431 : vector<8x32xf32>
    %440 = arith.addf %438, %439 : vector<8x32xf32>
    %441 = math.tanh %440 : vector<8x32xf32>
    %442 = arith.mulf %437, %441 : vector<8x32xf32>
    %443 = vector.extract_strided_slice %244 {offsets = [56, 0], sizes = [8, 128], strides = [1, 1]} : vector<64x128xf32> to vector<8x128xf32>
    %cst_78 = arith.constant dense<0.000000e+00> : vector<8x128xf32>
    %444 = tpu.matmul %442, %2, %cst_78 {dimension_numbers = #tpu.dot_dimension_numbers<[1], [0], [0], [1], [0, 0, 1, 1], [], []>} : vector<8x32xf32>, vector<32x128xf32>, vector<8x128xf32> -> vector<8x128xf32>
    %445 = arith.addf %443, %444 : vector<8x128xf32>
    %446 = vector.extract_strided_slice %445 {offsets = [0, 0], sizes = [8, 32], strides = [1, 1]} : vector<8x128xf32> to vector<8x32xf32>
    %447 = arith.negf %446 : vector<8x32xf32>
    %448 = math.exp %447 : vector<8x32xf32>
    %cst_79 = arith.constant 1.000000e+00 : f32
    %449 = vector.broadcast %cst_79 : f32 to vector<8x32xf32>
    %450 = arith.addf %449, %448 : vector<8x32xf32>
    %451 = arith.divf %449, %450 : vector<8x32xf32>
    %452 = vector.extract_strided_slice %445 {offsets = [0, 32], sizes = [8, 32], strides = [1, 1]} : vector<8x128xf32> to vector<8x32xf32>
    %453 = arith.negf %452 : vector<8x32xf32>
    %454 = math.exp %453 : vector<8x32xf32>
    %cst_80 = arith.constant 1.000000e+00 : f32
    %455 = vector.broadcast %cst_80 : f32 to vector<8x32xf32>
    %456 = arith.addf %455, %454 : vector<8x32xf32>
    %457 = arith.divf %455, %456 : vector<8x32xf32>
    %458 = vector.extract_strided_slice %445 {offsets = [0, 64], sizes = [8, 32], strides = [1, 1]} : vector<8x128xf32> to vector<8x32xf32>
    %459 = math.tanh %458 : vector<8x32xf32>
    %460 = vector.extract_strided_slice %445 {offsets = [0, 96], sizes = [8, 32], strides = [1, 1]} : vector<8x128xf32> to vector<8x32xf32>
    %461 = arith.negf %460 : vector<8x32xf32>
    %462 = math.exp %461 : vector<8x32xf32>
    %cst_81 = arith.constant 1.000000e+00 : f32
    %463 = vector.broadcast %cst_81 : f32 to vector<8x32xf32>
    %464 = arith.addf %463, %462 : vector<8x32xf32>
    %465 = arith.divf %463, %464 : vector<8x32xf32>
    %466 = arith.mulf %457, %440 : vector<8x32xf32>
    %467 = arith.mulf %451, %459 : vector<8x32xf32>
    %468 = arith.addf %466, %467 : vector<8x32xf32>
    %469 = math.tanh %468 : vector<8x32xf32>
    %470 = arith.mulf %465, %469 : vector<8x32xf32>
    %cst_82 = arith.constant dense<0.000000e+00> : vector<8x4xf32>
    %471 = tpu.matmul %470, %4, %cst_82 {dimension_numbers = #tpu.dot_dimension_numbers<[1], [0], [0], [1], [0, 0, 1, 1], [], []>} : vector<8x32xf32>, vector<32x4xf32>, vector<8x4xf32> -> vector<8x4xf32>
    %472 = vector.broadcast %5 : vector<1x4xf32> to vector<8x4xf32>
    %473 = arith.addf %471, %472 : vector<8x4xf32>
    %c0_83 = arith.constant 0 : index
    %c0_84 = arith.constant 0 : index
    %474 = vector.load %arg7[%c0_83, %c0_84] : memref<8x4xf32, #tpu.memory_space<vmem>>, vector<8x4xf32>
    tpu.vector_store %arg7[%c0_83, %c0_84], %473 {strides = array<i32>} : memref<8x4xf32, #tpu.memory_space<vmem>>, vector<8x4xf32>,
    return
  }
}

</mosaic_0001>

<llo_original>
// kernel: prediction_model_forward.1
$region0: #{prediction_model_forward.1}
  #allocation0 [shape = 'u32[]', space=smem, size = 0x4, offset = 0x4, fixed_abs, tag = 'smem constant byte address 0x4 - core index']
  #allocation1 [shape = 'u32[144,128]{1,0:T(1,128)}', space=vmem, size = 0x12000, scoped, tag = 'internal scratch']
  %s0 = inlined_call_operand.vmem [shape: f32[8,8,128], index: 0, kind: input, shape index: {}]
  %s1 = inlined_call_operand.vmem [shape: f32[32,128], index: 1, kind: input, shape index: {}]
  %s2 = inlined_call_operand.vmem [shape: f32[32,128], index: 2, kind: input, shape index: {}]
  %s3 = inlined_call_operand.vmem [shape: f32[32,128], index: 3, kind: input, shape index: {}]
  %s4 = inlined_call_operand.vmem [shape: f32[1,128], index: 4, kind: input, shape index: {}]
  %s5 = inlined_call_operand.vmem [shape: f32[32,4], index: 5, kind: input, shape index: {}]
  %s6 = inlined_call_operand.vmem [shape: f32[1,4], index: 6, kind: input, shape index: {}]
  %s7 = inlined_call_operand.vmem [shape: f32[8,4], index: 7, kind: output, shape index: {}]
  %s8 = sld [smem:[#allocation0]]
  $region38: #{prediction_model_forward.1} parent=0
    _
  %s10 = ssub.s32 1, %s8
  %s11 = scalar_select 0, %s10, %s8
  // Predicated region
  $region2: #{prediction_model_forward.1} parent=0 // pred_check
    _
  $region3: #{prediction_model_forward.1} parent=0 // pred_check_branch
    %13 = sbr.rel (0) target = $region5
  $region4: #{prediction_model_forward.1} parent=0 // pred_region
    _
  $region5: #{prediction_model_forward.1} parent=0 // pred_fallthru
    _
  // Predicated region
  $region6: #{prediction_model_forward.1} parent=0 // pred_check
    _
  $region7: #{prediction_model_forward.1} parent=0 // pred_check_branch
    %15 = sbr.rel (0) target = $region9
  $region8: #{prediction_model_forward.1} parent=0 // pred_region
    _
  $region9: #{prediction_model_forward.1} parent=0 // pred_fallthru
    _
  // Predicated region
  $region10: #{prediction_model_forward.1} parent=0 // pred_check
    _
  $region11: #{prediction_model_forward.1} parent=0 // pred_check_branch
    %17 = sbr.rel (0) target = $region13
  $region12: #{prediction_model_forward.1} parent=0 // pred_region
    _
  $region13: #{prediction_model_forward.1} parent=0 // pred_fallthru
    _
  // Predicated region
  $region14: #{prediction_model_forward.1} parent=0 // pred_check
    _
  $region15: #{prediction_model_forward.1} parent=0 // pred_check_branch
    %19 = sbr.rel (0) target = $region17
  $region16: #{prediction_model_forward.1} parent=0 // pred_region
    _
  $region17: #{prediction_model_forward.1} parent=0 // pred_fallthru
    _
  // Predicated region
  $region18: #{prediction_model_forward.1} parent=0 // pred_check
    _
  $region19: #{prediction_model_forward.1} parent=0 // pred_check_branch
    %21 = sbr.rel (0) target = $region21
  $region20: #{prediction_model_forward.1} parent=0 // pred_region
    _
  $region21: #{prediction_model_forward.1} parent=0 // pred_fallthru
    _
  // Predicated region
  $region22: #{prediction_model_forward.1} parent=0 // pred_check
    _
  $region23: #{prediction_model_forward.1} parent=0 // pred_check_branch
    %23 = sbr.rel (0) target = $region25
  $region24: #{prediction_model_forward.1} parent=0 // pred_region
    _
  $region25: #{prediction_model_forward.1} parent=0 // pred_fallthru
    _
  // Predicated region
  $region26: #{prediction_model_forward.1} parent=0 // pred_check
    _
  $region27: #{prediction_model_forward.1} parent=0 // pred_check_branch
    %25 = sbr.rel (0) target = $region29
  $region28: #{prediction_model_forward.1} parent=0 // pred_region
    _
  $region29: #{prediction_model_forward.1} parent=0 // pred_fallthru
    _
  %v26 = vld [vmem:[%s1] sm:$0xff]
  %v27 = vld [vmem:[%s1 + $0x8] sm:$0xff]
  %v28 = vld [vmem:[%s1 + $0x10] sm:$0xff]
  %v29 = vld [vmem:[%s1 + $0x18] sm:$0xff]
  %v30 = vld [vmem:[%s2] sm:$0xff]
  %v31 = vld [vmem:[%s2 + $0x8] sm:$0xff]
  %v32 = vld [vmem:[%s2 + $0x10] sm:$0xff]
  %v33 = vld [vmem:[%s2 + $0x18] sm:$0xff]
  %v34 = vld [vmem:[%s3] sm:$0xff]
  %v35 = vld [vmem:[%s3 + $0x8] sm:$0xff]
  %v36 = vld [vmem:[%s3 + $0x10] sm:$0xff]
  %v37 = vld [vmem:[%s3 + $0x18] sm:$0xff]
  %v38 = vld [vmem:[%s4] sm:$0x1]
  %v39 = vld [vmem:[%s5] sm:$0xff]
  %v40 = vld [vmem:[%s5 + $0x8] sm:$0xff]
  %v41 = vld [vmem:[%s5 + $0x10] sm:$0xff]
  %v42 = vld [vmem:[%s5 + $0x18] sm:$0xff]
  %v43 = vld [vmem:[%s6] sm:$0x1]
  %v44 = vld [vmem:[%s0] sm:$0xff]
  %v45 = vld [vmem:[%s0 + $0x8] sm:$0xff]
  %v46 = vld [vmem:[%s0 + $0x10] sm:$0xff]
  %v47 = vld [vmem:[%s0 + $0x18] sm:$0xff]
  %v48 = vld [vmem:[%s0 + $0x20] sm:$0xff]
  %v49 = vld [vmem:[%s0 + $0x28] sm:$0xff]
  %v50 = vld [vmem:[%s0 + $0x30] sm:$0xff]
  %v51 = vld [vmem:[%s0 + $0x38] sm:$0xff]
  %vm52 = vcmask 261120
  %v54 = vsel %vm52, 0.0, 0
  %56 = vmatprep.subr.mxu0 0.0
  %57 = vmatpush1.msra.mxu0 0.0
  %58 = vmatprep.subr.mxu0 0.0
  %59 = vmatpush1.msra.mxu0 0.0
  %60 = vmatprep.subr.mxu0 0.0
  %61 = vmatpush1.msra.mxu0 0.0
  %62 = vmatprep.subr.mxu0 0.0
  %63 = vmatpush1.msra.mxu0 0.0
  %64 = vmatprep.subr.mxu0 0.0
  %65 = vmatpush1.msra.mxu0 0.0
  %66 = vmatprep.subr.mxu0 0.0
  %67 = vmatpush1.msra.mxu0 0.0
  %68 = vmatprep.subr.mxu0 0.0
  %69 = vmatpush1.msra.mxu0 0.0
  %70 = vmatprep.subr.mxu0 0.0
  %71 = vmatpush1.msra.mxu0 0.0
  %72 = vmatprep.subr.mxu0 0.0
  %73 = vmatpush1.msra.mxu0 0.0
  %74 = vmatprep.subr.mxu0 0.0
  %75 = vmatpush1.msra.mxu0 0.0
  %76 = vmatprep.subr.mxu0 0.0
  %77 = vmatpush1.msra.mxu0 0.0
  %78 = vmatprep.subr.mxu0 0.0
  %79 = vmatpush1.msra.mxu0 0.0
  %80 = vmatprep.subr.mxu0 0.0
  %81 = vmatpush1.msra.mxu0 %v29
  %82 = vmatprep.subr.mxu0 0.0
  %83 = vmatpush1.msra.mxu0 %v28
  %84 = vmatprep.subr.mxu0 0.0
  %85 = vmatpush1.msra.mxu0 %v27
  %86 = vmatprep.subr.mxu0 0.0
  %87 = vmatpush1.msra.mxu0 %v26
  %88 = vmatprep.subr.mxu0 0.0
  %89 = vmatpush2.msra.mxu0 0.0
  %90 = vmatprep.subr.mxu0 0.0
  %91 = vmatpush2.msra.mxu0 0.0
  %92 = vmatprep.subr.mxu0 0.0
  %93 = vmatpush2.msra.mxu0 0.0
  %94 = vmatprep.subr.mxu0 0.0
  %95 = vmatpush2.msra.mxu0 0.0
  %96 = vmatprep.subr.mxu0 0.0
  %97 = vmatpush2.msra.mxu0 0.0
  %98 = vmatprep.subr.mxu0 0.0
  %99 = vmatpush2.msra.mxu0 0.0
  %100 = vmatprep.subr.mxu0 0.0
  %101 = vmatpush2.msra.mxu0 0.0
  %102 = vmatprep.subr.mxu0 0.0
  %103 = vmatpush2.msra.mxu0 0.0
  %104 = vmatprep.subr.mxu0 0.0
  %105 = vmatpush2.msra.mxu0 0.0
  %106 = vmatprep.subr.mxu0 0.0
  %107 = vmatpush2.msra.mxu0 0.0
  %108 = vmatprep.subr.mxu0 0.0
  %109 = vmatpush2.msra.mxu0 0.0
  %110 = vmatprep.subr.mxu0 0.0
  %111 = vmatpush2.msra.mxu0 0.0
  %112 = vmatprep.subr.mxu0 0.0
  %113 = vmatpush2.msra.mxu0 0.0
  %114 = vmatprep.subr.mxu0 0.0
  %115 = vmatpush2.msra.mxu0 0.0
  %116 = vmatprep.subr.mxu0 0.0
  %117 = vmatpush2.msra.mxu0 0.0
  %118 = vmatprep.subr.mxu0 0.0
  %119 = vmatpush2.msra.mxu0 0.0
  %120 = vmatprep.mubr.f32.mxu0 0.0
  %121 = vmatmul.mubr.f32.gmra.mxu0 %v54
  %v122 = vpop.f32.mrf.mxu0
  %v123 = vadd.f32 0.0, %v122
  %v124 = vpop.f32.mrf.mxu0
  %125 = vdwg.mxu0
  %v127 = vrot.slane %v123, 1
  %v128 = vrot.slane %v123, 2
  %v129 = vrot.slane %v123, 3
  %v130 = vrot.slane %v123, 4
  %v131 = vrot.slane %v123, 5
  %v132 = vrot.slane %v123, 6
  %v133 = vrot.slane %v123, 7
  %v142 = vadd.f32 %v44, %v123
  %v143 = vadd.f32 %v45, %v127
  %v144 = vadd.f32 %v46, %v128
  %v145 = vadd.f32 %v47, %v129
  %v146 = vadd.f32 %v48, %v130
  %v147 = vadd.f32 %v49, %v131
  %v148 = vadd.f32 %v50, %v132
  %v149 = vadd.f32 %v51, %v133
  %v150 = vxor.u32 %v142, 2147483648
  %v151 = vxor.u32 %v143, 2147483648
  %v152 = vxor.u32 %v144, 2147483648
  %v153 = vxor.u32 %v145, 2147483648
  %v154 = vxor.u32 %v146, 2147483648
  %v155 = vxor.u32 %v147, 2147483648
  %v156 = vxor.u32 %v148, 2147483648
  %v157 = vxor.u32 %v149, 2147483648
  %v158 = vmul.f32 %v150, 1.442695
  %v159 = vpow.pop %v158
  %v160 = vmul.f32 %v151, 1.442695
  %v161 = vpow.pop %v160
  %v162 = vmul.f32 %v152, 1.442695
  %v163 = vpow.pop %v162
  %v164 = vmul.f32 %v153, 1.442695
  %v165 = vpow.pop %v164
  %v166 = vmul.f32 %v154, 1.442695
  %v167 = vpow.pop %v166
  %v168 = vmul.f32 %v155, 1.442695
  %v169 = vpow.pop %v168
  %v170 = vmul.f32 %v156, 1.442695
  %v171 = vpow.pop %v170
  %v172 = vmul.f32 %v157, 1.442695
  %v173 = vpow.pop %v172
  %v174 = vadd.f32 %v159, 1.0
  %v175 = vadd.f32 %v161, 1.0
  %v176 = vadd.f32 %v163, 1.0
  %v177 = vadd.f32 %v165, 1.0
  %v178 = vadd.f32 %v167, 1.0
  %v179 = vadd.f32 %v169, 1.0
  %v180 = vadd.f32 %v171, 1.0
  %v181 = vadd.f32 %v173, 1.0
  %v182 = vrcp.pop %v174
  %v183 = vmul.f32 1.0, %v182
  %v184 = vrcp.pop %v175
  %v185 = vmul.f32 1.0, %v184
  %v186 = vrcp.pop %v176
  %v187 = vmul.f32 1.0, %v186
  %v188 = vrcp.pop %v177
  %v189 = vmul.f32 1.0, %v188
  %v190 = vrcp.pop %v178
  %v191 = vmul.f32 1.0, %v190
  %v192 = vrcp.pop %v179
  %v193 = vmul.f32 1.0, %v192
  %v194 = vrcp.pop %v180
  %v195 = vmul.f32 1.0, %v194
  %v196 = vrcp.pop %v181
  %v197 = vmul.f32 1.0, %v196
  %v198 = vtanh.pop %v142
  %v199 = vtanh.pop %v143
  %v200 = vtanh.pop %v144
  %v201 = vtanh.pop %v145
  %v202 = vtanh.pop %v146
  %v203 = vtanh.pop %v147
  %v204 = vtanh.pop %v148
  %v205 = vtanh.pop %v149
  %v206 = vmul.f32 %v183, 0.0
  %v207 = vmul.f32 %v185, 0.0
  %v208 = vmul.f32 %v187, 0.0
  %v209 = vmul.f32 %v189, 0.0
  %v210 = vmul.f32 %v191, 0.0
  %v211 = vmul.f32 %v193, 0.0
  %v212 = vmul.f32 %v195, 0.0
  %v213 = vmul.f32 %v197, 0.0
  %222 = vrot.lane.b32.xlu0 %v198, 64
  %v223 = vpop.permute.xlu0 %222
  %224 = vrot.lane.b32.xlu0 %v199, 64
  %v225 = vpop.permute.xlu0 %224
  %226 = vrot.lane.b32.xlu0 %v200, 64
  %v227 = vpop.permute.xlu0 %226
  %228 = vrot.lane.b32.xlu0 %v201, 64
  %v229 = vpop.permute.xlu0 %228
  %230 = vrot.lane.b32.xlu0 %v202, 64
  %v231 = vpop.permute.xlu0 %230
  %232 = vrot.lane.b32.xlu0 %v203, 64
  %v233 = vpop.permute.xlu0 %232
  %234 = vrot.lane.b32.xlu0 %v204, 64
  %v235 = vpop.permute.xlu0 %234
  %236 = vrot.lane.b32.xlu0 %v205, 64
  %v237 = vpop.permute.xlu0 %236
  %v246 = vmul.f32 %v183, %v223
  %v247 = vmul.f32 %v185, %v225
  %v248 = vmul.f32 %v187, %v227
  %v249 = vmul.f32 %v189, %v229
  %v250 = vmul.f32 %v191, %v231
  %v251 = vmul.f32 %v193, %v233
  %v252 = vmul.f32 %v195, %v235
  %v253 = vmul.f32 %v197, %v237
  %262 = vrot.lane.b32.xlu0 %v246, 32
  %v263 = vpop.permute.xlu0 %262
  %264 = vrot.lane.b32.xlu0 %v247, 32
  %v265 = vpop.permute.xlu0 %264
  %266 = vrot.lane.b32.xlu0 %v248, 32
  %v267 = vpop.permute.xlu0 %266
  %268 = vrot.lane.b32.xlu0 %v249, 32
  %v269 = vpop.permute.xlu0 %268
  %270 = vrot.lane.b32.xlu0 %v250, 32
  %v271 = vpop.permute.xlu0 %270
  %272 = vrot.lane.b32.xlu0 %v251, 32
  %v273 = vpop.permute.xlu0 %272
  %274 = vrot.lane.b32.xlu0 %v252, 32
  %v275 = vpop.permute.xlu0 %274
  %276 = vrot.lane.b32.xlu0 %v253, 32
  %v277 = vpop.permute.xlu0 %276
  %v286 = vadd.f32 %v206, %v263
  %v287 = vadd.f32 %v207, %v265
  %v288 = vadd.f32 %v208, %v267
  %v289 = vadd.f32 %v209, %v269
  %v290 = vadd.f32 %v210, %v271
  %v291 = vadd.f32 %v211, %v273
  %v292 = vadd.f32 %v212, %v275
  %v293 = vadd.f32 %v213, %v277
  %v294 = vtanh.pop %v286
  %v295 = vtanh.pop %v287
  %v296 = vtanh.pop %v288
  %v297 = vtanh.pop %v289
  %v298 = vtanh.pop %v290
  %v299 = vtanh.pop %v291
  %v300 = vtanh.pop %v292
  %v301 = vtanh.pop %v293
  %310 = vrot.lane.b32.xlu0 %v294, 64
  %v311 = vpop.permute.xlu0 %310
  %312 = vrot.lane.b32.xlu0 %v295, 64
  %v313 = vpop.permute.xlu0 %312
  %314 = vrot.lane.b32.xlu0 %v296, 64
  %v315 = vpop.permute.xlu0 %314
  %316 = vrot.lane.b32.xlu0 %v297, 64
  %v317 = vpop.permute.xlu0 %316
  %318 = vrot.lane.b32.xlu0 %v298, 64
  %v319 = vpop.permute.xlu0 %318
  %320 = vrot.lane.b32.xlu0 %v299, 64
  %v321 = vpop.permute.xlu0 %320
  %322 = vrot.lane.b32.xlu0 %v300, 64
  %v323 = vpop.permute.xlu0 %322
  %324 = vrot.lane.b32.xlu0 %v301, 64
  %v325 = vpop.permute.xlu0 %324
  %v334 = vmul.f32 %v183, %v311
  %v335 = vmul.f32 %v185, %v313
  %v336 = vmul.f32 %v187, %v315
  %v337 = vmul.f32 %v189, %v317
  %v338 = vmul.f32 %v191, %v319
  %v339 = vmul.f32 %v193, %v321
  %v340 = vmul.f32 %v195, %v323
  %v341 = vmul.f32 %v197, %v325
  %v350 = vrot.slane %v335, 7
  %vm351 = vcmask 1041409
  %v352 = vsel %vm351, %v350, %v334
  %v353 = vrot.slane %v336, 6
  %vm354 = vcmask 1042434
  %v355 = vsel %vm354, %v353, %v352
  %v356 = vrot.slane %v337, 5
  %vm357 = vcmask 1043459
  %v358 = vsel %vm357, %v356, %v355
  %v359 = vrot.slane %v338, 4
  %vm360 = vcmask 1044484
  %v361 = vsel %vm360, %v359, %v358
  %v362 = vrot.slane %v339, 3
  %vm363 = vcmask 1045509
  %v364 = vsel %vm363, %v362, %v361
  %v365 = vrot.slane %v340, 2
  %vm366 = vcmask 1046534
  %v367 = vsel %vm366, %v365, %v364
  %v368 = vrot.slane %v341, 1
  %vm369 = vcmask 1047559
  %v370 = vsel %vm369, %v368, %v367
  %371 = vrot.lane.b32.xlu0 %v370, 32
  %v372 = vpop.permute.xlu0 %371
  %v373 = vsel %vm52, %v372, 0
  %375 = vmatprep.subr.mxu0 0.0
  %376 = vmatpush1.msra.mxu0 0.0
  %377 = vmatprep.subr.mxu0 0.0
  %378 = vmatpush1.msra.mxu0 0.0
  %379 = vmatprep.subr.mxu0 0.0
  %380 = vmatpush1.msra.mxu0 0.0
  %381 = vmatprep.subr.mxu0 0.0
  %382 = vmatpush1.msra.mxu0 0.0
  %383 = vmatprep.subr.mxu0 0.0
  %384 = vmatpush1.msra.mxu0 0.0
  %385 = vmatprep.subr.mxu0 0.0
  %386 = vmatpush1.msra.mxu0 0.0
  %387 = vmatprep.subr.mxu0 0.0
  %388 = vmatpush1.msra.mxu0 0.0
  %389 = vmatprep.subr.mxu0 0.0
  %390 = vmatpush1.msra.mxu0 0.0
  %391 = vmatprep.subr.mxu0 0.0
  %392 = vmatpush1.msra.mxu0 0.0
  %393 = vmatprep.subr.mxu0 0.0
  %394 = vmatpush1.msra.mxu0 0.0
  %395 = vmatprep.subr.mxu0 0.0
  %396 = vmatpush1.msra.mxu0 0.0
  %397 = vmatprep.subr.mxu0 0.0
  %398 = vmatpush1.msra.mxu0 0.0
  %399 = vmatprep.subr.mxu0 0.0
  %400 = vmatpush1.msra.mxu0 %v29
  %401 = vmatprep.subr.mxu0 0.0
  %402 = vmatpush1.msra.mxu0 %v28
  %403 = vmatprep.subr.mxu0 0.0
  %404 = vmatpush1.msra.mxu0 %v27
  %405 = vmatprep.subr.mxu0 0.0
  %406 = vmatpush1.msra.mxu0 %v26
  %407 = vmatprep.subr.mxu0 0.0
  %408 = vmatpush2.msra.mxu0 0.0
  %409 = vmatprep.subr.mxu0 0.0
  %410 = vmatpush2.msra.mxu0 0.0
  %411 = vmatprep.subr.mxu0 0.0
  %412 = vmatpush2.msra.mxu0 0.0
  %413 = vmatprep.subr.mxu0 0.0
  %414 = vmatpush2.msra.mxu0 0.0
  %415 = vmatprep.subr.mxu0 0.0
  %416 = vmatpush2.msra.mxu0 0.0
  %417 = vmatprep.subr.mxu0 0.0
  %418 = vmatpush2.msra.mxu0 0.0
  %419 = vmatprep.subr.mxu0 0.0
  %420 = vmatpush2.msra.mxu0 0.0
  %421 = vmatprep.subr.mxu0 0.0
  %422 = vmatpush2.msra.mxu0 0.0
  %423 = vmatprep.subr.mxu0 0.0
  %424 = vmatpush2.msra.mxu0 0.0
  %425 = vmatprep.subr.mxu0 0.0
  %426 = vmatpush2.msra.mxu0 0.0
  %427 = vmatprep.subr.mxu0 0.0
  %428 = vmatpush2.msra.mxu0 0.0
  %429 = vmatprep.subr.mxu0 0.0
  %430 = vmatpush2.msra.mxu0 0.0
  %431 = vmatprep.subr.mxu0 0.0
  %432 = vmatpush2.msra.mxu0 0.0
  %433 = vmatprep.subr.mxu0 0.0
  %434 = vmatpush2.msra.mxu0 0.0
  %435 = vmatprep.subr.mxu0 0.0
  %436 = vmatpush2.msra.mxu0 0.0
  %437 = vmatprep.subr.mxu0 0.0
  %438 = vmatpush2.msra.mxu0 0.0
  %439 = vmatprep.mubr.f32.mxu0 0.0
  %440 = vmatmul.mubr.f32.gmra.mxu0 %v373
  %v441 = vpop.f32.mrf.mxu0
  %v442 = vadd.f32 0.0, %v441
  %v443 = vpop.f32.mrf.mxu0
  %444 = vdwg.mxu0
  %v446 = vrot.slane %v442, 7
  %v447 = vrot.slane %v442, 1
  %v448 = vrot.slane %v442, 2
  %v449 = vrot.slane %v442, 3
  %v450 = vrot.slane %v442, 4
  %v451 = vrot.slane %v442, 5
  %v452 = vrot.slane %v442, 6
  %v461 = vadd.f32 %v44, %v446
  %v462 = vadd.f32 %v45, %v442
  %v463 = vadd.f32 %v46, %v447
  %v464 = vadd.f32 %v47, %v448
  %v465 = vadd.f32 %v48, %v449
  %v466 = vadd.f32 %v49, %v450
  %v467 = vadd.f32 %v50, %v451
  %v468 = vadd.f32 %v51, %v452
  %v469 = vxor.u32 %v461, 2147483648
  %v470 = vxor.u32 %v462, 2147483648
  %v471 = vxor.u32 %v463, 2147483648
  %v472 = vxor.u32 %v464, 2147483648
  %v473 = vxor.u32 %v465, 2147483648
  %v474 = vxor.u32 %v466, 2147483648
  %v475 = vxor.u32 %v467, 2147483648
  %v476 = vxor.u32 %v468, 2147483648
  %v477 = vmul.f32 %v469, 1.442695
  %v478 = vpow.pop %v477
  %v479 = vmul.f32 %v470, 1.442695
  %v480 = vpow.pop %v479
  %v481 = vmul.f32 %v471, 1.442695
  %v482 = vpow.pop %v481
  %v483 = vmul.f32 %v472, 1.442695
  %v484 = vpow.pop %v483
  %v485 = vmul.f32 %v473, 1.442695
  %v486 = vpow.pop %v485
  %v487 = vmul.f32 %v474, 1.442695
  %v488 = vpow.pop %v487
  %v489 = vmul.f32 %v475, 1.442695
  %v490 = vpow.pop %v489
  %v491 = vmul.f32 %v476, 1.442695
  %v492 = vpow.pop %v491
  %v493 = vadd.f32 %v478, 1.0
  %v494 = vadd.f32 %v480, 1.0
  %v495 = vadd.f32 %v482, 1.0
  %v496 = vadd.f32 %v484, 1.0
  %v497 = vadd.f32 %v486, 1.0
  %v498 = vadd.f32 %v488, 1.0
  %v499 = vadd.f32 %v490, 1.0
  %v500 = vadd.f32 %v492, 1.0
  %v501 = vrcp.pop %v493
  %v502 = vmul.f32 1.0, %v501
  %v503 = vrcp.pop %v494
  %v504 = vmul.f32 1.0, %v503
  %v505 = vrcp.pop %v495
  %v506 = vmul.f32 1.0, %v505
  %v507 = vrcp.pop %v496
  %v508 = vmul.f32 1.0, %v507
  %v509 = vrcp.pop %v497
  %v510 = vmul.f32 1.0, %v509
  %v511 = vrcp.pop %v498
  %v512 = vmul.f32 1.0, %v511
  %v513 = vrcp.pop %v499
  %v514 = vmul.f32 1.0, %v513
  %v515 = vrcp.pop %v500
  %v516 = vmul.f32 1.0, %v515
  %v517 = vtanh.pop %v461
  %v518 = vtanh.pop %v462
  %v519 = vtanh.pop %v463
  %v520 = vtanh.pop %v464
  %v521 = vtanh.pop %v465
  %v522 = vtanh.pop %v466
  %v523 = vtanh.pop %v467
  %v524 = vtanh.pop %v468
  %v533 = vrot.slane %v286, 7
  %v534 = vrot.slane %v287, 7
  %v535 = vrot.slane %v288, 7
  %v536 = vrot.slane %v289, 7
  %v537 = vrot.slane %v290, 7
  %v538 = vrot.slane %v291, 7
  %v539 = vrot.slane %v292, 7
  %v540 = vrot.slane %v293, 7
  %v549 = vmul.f32 %v502, %v533
  %v550 = vmul.f32 %v504, %v534
  %v551 = vmul.f32 %v506, %v535
  %v552 = vmul.f32 %v508, %v536
  %v553 = vmul.f32 %v510, %v537
  %v554 = vmul.f32 %v512, %v538
  %v555 = vmul.f32 %v514, %v539
  %v556 = vmul.f32 %v516, %v540
  %565 = vrot.lane.b32.xlu0 %v517, 64
  %v566 = vpop.permute.xlu0 %565
  %567 = vrot.lane.b32.xlu0 %v518, 64
  %v568 = vpop.permute.xlu0 %567
  %569 = vrot.lane.b32.xlu0 %v519, 64
  %v570 = vpop.permute.xlu0 %569
  %571 = vrot.lane.b32.xlu0 %v520, 64
  %v572 = vpop.permute.xlu0 %571
  %573 = vrot.lane.b32.xlu0 %v521, 64
  %v574 = vpop.permute.xlu0 %573
  %575 = vrot.lane.b32.xlu0 %v522, 64
  %v576 = vpop.permute.xlu0 %575
  %577 = vrot.lane.b32.xlu0 %v523, 64
  %v578 = vpop.permute.xlu0 %577
  %579 = vrot.lane.b32.xlu0 %v524, 64
  %v580 = vpop.permute.xlu0 %579
  %v589 = vmul.f32 %v502, %v566
  %v590 = vmul.f32 %v504, %v568
  %v591 = vmul.f32 %v506, %v570
  %v592 = vmul.f32 %v508, %v572
  %v593 = vmul.f32 %v510, %v574
  %v594 = vmul.f32 %v512, %v576
  %v595 = vmul.f32 %v514, %v578
  %v596 = vmul.f32 %v516, %v580
  %605 = vrot.lane.b32.xlu0 %v589, 32
  %v606 = vpop.permute.xlu0 %605
  %607 = vrot.lane.b32.xlu0 %v590, 32
  %v608 = vpop.permute.xlu0 %607
  %609 = vrot.lane.b32.xlu0 %v591, 32
  %v610 = vpop.permute.xlu0 %609
  %611 = vrot.lane.b32.xlu0 %v592, 32
  %v612 = vpop.permute.xlu0 %611
  %613 = vrot.lane.b32.xlu0 %v593, 32
  %v614 = vpop.permute.xlu0 %613
  %615 = vrot.lane.b32.xlu0 %v594, 32
  %v616 = vpop.permute.xlu0 %615
  %617 = vrot.lane.b32.xlu0 %v595, 32
  %v618 = vpop.permute.xlu0 %617
  %619 = vrot.lane.b32.xlu0 %v596, 32
  %v620 = vpop.permute.xlu0 %619
  %v629 = vadd.f32 %v549, %v606
  %v630 = vadd.f32 %v550, %v608
  %v631 = vadd.f32 %v551, %v610
  %v632 = vadd.f32 %v552, %v612
  %v633 = vadd.f32 %v553, %v614
  %v634 = vadd.f32 %v554, %v616
  %v635 = vadd.f32 %v555, %v618
  %v636 = vadd.f32 %v556, %v620
  %v637 = vtanh.pop %v629
  %v638 = vtanh.pop %v630
  %v639 = vtanh.pop %v631
  %v640 = vtanh.pop %v632
  %v641 = vtanh.pop %v633
  %v642 = vtanh.pop %v634
  %v643 = vtanh.pop %v635
  %v644 = vtanh.pop %v636
  %653 = vrot.lane.b32.xlu0 %v637, 64
  %v654 = vpop.permute.xlu0 %653
  %655 = vrot.lane.b32.xlu0 %v638, 64
  %v656 = vpop.permute.xlu0 %655
  %657 = vrot.lane.b32.xlu0 %v639, 64
  %v658 = vpop.permute.xlu0 %657
  %659 = vrot.lane.b32.xlu0 %v640, 64
  %v660 = vpop.permute.xlu0 %659
  %661 = vrot.lane.b32.xlu0 %v641, 64
  %v662 = vpop.permute.xlu0 %661
  %663 = vrot.lane.b32.xlu0 %v642, 64
  %v664 = vpop.permute.xlu0 %663
  %665 = vrot.lane.b32.xlu0 %v643, 64
  %v666 = vpop.permute.xlu0 %665
  %667 = vrot.lane.b32.xlu0 %v644, 64
  %v668 = vpop.permute.xlu0 %667
  %v677 = vmul.f32 %v502, %v654
  %v678 = vmul.f32 %v504, %v656
  %v679 = vmul.f32 %v506, %v658
  %v680 = vmul.f32 %v508, %v660
  %v681 = vmul.f32 %v510, %v662
  %v682 = vmul.f32 %v512, %v664
  %v683 = vmul.f32 %v514, %v666
  %v684 = vmul.f32 %v516, %v668
  %v693 = vrot.slane %v677, 1
  %v694 = vsel %vm351, %v678, %v693
  %v695 = vrot.slane %v679, 7
  %v696 = vsel %vm354, %v695, %v694
  %v697 = vrot.slane %v680, 6
  %v698 = vsel %vm357, %v697, %v696
  %v699 = vrot.slane %v681, 5
  %v700 = vsel %vm360, %v699, %v698
  %v701 = vrot.slane %v682, 4
  %v702 = vsel %vm363, %v701, %v700
  %v703 = vrot.slane %v683, 3
  %v704 = vsel %vm366, %v703, %v702
  %v705 = vrot.slane %v684, 2
  %v706 = vsel %vm369, %v705, %v704
  %707 = vrot.lane.b32.xlu0 %v706, 32
  %v708 = vpop.permute.xlu0 %707
  %v709 = vsel %vm52, %v708, 0
  %711 = vmatprep.subr.mxu0 0.0
  %712 = vmatpush1.msra.mxu0 0.0
  %713 = vmatprep.subr.mxu0 0.0
  %714 = vmatpush1.msra.mxu0 0.0
  %715 = vmatprep.subr.mxu0 0.0
  %716 = vmatpush1.msra.mxu0 0.0
  %717 = vmatprep.subr.mxu0 0.0
  %718 = vmatpush1.msra.mxu0 0.0
  %719 = vmatprep.subr.mxu0 0.0
  %720 = vmatpush1.msra.mxu0 0.0
  %721 = vmatprep.subr.mxu0 0.0
  %722 = vmatpush1.msra.mxu0 0.0
  %723 = vmatprep.subr.mxu0 0.0
  %724 = vmatpush1.msra.mxu0 0.0
  %725 = vmatprep.subr.mxu0 0.0
  %726 = vmatpush1.msra.mxu0 0.0
  %727 = vmatprep.subr.mxu0 0.0
  %728 = vmatpush1.msra.mxu0 0.0
  %729 = vmatprep.subr.mxu0 0.0
  %730 = vmatpush1.msra.mxu0 0.0
  %731 = vmatprep.subr.mxu0 0.0
  %732 = vmatpush1.msra.mxu0 0.0
  %733 = vmatprep.subr.mxu0 0.0
  %734 = vmatpush1.msra.mxu0 0.0
  %735 = vmatprep.subr.mxu0 0.0
  %736 = vmatpush1.msra.mxu0 %v29
  %737 = vmatprep.subr.mxu0 0.0
  %738 = vmatpush1.msra.mxu0 %v28
  %739 = vmatprep.subr.mxu0 0.0
  %740 = vmatpush1.msra.mxu0 %v27
  %741 = vmatprep.subr.mxu0 0.0
  %742 = vmatpush1.msra.mxu0 %v26
  %743 = vmatprep.subr.mxu0 0.0
  %744 = vmatpush2.msra.mxu0 0.0
  %745 = vmatprep.subr.mxu0 0.0
  %746 = vmatpush2.msra.mxu0 0.0
  %747 = vmatprep.subr.mxu0 0.0
  %748 = vmatpush2.msra.mxu0 0.0
  %749 = vmatprep.subr.mxu0 0.0
  %750 = vmatpush2.msra.mxu0 0.0
  %751 = vmatprep.subr.mxu0 0.0
  %752 = vmatpush2.msra.mxu0 0.0
  %753 = vmatprep.subr.mxu0 0.0
  %754 = vmatpush2.msra.mxu0 0.0
  %755 = vmatprep.subr.mxu0 0.0
  %756 = vmatpush2.msra.mxu0 0.0
  %757 = vmatprep.subr.mxu0 0.0
  %758 = vmatpush2.msra.mxu0 0.0
  %759 = vmatprep.subr.mxu0 0.0
  %760 = vmatpush2.msra.mxu0 0.0
  %761 = vmatprep.subr.mxu0 0.0
  %762 = vmatpush2.msra.mxu0 0.0
  %763 = vmatprep.subr.mxu0 0.0
  %764 = vmatpush2.msra.mxu0 0.0
  %765 = vmatprep.subr.mxu0 0.0
  %766 = vmatpush2.msra.mxu0 0.0
  %767 = vmatprep.subr.mxu0 0.0
  %768 = vmatpush2.msra.mxu0 0.0
  %769 = vmatprep.subr.mxu0 0.0
  %770 = vmatpush2.msra.mxu0 0.0
  %771 = vmatprep.subr.mxu0 0.0
  %772 = vmatpush2.msra.mxu0 0.0
  %773 = vmatprep.subr.mxu0 0.0
  %774 = vmatpush2.msra.mxu0 0.0
  %775 = vmatprep.mubr.f32.mxu0 0.0
  %776 = vmatmul.mubr.f32.gmra.mxu0 %v709
  %v777 = vpop.f32.mrf.mxu0
  %v778 = vadd.f32 0.0, %v777
  %v779 = vpop.f32.mrf.mxu0
  %780 = vdwg.mxu0
  %v782 = vrot.slane %v778, 6
  %v783 = vrot.slane %v778, 7
  %v784 = vrot.slane %v778, 1
  %v785 = vrot.slane %v778, 2
  %v786 = vrot.slane %v778, 3
  %v787 = vrot.slane %v778, 4
  %v788 = vrot.slane %v778, 5
  %v797 = vadd.f32 %v44, %v782
  %v798 = vadd.f32 %v45, %v783
  %v799 = vadd.f32 %v46, %v778
  %v800 = vadd.f32 %v47, %v784
  %v801 = vadd.f32 %v48, %v785
  %v802 = vadd.f32 %v49, %v786
  %v803 = vadd.f32 %v50, %v787
  %v804 = vadd.f32 %v51, %v788
  %v805 = vxor.u32 %v797, 2147483648
  %v806 = vxor.u32 %v798, 2147483648
  %v807 = vxor.u32 %v799, 2147483648
  %v808 = vxor.u32 %v800, 2147483648
  %v809 = vxor.u32 %v801, 2147483648
  %v810 = vxor.u32 %v802, 2147483648
  %v811 = vxor.u32 %v803, 2147483648
  %v812 = vxor.u32 %v804, 2147483648
  %v813 = vmul.f32 %v805, 1.442695
  %v814 = vpow.pop %v813
  %v815 = vmul.f32 %v806, 1.442695
  %v816 = vpow.pop %v815
  %v817 = vmul.f32 %v807, 1.442695
  %v818 = vpow.pop %v817
  %v819 = vmul.f32 %v808, 1.442695
  %v820 = vpow.pop %v819
  %v821 = vmul.f32 %v809, 1.442695
  %v822 = vpow.pop %v821
  %v823 = vmul.f32 %v810, 1.442695
  %v824 = vpow.pop %v823
  %v825 = vmul.f32 %v811, 1.442695
  %v826 = vpow.pop %v825
  %v827 = vmul.f32 %v812, 1.442695
  %v828 = vpow.pop %v827
  %v829 = vadd.f32 %v814, 1.0
  %v830 = vadd.f32 %v816, 1.0
  %v831 = vadd.f32 %v818, 1.0
  %v832 = vadd.f32 %v820, 1.0
  %v833 = vadd.f32 %v822, 1.0
  %v834 = vadd.f32 %v824, 1.0
  %v835 = vadd.f32 %v826, 1.0
  %v836 = vadd.f32 %v828, 1.0
  %v837 = vrcp.pop %v829
  %v838 = vmul.f32 1.0, %v837
  %v839 = vrcp.pop %v830
  %v840 = vmul.f32 1.0, %v839
  %v841 = vrcp.pop %v831
  %v842 = vmul.f32 1.0, %v841
  %v843 = vrcp.pop %v832
  %v844 = vmul.f32 1.0, %v843
  %v845 = vrcp.pop %v833
  %v846 = vmul.f32 1.0, %v845
  %v847 = vrcp.pop %v834
  %v848 = vmul.f32 1.0, %v847
  %v849 = vrcp.pop %v835
  %v850 = vmul.f32 1.0, %v849
  %v851 = vrcp.pop %v836
  %v852 = vmul.f32 1.0, %v851
  %v853 = vtanh.pop %v797
  %v854 = vtanh.pop %v798
  %v855 = vtanh.pop %v799
  %v856 = vtanh.pop %v800
  %v857 = vtanh.pop %v801
  %v858 = vtanh.pop %v802
  %v859 = vtanh.pop %v803
  %v860 = vtanh.pop %v804
  %v869 = vrot.slane %v629, 7
  %v870 = vrot.slane %v630, 7
  %v871 = vrot.slane %v631, 7
  %v872 = vrot.slane %v632, 7
  %v873 = vrot.slane %v633, 7
  %v874 = vrot.slane %v634, 7
  %v875 = vrot.slane %v635, 7
  %v876 = vrot.slane %v636, 7
  %v885 = vmul.f32 %v838, %v869
  %v886 = vmul.f32 %v840, %v870
  %v887 = vmul.f32 %v842, %v871
  %v888 = vmul.f32 %v844, %v872
  %v889 = vmul.f32 %v846, %v873
  %v890 = vmul.f32 %v848, %v874
  %v891 = vmul.f32 %v850, %v875
  %v892 = vmul.f32 %v852, %v876
  %901 = vrot.lane.b32.xlu0 %v853, 64
  %v902 = vpop.permute.xlu0 %901
  %903 = vrot.lane.b32.xlu0 %v854, 64
  %v904 = vpop.permute.xlu0 %903
  %905 = vrot.lane.b32.xlu0 %v855, 64
  %v906 = vpop.permute.xlu0 %905
  %907 = vrot.lane.b32.xlu0 %v856, 64
  %v908 = vpop.permute.xlu0 %907
  %909 = vrot.lane.b32.xlu0 %v857, 64
  %v910 = vpop.permute.xlu0 %909
  %911 = vrot.lane.b32.xlu0 %v858, 64
  %v912 = vpop.permute.xlu0 %911
  %913 = vrot.lane.b32.xlu0 %v859, 64
  %v914 = vpop.permute.xlu0 %913
  %915 = vrot.lane.b32.xlu0 %v860, 64
  %v916 = vpop.permute.xlu0 %915
  %v925 = vmul.f32 %v838, %v902
  %v926 = vmul.f32 %v840, %v904
  %v927 = vmul.f32 %v842, %v906
  %v928 = vmul.f32 %v844, %v908
  %v929 = vmul.f32 %v846, %v910
  %v930 = vmul.f32 %v848, %v912
  %v931 = vmul.f32 %v850, %v914
  %v932 = vmul.f32 %v852, %v916
  %941 = vrot.lane.b32.xlu0 %v925, 32
  %v942 = vpop.permute.xlu0 %941
  %943 = vrot.lane.b32.xlu0 %v926, 32
  %v944 = vpop.permute.xlu0 %943
  %945 = vrot.lane.b32.xlu0 %v927, 32
  %v946 = vpop.permute.xlu0 %945
  %947 = vrot.lane.b32.xlu0 %v928, 32
  %v948 = vpop.permute.xlu0 %947
  %949 = vrot.lane.b32.xlu0 %v929, 32
  %v950 = vpop.permute.xlu0 %949
  %951 = vrot.lane.b32.xlu0 %v930, 32
  %v952 = vpop.permute.xlu0 %951
  %953 = vrot.lane.b32.xlu0 %v931, 32
  %v954 = vpop.permute.xlu0 %953
  %955 = vrot.lane.b32.xlu0 %v932, 32
  %v956 = vpop.permute.xlu0 %955
  %v965 = vadd.f32 %v885, %v942
  %v966 = vadd.f32 %v886, %v944
  %v967 = vadd.f32 %v887, %v946
  %v968 = vadd.f32 %v888, %v948
  %v969 = vadd.f32 %v889, %v950
  %v970 = vadd.f32 %v890, %v952
  %v971 = vadd.f32 %v891, %v954
  %v972 = vadd.f32 %v892, %v956
  %v973 = vtanh.pop %v965
  %v974 = vtanh.pop %v966
  %v975 = vtanh.pop %v967
  %v976 = vtanh.pop %v968
  %v977 = vtanh.pop %v969
  %v978 = vtanh.pop %v970
  %v979 = vtanh.pop %v971
  %v980 = vtanh.pop %v972
  %989 = vrot.lane.b32.xlu0 %v973, 64
  %v990 = vpop.permute.xlu0 %989
  %991 = vrot.lane.b32.xlu0 %v974, 64
  %v992 = vpop.permute.xlu0 %991
  %993 = vrot.lane.b32.xlu0 %v975, 64
  %v994 = vpop.permute.xlu0 %993
  %995 = vrot.lane.b32.xlu0 %v976, 64
  %v996 = vpop.permute.xlu0 %995
  %997 = vrot.lane.b32.xlu0 %v977, 64
  %v998 = vpop.permute.xlu0 %997
  %999 = vrot.lane.b32.xlu0 %v978, 64
  %v1000 = vpop.permute.xlu0 %999
  %1001 = vrot.lane.b32.xlu0 %v979, 64
  %v1002 = vpop.permute.xlu0 %1001
  %1003 = vrot.lane.b32.xlu0 %v980, 64
  %v1004 = vpop.permute.xlu0 %1003
  %v1013 = vmul.f32 %v838, %v990
  %v1014 = vmul.f32 %v840, %v992
  %v1015 = vmul.f32 %v842, %v994
  %v1016 = vmul.f32 %v844, %v996
  %v1017 = vmul.f32 %v846, %v998
  %v1018 = vmul.f32 %v848, %v1000
  %v1019 = vmul.f32 %v850, %v1002
  %v1020 = vmul.f32 %v852, %v1004
  %v1029 = vrot.slane %v1013, 2
  %v1030 = vrot.slane %v1014, 1
  %v1031 = vsel %vm351, %v1030, %v1029
  %v1032 = vsel %vm354, %v1015, %v1031
  %v1033 = vrot.slane %v1016, 7
  %v1034 = vsel %vm357, %v1033, %v1032
  %v1035 = vrot.slane %v1017, 6
  %v1036 = vsel %vm360, %v1035, %v1034
  %v1037 = vrot.slane %v1018, 5
  %v1038 = vsel %vm363, %v1037, %v1036
  %v1039 = vrot.slane %v1019, 4
  %v1040 = vsel %vm366, %v1039, %v1038
  %v1041 = vrot.slane %v1020, 3
  %v1042 = vsel %vm369, %v1041, %v1040
  %1043 = vrot.lane.b32.xlu0 %v1042, 32
  %v1044 = vpop.permute.xlu0 %1043
  %v1045 = vsel %vm52, %v1044, 0
  %1047 = vmatprep.subr.mxu0 0.0
  %1048 = vmatpush1.msra.mxu0 0.0
  %1049 = vmatprep.subr.mxu0 0.0
  %1050 = vmatpush1.msra.mxu0 0.0
  %1051 = vmatprep.subr.mxu0 0.0
  %1052 = vmatpush1.msra.mxu0 0.0
  %1053 = vmatprep.subr.mxu0 0.0
  %1054 = vmatpush1.msra.mxu0 0.0
  %1055 = vmatprep.subr.mxu0 0.0
  %1056 = vmatpush1.msra.mxu0 0.0
  %1057 = vmatprep.subr.mxu0 0.0
  %1058 = vmatpush1.msra.mxu0 0.0
  %1059 = vmatprep.subr.mxu0 0.0
  %1060 = vmatpush1.msra.mxu0 0.0
  %1061 = vmatprep.subr.mxu0 0.0
  %1062 = vmatpush1.msra.mxu0 0.0
  %1063 = vmatprep.subr.mxu0 0.0
  %1064 = vmatpush1.msra.mxu0 0.0
  %1065 = vmatprep.subr.mxu0 0.0
  %1066 = vmatpush1.msra.mxu0 0.0
  %1067 = vmatprep.subr.mxu0 0.0
  %1068 = vmatpush1.msra.mxu0 0.0
  %1069 = vmatprep.subr.mxu0 0.0
  %1070 = vmatpush1.msra.mxu0 0.0
  %1071 = vmatprep.subr.mxu0 0.0
  %1072 = vmatpush1.msra.mxu0 %v29
  %1073 = vmatprep.subr.mxu0 0.0
  %1074 = vmatpush1.msra.mxu0 %v28
  %1075 = vmatprep.subr.mxu0 0.0
  %1076 = vmatpush1.msra.mxu0 %v27
  %1077 = vmatprep.subr.mxu0 0.0
  %1078 = vmatpush1.msra.mxu0 %v26
  %1079 = vmatprep.subr.mxu0 0.0
  %1080 = vmatpush2.msra.mxu0 0.0
  %1081 = vmatprep.subr.mxu0 0.0
  %1082 = vmatpush2.msra.mxu0 0.0
  %1083 = vmatprep.subr.mxu0 0.0
  %1084 = vmatpush2.msra.mxu0 0.0
  %1085 = vmatprep.subr.mxu0 0.0
  %1086 = vmatpush2.msra.mxu0 0.0
  %1087 = vmatprep.subr.mxu0 0.0
  %1088 = vmatpush2.msra.mxu0 0.0
  %1089 = vmatprep.subr.mxu0 0.0
  %1090 = vmatpush2.msra.mxu0 0.0
  %1091 = vmatprep.subr.mxu0 0.0
  %1092 = vmatpush2.msra.mxu0 0.0
  %1093 = vmatprep.subr.mxu0 0.0
  %1094 = vmatpush2.msra.mxu0 0.0
  %1095 = vmatprep.subr.mxu0 0.0
  %1096 = vmatpush2.msra.mxu0 0.0
  %1097 = vmatprep.subr.mxu0 0.0
  %1098 = vmatpush2.msra.mxu0 0.0
  %1099 = vmatprep.subr.mxu0 0.0
  %1100 = vmatpush2.msra.mxu0 0.0
  %1101 = vmatprep.subr.mxu0 0.0
  %1102 = vmatpush2.msra.mxu0 0.0
  %1103 = vmatprep.subr.mxu0 0.0
  %1104 = vmatpush2.msra.mxu0 0.0
  %1105 = vmatprep.subr.mxu0 0.0
  %1106 = vmatpush2.msra.mxu0 0.0
  %1107 = vmatprep.subr.mxu0 0.0
  %1108 = vmatpush2.msra.mxu0 0.0
  %1109 = vmatprep.subr.mxu0 0.0
  %1110 = vmatpush2.msra.mxu0 0.0
  %1111 = vmatprep.mubr.f32.mxu0 0.0
  %1112 = vmatmul.mubr.f32.gmra.mxu0 %v1045
  %v1113 = vpop.f32.mrf.mxu0
  %v1114 = vadd.f32 0.0, %v1113
  %v1115 = vpop.f32.mrf.mxu0
  %1116 = vdwg.mxu0
  %v1118 = vrot.slane %v1114, 5
  %v1119 = vrot.slane %v1114, 6
  %v1120 = vrot.slane %v1114, 7
  %v1121 = vrot.slane %v1114, 1
  %v1122 = vrot.slane %v1114, 2
  %v1123 = vrot.slane %v1114, 3
  %v1124 = vrot.slane %v1114, 4
  %v1133 = vadd.f32 %v44, %v1118
  %v1134 = vadd.f32 %v45, %v1119
  %v1135 = vadd.f32 %v46, %v1120
  %v1136 = vadd.f32 %v47, %v1114
  %v1137 = vadd.f32 %v48, %v1121
  %v1138 = vadd.f32 %v49, %v1122
  %v1139 = vadd.f32 %v50, %v1123
  %v1140 = vadd.f32 %v51, %v1124
  %v1141 = vxor.u32 %v1133, 2147483648
  %v1142 = vxor.u32 %v1134, 2147483648
  %v1143 = vxor.u32 %v1135, 2147483648
  %v1144 = vxor.u32 %v1136, 2147483648
  %v1145 = vxor.u32 %v1137, 2147483648
  %v1146 = vxor.u32 %v1138, 2147483648
  %v1147 = vxor.u32 %v1139, 2147483648
  %v1148 = vxor.u32 %v1140, 2147483648
  %v1149 = vmul.f32 %v1141, 1.442695
  %v1150 = vpow.pop %v1149
  %v1151 = vmul.f32 %v1142, 1.442695
  %v1152 = vpow.pop %v1151
  %v1153 = vmul.f32 %v1143, 1.442695
  %v1154 = vpow.pop %v1153
  %v1155 = vmul.f32 %v1144, 1.442695
  %v1156 = vpow.pop %v1155
  %v1157 = vmul.f32 %v1145, 1.442695
  %v1158 = vpow.pop %v1157
  %v1159 = vmul.f32 %v1146, 1.442695
  %v1160 = vpow.pop %v1159
  %v1161 = vmul.f32 %v1147, 1.442695
  %v1162 = vpow.pop %v1161
  %v1163 = vmul.f32 %v1148, 1.442695
  %v1164 = vpow.pop %v1163
  %v1165 = vadd.f32 %v1150, 1.0
  %v1166 = vadd.f32 %v1152, 1.0
  %v1167 = vadd.f32 %v1154, 1.0
  %v1168 = vadd.f32 %v1156, 1.0
  %v1169 = vadd.f32 %v1158, 1.0
  %v1170 = vadd.f32 %v1160, 1.0
  %v1171 = vadd.f32 %v1162, 1.0
  %v1172 = vadd.f32 %v1164, 1.0
  %v1173 = vrcp.pop %v1165
  %v1174 = vmul.f32 1.0, %v1173
  %v1175 = vrcp.pop %v1166
  %v1176 = vmul.f32 1.0, %v1175
  %v1177 = vrcp.pop %v1167
  %v1178 = vmul.f32 1.0, %v1177
  %v1179 = vrcp.pop %v1168
  %v1180 = vmul.f32 1.0, %v1179
  %v1181 = vrcp.pop %v1169
  %v1182 = vmul.f32 1.0, %v1181
  %v1183 = vrcp.pop %v1170
  %v1184 = vmul.f32 1.0, %v1183
  %v1185 = vrcp.pop %v1171
  %v1186 = vmul.f32 1.0, %v1185
  %v1187 = vrcp.pop %v1172
  %v1188 = vmul.f32 1.0, %v1187
  %v1189 = vtanh.pop %v1133
  %v1190 = vtanh.pop %v1134
  %v1191 = vtanh.pop %v1135
  %v1192 = vtanh.pop %v1136
  %v1193 = vtanh.pop %v1137
  %v1194 = vtanh.pop %v1138
  %v1195 = vtanh.pop %v1139
  %v1196 = vtanh.pop %v1140
  %v1205 = vrot.slane %v965, 7
  %v1206 = vrot.slane %v966, 7
  %v1207 = vrot.slane %v967, 7
  %v1208 = vrot.slane %v968, 7
  %v1209 = vrot.slane %v969, 7
  %v1210 = vrot.slane %v970, 7
  %v1211 = vrot.slane %v971, 7
  %v1212 = vrot.slane %v972, 7
  %v1221 = vmul.f32 %v1174, %v1205
  %v1222 = vmul.f32 %v1176, %v1206
  %v1223 = vmul.f32 %v1178, %v1207
  %v1224 = vmul.f32 %v1180, %v1208
  %v1225 = vmul.f32 %v1182, %v1209
  %v1226 = vmul.f32 %v1184, %v1210
  %v1227 = vmul.f32 %v1186, %v1211
  %v1228 = vmul.f32 %v1188, %v1212
  %1237 = vrot.lane.b32.xlu0 %v1189, 64
  %v1238 = vpop.permute.xlu0 %1237
  %1239 = vrot.lane.b32.xlu0 %v1190, 64
  %v1240 = vpop.permute.xlu0 %1239
  %1241 = vrot.lane.b32.xlu0 %v1191, 64
  %v1242 = vpop.permute.xlu0 %1241
  %1243 = vrot.lane.b32.xlu0 %v1192, 64
  %v1244 = vpop.permute.xlu0 %1243
  %1245 = vrot.lane.b32.xlu0 %v1193, 64
  %v1246 = vpop.permute.xlu0 %1245
  %1247 = vrot.lane.b32.xlu0 %v1194, 64
  %v1248 = vpop.permute.xlu0 %1247
  %1249 = vrot.lane.b32.xlu0 %v1195, 64
  %v1250 = vpop.permute.xlu0 %1249
  %1251 = vrot.lane.b32.xlu0 %v1196, 64
  %v1252 = vpop.permute.xlu0 %1251
  %v1261 = vmul.f32 %v1174, %v1238
  %v1262 = vmul.f32 %v1176, %v1240
  %v1263 = vmul.f32 %v1178, %v1242
  %v1264 = vmul.f32 %v1180, %v1244
  %v1265 = vmul.f32 %v1182, %v1246
  %v1266 = vmul.f32 %v1184, %v1248
  %v1267 = vmul.f32 %v1186, %v1250
  %v1268 = vmul.f32 %v1188, %v1252
  %1277 = vrot.lane.b32.xlu0 %v1261, 32
  %v1278 = vpop.permute.xlu0 %1277
  %1279 = vrot.lane.b32.xlu0 %v1262, 32
  %v1280 = vpop.permute.xlu0 %1279
  %1281 = vrot.lane.b32.xlu0 %v1263, 32
  %v1282 = vpop.permute.xlu0 %1281
  %1283 = vrot.lane.b32.xlu0 %v1264, 32
  %v1284 = vpop.permute.xlu0 %1283
  %1285 = vrot.lane.b32.xlu0 %v1265, 32
  %v1286 = vpop.permute.xlu0 %1285
  %1287 = vrot.lane.b32.xlu0 %v1266, 32
  %v1288 = vpop.permute.xlu0 %1287
  %1289 = vrot.lane.b32.xlu0 %v1267, 32
  %v1290 = vpop.permute.xlu0 %1289
  %1291 = vrot.lane.b32.xlu0 %v1268, 32
  %v1292 = vpop.permute.xlu0 %1291
  %v1301 = vadd.f32 %v1221, %v1278
  %v1302 = vadd.f32 %v1222, %v1280
  %v1303 = vadd.f32 %v1223, %v1282
  %v1304 = vadd.f32 %v1224, %v1284
  %v1305 = vadd.f32 %v1225, %v1286
  %v1306 = vadd.f32 %v1226, %v1288
  %v1307 = vadd.f32 %v1227, %v1290
  %v1308 = vadd.f32 %v1228, %v1292
  %v1309 = vtanh.pop %v1301
  %v1310 = vtanh.pop %v1302
  %v1311 = vtanh.pop %v1303
  %v1312 = vtanh.pop %v1304
  %v1313 = vtanh.pop %v1305
  %v1314 = vtanh.pop %v1306
  %v1315 = vtanh.pop %v1307
  %v1316 = vtanh.pop %v1308
  %1325 = vrot.lane.b32.xlu0 %v1309, 64
  %v1326 = vpop.permute.xlu0 %1325
  %1327 = vrot.lane.b32.xlu0 %v1310, 64
  %v1328 = vpop.permute.xlu0 %1327
  %1329 = vrot.lane.b32.xlu0 %v1311, 64
  %v1330 = vpop.permute.xlu0 %1329
  %1331 = vrot.lane.b32.xlu0 %v1312, 64
  %v1332 = vpop.permute.xlu0 %1331
  %1333 = vrot.lane.b32.xlu0 %v1313, 64
  %v1334 = vpop.permute.xlu0 %1333
  %1335 = vrot.lane.b32.xlu0 %v1314, 64
  %v1336 = vpop.permute.xlu0 %1335
  %1337 = vrot.lane.b32.xlu0 %v1315, 64
  %v1338 = vpop.permute.xlu0 %1337
  %1339 = vrot.lane.b32.xlu0 %v1316, 64
  %v1340 = vpop.permute.xlu0 %1339
  %v1349 = vmul.f32 %v1174, %v1326
  %v1350 = vmul.f32 %v1176, %v1328
  %v1351 = vmul.f32 %v1178, %v1330
  %v1352 = vmul.f32 %v1180, %v1332
  %v1353 = vmul.f32 %v1182, %v1334
  %v1354 = vmul.f32 %v1184, %v1336
  %v1355 = vmul.f32 %v1186, %v1338
  %v1356 = vmul.f32 %v1188, %v1340
  %v1365 = vrot.slane %v1349, 3
  %v1366 = vrot.slane %v1350, 2
  %v1367 = vsel %vm351, %v1366, %v1365
  %v1368 = vrot.slane %v1351, 1
  %v1369 = vsel %vm354, %v1368, %v1367
  %v1370 = vsel %vm357, %v1352, %v1369
  %v1371 = vrot.slane %v1353, 7
  %v1372 = vsel %vm360, %v1371, %v1370
  %v1373 = vrot.slane %v1354, 6
  %v1374 = vsel %vm363, %v1373, %v1372
  %v1375 = vrot.slane %v1355, 5
  %v1376 = vsel %vm366, %v1375, %v1374
  %v1377 = vrot.slane %v1356, 4
  %v1378 = vsel %vm369, %v1377, %v1376
  %1379 = vrot.lane.b32.xlu0 %v1378, 32
  %v1380 = vpop.permute.xlu0 %1379
  %v1381 = vsel %vm52, %v1380, 0
  %1383 = vmatprep.subr.mxu0 0.0
  %1384 = vmatpush1.msra.mxu0 0.0
  %1385 = vmatprep.subr.mxu0 0.0
  %1386 = vmatpush1.msra.mxu0 0.0
  %1387 = vmatprep.subr.mxu0 0.0
  %1388 = vmatpush1.msra.mxu0 0.0
  %1389 = vmatprep.subr.mxu0 0.0
  %1390 = vmatpush1.msra.mxu0 0.0
  %1391 = vmatprep.subr.mxu0 0.0
  %1392 = vmatpush1.msra.mxu0 0.0
  %1393 = vmatprep.subr.mxu0 0.0
  %1394 = vmatpush1.msra.mxu0 0.0
  %1395 = vmatprep.subr.mxu0 0.0
  %1396 = vmatpush1.msra.mxu0 0.0
  %1397 = vmatprep.subr.mxu0 0.0
  %1398 = vmatpush1.msra.mxu0 0.0
  %1399 = vmatprep.subr.mxu0 0.0
  %1400 = vmatpush1.msra.mxu0 0.0
  %1401 = vmatprep.subr.mxu0 0.0
  %1402 = vmatpush1.msra.mxu0 0.0
  %1403 = vmatprep.subr.mxu0 0.0
  %1404 = vmatpush1.msra.mxu0 0.0
  %1405 = vmatprep.subr.mxu0 0.0
  %1406 = vmatpush1.msra.mxu0 0.0
  %1407 = vmatprep.subr.mxu0 0.0
  %1408 = vmatpush1.msra.mxu0 %v29
  %1409 = vmatprep.subr.mxu0 0.0
  %1410 = vmatpush1.msra.mxu0 %v28
  %1411 = vmatprep.subr.mxu0 0.0
  %1412 = vmatpush1.msra.mxu0 %v27
  %1413 = vmatprep.subr.mxu0 0.0
  %1414 = vmatpush1.msra.mxu0 %v26
  %1415 = vmatprep.subr.mxu0 0.0
  %1416 = vmatpush2.msra.mxu0 0.0
  %1417 = vmatprep.subr.mxu0 0.0
  %1418 = vmatpush2.msra.mxu0 0.0
  %1419 = vmatprep.subr.mxu0 0.0
  %1420 = vmatpush2.msra.mxu0 0.0
  %1421 = vmatprep.subr.mxu0 0.0
  %1422 = vmatpush2.msra.mxu0 0.0
  %1423 = vmatprep.subr.mxu0 0.0
  %1424 = vmatpush2.msra.mxu0 0.0
  %1425 = vmatprep.subr.mxu0 0.0
  %1426 = vmatpush2.msra.mxu0 0.0
  %1427 = vmatprep.subr.mxu0 0.0
  %1428 = vmatpush2.msra.mxu0 0.0
  %1429 = vmatprep.subr.mxu0 0.0
  %1430 = vmatpush2.msra.mxu0 0.0
  %1431 = vmatprep.subr.mxu0 0.0
  %1432 = vmatpush2.msra.mxu0 0.0
  %1433 = vmatprep.subr.mxu0 0.0
  %1434 = vmatpush2.msra.mxu0 0.0
  %1435 = vmatprep.subr.mxu0 0.0
  %1436 = vmatpush2.msra.mxu0 0.0
  %1437 = vmatprep.subr.mxu0 0.0
  %1438 = vmatpush2.msra.mxu0 0.0
  %1439 = vmatprep.subr.mxu0 0.0
  %1440 = vmatpush2.msra.mxu0 0.0
  %1441 = vmatprep.subr.mxu0 0.0
  %1442 = vmatpush2.msra.mxu0 0.0
  %1443 = vmatprep.subr.mxu0 0.0
  %1444 = vmatpush2.msra.mxu0 0.0
  %1445 = vmatprep.subr.mxu0 0.0
  %1446 = vmatpush2.msra.mxu0 0.0
  %1447 = vmatprep.mubr.f32.mxu0 0.0
  %1448 = vmatmul.mubr.f32.gmra.mxu0 %v1381
  %v1449 = vpop.f32.mrf.mxu0
  %v1450 = vadd.f32 0.0, %v1449
  %v1451 = vpop.f32.mrf.mxu0
  %1452 = vdwg.mxu0
  %v1454 = vrot.slane %v1450, 4
  %v1455 = vrot.slane %v1450, 5
  %v1456 = vrot.slane %v1450, 6
  %v1457 = vrot.slane %v1450, 7
  %v1458 = vrot.slane %v1450, 1
  %v1459 = vrot.slane %v1450, 2
  %v1460 = vrot.slane %v1450, 3
  %v1469 = vadd.f32 %v44, %v1454
  %v1470 = vadd.f32 %v45, %v1455
  %v1471 = vadd.f32 %v46, %v1456
  %v1472 = vadd.f32 %v47, %v1457
  %v1473 = vadd.f32 %v48, %v1450
  %v1474 = vadd.f32 %v49, %v1458
  %v1475 = vadd.f32 %v50, %v1459
  %v1476 = vadd.f32 %v51, %v1460
  %v1477 = vxor.u32 %v1469, 2147483648
  %v1478 = vxor.u32 %v1470, 2147483648
  %v1479 = vxor.u32 %v1471, 2147483648
  %v1480 = vxor.u32 %v1472, 2147483648
  %v1481 = vxor.u32 %v1473, 2147483648
  %v1482 = vxor.u32 %v1474, 2147483648
  %v1483 = vxor.u32 %v1475, 2147483648
  %v1484 = vxor.u32 %v1476, 2147483648
  %v1485 = vmul.f32 %v1477, 1.442695
  %v1486 = vpow.pop %v1485
  %v1487 = vmul.f32 %v1478, 1.442695
  %v1488 = vpow.pop %v1487
  %v1489 = vmul.f32 %v1479, 1.442695
  %v1490 = vpow.pop %v1489
  %v1491 = vmul.f32 %v1480, 1.442695
  %v1492 = vpow.pop %v1491
  %v1493 = vmul.f32 %v1481, 1.442695
  %v1494 = vpow.pop %v1493
  %v1495 = vmul.f32 %v1482, 1.442695
  %v1496 = vpow.pop %v1495
  %v1497 = vmul.f32 %v1483, 1.442695
  %v1498 = vpow.pop %v1497
  %v1499 = vmul.f32 %v1484, 1.442695
  %v1500 = vpow.pop %v1499
  %v1501 = vadd.f32 %v1486, 1.0
  %v1502 = vadd.f32 %v1488, 1.0
  %v1503 = vadd.f32 %v1490, 1.0
  %v1504 = vadd.f32 %v1492, 1.0
  %v1505 = vadd.f32 %v1494, 1.0
  %v1506 = vadd.f32 %v1496, 1.0
  %v1507 = vadd.f32 %v1498, 1.0
  %v1508 = vadd.f32 %v1500, 1.0
  %v1509 = vrcp.pop %v1501
  %v1510 = vmul.f32 1.0, %v1509
  %v1511 = vrcp.pop %v1502
  %v1512 = vmul.f32 1.0, %v1511
  %v1513 = vrcp.pop %v1503
  %v1514 = vmul.f32 1.0, %v1513
  %v1515 = vrcp.pop %v1504
  %v1516 = vmul.f32 1.0, %v1515
  %v1517 = vrcp.pop %v1505
  %v1518 = vmul.f32 1.0, %v1517
  %v1519 = vrcp.pop %v1506
  %v1520 = vmul.f32 1.0, %v1519
  %v1521 = vrcp.pop %v1507
  %v1522 = vmul.f32 1.0, %v1521
  %v1523 = vrcp.pop %v1508
  %v1524 = vmul.f32 1.0, %v1523
  %v1525 = vtanh.pop %v1469
  %v1526 = vtanh.pop %v1470
  %v1527 = vtanh.pop %v1471
  %v1528 = vtanh.pop %v1472
  %v1529 = vtanh.pop %v1473
  %v1530 = vtanh.pop %v1474
  %v1531 = vtanh.pop %v1475
  %v1532 = vtanh.pop %v1476
  %v1541 = vrot.slane %v1301, 7
  %v1542 = vrot.slane %v1302, 7
  %v1543 = vrot.slane %v1303, 7
  %v1544 = vrot.slane %v1304, 7
  %v1545 = vrot.slane %v1305, 7
  %v1546 = vrot.slane %v1306, 7
  %v1547 = vrot.slane %v1307, 7
  %v1548 = vrot.slane %v1308, 7
  %v1557 = vmul.f32 %v1510, %v1541
  %v1558 = vmul.f32 %v1512, %v1542
  %v1559 = vmul.f32 %v1514, %v1543
  %v1560 = vmul.f32 %v1516, %v1544
  %v1561 = vmul.f32 %v1518, %v1545
  %v1562 = vmul.f32 %v1520, %v1546
  %v1563 = vmul.f32 %v1522, %v1547
  %v1564 = vmul.f32 %v1524, %v1548
  %1573 = vrot.lane.b32.xlu0 %v1525, 64
  %v1574 = vpop.permute.xlu0 %1573
  %1575 = vrot.lane.b32.xlu0 %v1526, 64
  %v1576 = vpop.permute.xlu0 %1575
  %1577 = vrot.lane.b32.xlu0 %v1527, 64
  %v1578 = vpop.permute.xlu0 %1577
  %1579 = vrot.lane.b32.xlu0 %v1528, 64
  %v1580 = vpop.permute.xlu0 %1579
  %1581 = vrot.lane.b32.xlu0 %v1529, 64
  %v1582 = vpop.permute.xlu0 %1581
  %1583 = vrot.lane.b32.xlu0 %v1530, 64
  %v1584 = vpop.permute.xlu0 %1583
  %1585 = vrot.lane.b32.xlu0 %v1531, 64
  %v1586 = vpop.permute.xlu0 %1585
  %1587 = vrot.lane.b32.xlu0 %v1532, 64
  %v1588 = vpop.permute.xlu0 %1587
  %v1597 = vmul.f32 %v1510, %v1574
  %v1598 = vmul.f32 %v1512, %v1576
  %v1599 = vmul.f32 %v1514, %v1578
  %v1600 = vmul.f32 %v1516, %v1580
  %v1601 = vmul.f32 %v1518, %v1582
  %v1602 = vmul.f32 %v1520, %v1584
  %v1603 = vmul.f32 %v1522, %v1586
  %v1604 = vmul.f32 %v1524, %v1588
  %1613 = vrot.lane.b32.xlu0 %v1597, 32
  %v1614 = vpop.permute.xlu0 %1613
  %1615 = vrot.lane.b32.xlu0 %v1598, 32
  %v1616 = vpop.permute.xlu0 %1615
  %1617 = vrot.lane.b32.xlu0 %v1599, 32
  %v1618 = vpop.permute.xlu0 %1617
  %1619 = vrot.lane.b32.xlu0 %v1600, 32
  %v1620 = vpop.permute.xlu0 %1619
  %1621 = vrot.lane.b32.xlu0 %v1601, 32
  %v1622 = vpop.permute.xlu0 %1621
  %1623 = vrot.lane.b32.xlu0 %v1602, 32
  %v1624 = vpop.permute.xlu0 %1623
  %1625 = vrot.lane.b32.xlu0 %v1603, 32
  %v1626 = vpop.permute.xlu0 %1625
  %1627 = vrot.lane.b32.xlu0 %v1604, 32
  %v1628 = vpop.permute.xlu0 %1627
  %v1637 = vadd.f32 %v1557, %v1614
  %v1638 = vadd.f32 %v1558, %v1616
  %v1639 = vadd.f32 %v1559, %v1618
  %v1640 = vadd.f32 %v1560, %v1620
  %v1641 = vadd.f32 %v1561, %v1622
  %v1642 = vadd.f32 %v1562, %v1624
  %v1643 = vadd.f32 %v1563, %v1626
  %v1644 = vadd.f32 %v1564, %v1628
  %v1645 = vtanh.pop %v1637
  %v1646 = vtanh.pop %v1638
  %v1647 = vtanh.pop %v1639
  %v1648 = vtanh.pop %v1640
  %v1649 = vtanh.pop %v1641
  %v1650 = vtanh.pop %v1642
  %v1651 = vtanh.pop %v1643
  %v1652 = vtanh.pop %v1644
  %1661 = vrot.lane.b32.xlu0 %v1645, 64
  %v1662 = vpop.permute.xlu0 %1661
  %1663 = vrot.lane.b32.xlu0 %v1646, 64
  %v1664 = vpop.permute.xlu0 %1663
  %1665 = vrot.lane.b32.xlu0 %v1647, 64
  %v1666 = vpop.permute.xlu0 %1665
  %1667 = vrot.lane.b32.xlu0 %v1648, 64
  %v1668 = vpop.permute.xlu0 %1667
  %1669 = vrot.lane.b32.xlu0 %v1649, 64
  %v1670 = vpop.permute.xlu0 %1669
  %1671 = vrot.lane.b32.xlu0 %v1650, 64
  %v1672 = vpop.permute.xlu0 %1671
  %1673 = vrot.lane.b32.xlu0 %v1651, 64
  %v1674 = vpop.permute.xlu0 %1673
  %1675 = vrot.lane.b32.xlu0 %v1652, 64
  %v1676 = vpop.permute.xlu0 %1675
  %v1685 = vmul.f32 %v1510, %v1662
  %v1686 = vmul.f32 %v1512, %v1664
  %v1687 = vmul.f32 %v1514, %v1666
  %v1688 = vmul.f32 %v1516, %v1668
  %v1689 = vmul.f32 %v1518, %v1670
  %v1690 = vmul.f32 %v1520, %v1672
  %v1691 = vmul.f32 %v1522, %v1674
  %v1692 = vmul.f32 %v1524, %v1676
  %v1701 = vrot.slane %v1685, 4
  %v1702 = vrot.slane %v1686, 3
  %v1703 = vsel %vm351, %v1702, %v1701
  %v1704 = vrot.slane %v1687, 2
  %v1705 = vsel %vm354, %v1704, %v1703
  %v1706 = vrot.slane %v1688, 1
  %v1707 = vsel %vm357, %v1706, %v1705
  %v1708 = vsel %vm360, %v1689, %v1707
  %v1709 = vrot.slane %v1690, 7
  %v1710 = vsel %vm363, %v1709, %v1708
  %v1711 = vrot.slane %v1691, 6
  %v1712 = vsel %vm366, %v1711, %v1710
  %v1713 = vrot.slane %v1692, 5
  %v1714 = vsel %vm369, %v1713, %v1712
  %1715 = vrot.lane.b32.xlu0 %v1714, 32
  %v1716 = vpop.permute.xlu0 %1715
  %v1717 = vsel %vm52, %v1716, 0
  %1719 = vmatprep.subr.mxu0 0.0
  %1720 = vmatpush1.msra.mxu0 0.0
  %1721 = vmatprep.subr.mxu0 0.0
  %1722 = vmatpush1.msra.mxu0 0.0
  %1723 = vmatprep.subr.mxu0 0.0
  %1724 = vmatpush1.msra.mxu0 0.0
  %1725 = vmatprep.subr.mxu0 0.0
  %1726 = vmatpush1.msra.mxu0 0.0
  %1727 = vmatprep.subr.mxu0 0.0
  %1728 = vmatpush1.msra.mxu0 0.0
  %1729 = vmatprep.subr.mxu0 0.0
  %1730 = vmatpush1.msra.mxu0 0.0
  %1731 = vmatprep.subr.mxu0 0.0
  %1732 = vmatpush1.msra.mxu0 0.0
  %1733 = vmatprep.subr.mxu0 0.0
  %1734 = vmatpush1.msra.mxu0 0.0
  %1735 = vmatprep.subr.mxu0 0.0
  %1736 = vmatpush1.msra.mxu0 0.0
  %1737 = vmatprep.subr.mxu0 0.0
  %1738 = vmatpush1.msra.mxu0 0.0
  %1739 = vmatprep.subr.mxu0 0.0
  %1740 = vmatpush1.msra.mxu0 0.0
  %1741 = vmatprep.subr.mxu0 0.0
  %1742 = vmatpush1.msra.mxu0 0.0
  %1743 = vmatprep.subr.mxu0 0.0
  %1744 = vmatpush1.msra.mxu0 %v29
  %1745 = vmatprep.subr.mxu0 0.0
  %1746 = vmatpush1.msra.mxu0 %v28
  %1747 = vmatprep.subr.mxu0 0.0
  %1748 = vmatpush1.msra.mxu0 %v27
  %1749 = vmatprep.subr.mxu0 0.0
  %1750 = vmatpush1.msra.mxu0 %v26
  %1751 = vmatprep.subr.mxu0 0.0
  %1752 = vmatpush2.msra.mxu0 0.0
  %1753 = vmatprep.subr.mxu0 0.0
  %1754 = vmatpush2.msra.mxu0 0.0
  %1755 = vmatprep.subr.mxu0 0.0
  %1756 = vmatpush2.msra.mxu0 0.0
  %1757 = vmatprep.subr.mxu0 0.0
  %1758 = vmatpush2.msra.mxu0 0.0
  %1759 = vmatprep.subr.mxu0 0.0
  %1760 = vmatpush2.msra.mxu0 0.0
  %1761 = vmatprep.subr.mxu0 0.0
  %1762 = vmatpush2.msra.mxu0 0.0
  %1763 = vmatprep.subr.mxu0 0.0
  %1764 = vmatpush2.msra.mxu0 0.0
  %1765 = vmatprep.subr.mxu0 0.0
  %1766 = vmatpush2.msra.mxu0 0.0
  %1767 = vmatprep.subr.mxu0 0.0
  %1768 = vmatpush2.msra.mxu0 0.0
  %1769 = vmatprep.subr.mxu0 0.0
  %1770 = vmatpush2.msra.mxu0 0.0
  %1771 = vmatprep.subr.mxu0 0.0
  %1772 = vmatpush2.msra.mxu0 0.0
  %1773 = vmatprep.subr.mxu0 0.0
  %1774 = vmatpush2.msra.mxu0 0.0
  %1775 = vmatprep.subr.mxu0 0.0
  %1776 = vmatpush2.msra.mxu0 0.0
  %1777 = vmatprep.subr.mxu0 0.0
  %1778 = vmatpush2.msra.mxu0 0.0
  %1779 = vmatprep.subr.mxu0 0.0
  %1780 = vmatpush2.msra.mxu0 0.0
  %1781 = vmatprep.subr.mxu0 0.0
  %1782 = vmatpush2.msra.mxu0 0.0
  %1783 = vmatprep.mubr.f32.mxu0 0.0
  %1784 = vmatmul.mubr.f32.gmra.mxu0 %v1717
  %v1785 = vpop.f32.mrf.mxu0
  %v1786 = vadd.f32 0.0, %v1785
  %v1787 = vpop.f32.mrf.mxu0
  %1788 = vdwg.mxu0
  %v1790 = vrot.slane %v1786, 3
  %v1791 = vrot.slane %v1786, 4
  %v1792 = vrot.slane %v1786, 5
  %v1793 = vrot.slane %v1786, 6
  %v1794 = vrot.slane %v1786, 7
  %v1795 = vrot.slane %v1786, 1
  %v1796 = vrot.slane %v1786, 2
  %v1805 = vadd.f32 %v44, %v1790
  %v1806 = vadd.f32 %v45, %v1791
  %v1807 = vadd.f32 %v46, %v1792
  %v1808 = vadd.f32 %v47, %v1793
  %v1809 = vadd.f32 %v48, %v1794
  %v1810 = vadd.f32 %v49, %v1786
  %v1811 = vadd.f32 %v50, %v1795
  %v1812 = vadd.f32 %v51, %v1796
  %v1813 = vxor.u32 %v1805, 2147483648
  %v1814 = vxor.u32 %v1806, 2147483648
  %v1815 = vxor.u32 %v1807, 2147483648
  %v1816 = vxor.u32 %v1808, 2147483648
  %v1817 = vxor.u32 %v1809, 2147483648
  %v1818 = vxor.u32 %v1810, 2147483648
  %v1819 = vxor.u32 %v1811, 2147483648
  %v1820 = vxor.u32 %v1812, 2147483648
  %v1821 = vmul.f32 %v1813, 1.442695
  %v1822 = vpow.pop %v1821
  %v1823 = vmul.f32 %v1814, 1.442695
  %v1824 = vpow.pop %v1823
  %v1825 = vmul.f32 %v1815, 1.442695
  %v1826 = vpow.pop %v1825
  %v1827 = vmul.f32 %v1816, 1.442695
  %v1828 = vpow.pop %v1827
  %v1829 = vmul.f32 %v1817, 1.442695
  %v1830 = vpow.pop %v1829
  %v1831 = vmul.f32 %v1818, 1.442695
  %v1832 = vpow.pop %v1831
  %v1833 = vmul.f32 %v1819, 1.442695
  %v1834 = vpow.pop %v1833
  %v1835 = vmul.f32 %v1820, 1.442695
  %v1836 = vpow.pop %v1835
  %v1837 = vadd.f32 %v1822, 1.0
  %v1838 = vadd.f32 %v1824, 1.0
  %v1839 = vadd.f32 %v1826, 1.0
  %v1840 = vadd.f32 %v1828, 1.0
  %v1841 = vadd.f32 %v1830, 1.0
  %v1842 = vadd.f32 %v1832, 1.0
  %v1843 = vadd.f32 %v1834, 1.0
  %v1844 = vadd.f32 %v1836, 1.0
  %v1845 = vrcp.pop %v1837
  %v1846 = vmul.f32 1.0, %v1845
  %v1847 = vrcp.pop %v1838
  %v1848 = vmul.f32 1.0, %v1847
  %v1849 = vrcp.pop %v1839
  %v1850 = vmul.f32 1.0, %v1849
  %v1851 = vrcp.pop %v1840
  %v1852 = vmul.f32 1.0, %v1851
  %v1853 = vrcp.pop %v1841
  %v1854 = vmul.f32 1.0, %v1853
  %v1855 = vrcp.pop %v1842
  %v1856 = vmul.f32 1.0, %v1855
  %v1857 = vrcp.pop %v1843
  %v1858 = vmul.f32 1.0, %v1857
  %v1859 = vrcp.pop %v1844
  %v1860 = vmul.f32 1.0, %v1859
  %v1861 = vtanh.pop %v1805
  %v1862 = vtanh.pop %v1806
  %v1863 = vtanh.pop %v1807
  %v1864 = vtanh.pop %v1808
  %v1865 = vtanh.pop %v1809
  %v1866 = vtanh.pop %v1810
  %v1867 = vtanh.pop %v1811
  %v1868 = vtanh.pop %v1812
  %v1877 = vrot.slane %v1637, 7
  %v1878 = vrot.slane %v1638, 7
  %v1879 = vrot.slane %v1639, 7
  %v1880 = vrot.slane %v1640, 7
  %v1881 = vrot.slane %v1641, 7
  %v1882 = vrot.slane %v1642, 7
  %v1883 = vrot.slane %v1643, 7
  %v1884 = vrot.slane %v1644, 7
  %v1893 = vmul.f32 %v1846, %v1877
  %v1894 = vmul.f32 %v1848, %v1878
  %v1895 = vmul.f32 %v1850, %v1879
  %v1896 = vmul.f32 %v1852, %v1880
  %v1897 = vmul.f32 %v1854, %v1881
  %v1898 = vmul.f32 %v1856, %v1882
  %v1899 = vmul.f32 %v1858, %v1883
  %v1900 = vmul.f32 %v1860, %v1884
  %1909 = vrot.lane.b32.xlu0 %v1861, 64
  %v1910 = vpop.permute.xlu0 %1909
  %1911 = vrot.lane.b32.xlu0 %v1862, 64
  %v1912 = vpop.permute.xlu0 %1911
  %1913 = vrot.lane.b32.xlu0 %v1863, 64
  %v1914 = vpop.permute.xlu0 %1913
  %1915 = vrot.lane.b32.xlu0 %v1864, 64
  %v1916 = vpop.permute.xlu0 %1915
  %1917 = vrot.lane.b32.xlu0 %v1865, 64
  %v1918 = vpop.permute.xlu0 %1917
  %1919 = vrot.lane.b32.xlu0 %v1866, 64
  %v1920 = vpop.permute.xlu0 %1919
  %1921 = vrot.lane.b32.xlu0 %v1867, 64
  %v1922 = vpop.permute.xlu0 %1921
  %1923 = vrot.lane.b32.xlu0 %v1868, 64
  %v1924 = vpop.permute.xlu0 %1923
  %v1933 = vmul.f32 %v1846, %v1910
  %v1934 = vmul.f32 %v1848, %v1912
  %v1935 = vmul.f32 %v1850, %v1914
  %v1936 = vmul.f32 %v1852, %v1916
  %v1937 = vmul.f32 %v1854, %v1918
  %v1938 = vmul.f32 %v1856, %v1920
  %v1939 = vmul.f32 %v1858, %v1922
  %v1940 = vmul.f32 %v1860, %v1924
  %1949 = vrot.lane.b32.xlu0 %v1933, 32
  %v1950 = vpop.permute.xlu0 %1949
  %1951 = vrot.lane.b32.xlu0 %v1934, 32
  %v1952 = vpop.permute.xlu0 %1951
  %1953 = vrot.lane.b32.xlu0 %v1935, 32
  %v1954 = vpop.permute.xlu0 %1953
  %1955 = vrot.lane.b32.xlu0 %v1936, 32
  %v1956 = vpop.permute.xlu0 %1955
  %1957 = vrot.lane.b32.xlu0 %v1937, 32
  %v1958 = vpop.permute.xlu0 %1957
  %1959 = vrot.lane.b32.xlu0 %v1938, 32
  %v1960 = vpop.permute.xlu0 %1959
  %1961 = vrot.lane.b32.xlu0 %v1939, 32
  %v1962 = vpop.permute.xlu0 %1961
  %1963 = vrot.lane.b32.xlu0 %v1940, 32
  %v1964 = vpop.permute.xlu0 %1963
  %v1973 = vadd.f32 %v1893, %v1950
  %v1974 = vadd.f32 %v1894, %v1952
  %v1975 = vadd.f32 %v1895, %v1954
  %v1976 = vadd.f32 %v1896, %v1956
  %v1977 = vadd.f32 %v1897, %v1958
  %v1978 = vadd.f32 %v1898, %v1960
  %v1979 = vadd.f32 %v1899, %v1962
  %v1980 = vadd.f32 %v1900, %v1964
  %v1981 = vtanh.pop %v1973
  %v1982 = vtanh.pop %v1974
  %v1983 = vtanh.pop %v1975
  %v1984 = vtanh.pop %v1976
  %v1985 = vtanh.pop %v1977
  %v1986 = vtanh.pop %v1978
  %v1987 = vtanh.pop %v1979
  %v1988 = vtanh.pop %v1980
  %1997 = vrot.lane.b32.xlu0 %v1981, 64
  %v1998 = vpop.permute.xlu0 %1997
  %1999 = vrot.lane.b32.xlu0 %v1982, 64
  %v2000 = vpop.permute.xlu0 %1999
  %2001 = vrot.lane.b32.xlu0 %v1983, 64
  %v2002 = vpop.permute.xlu0 %2001
  %2003 = vrot.lane.b32.xlu0 %v1984, 64
  %v2004 = vpop.permute.xlu0 %2003
  %2005 = vrot.lane.b32.xlu0 %v1985, 64
  %v2006 = vpop.permute.xlu0 %2005
  %2007 = vrot.lane.b32.xlu0 %v1986, 64
  %v2008 = vpop.permute.xlu0 %2007
  %2009 = vrot.lane.b32.xlu0 %v1987, 64
  %v2010 = vpop.permute.xlu0 %2009
  %2011 = vrot.lane.b32.xlu0 %v1988, 64
  %v2012 = vpop.permute.xlu0 %2011
  %v2021 = vmul.f32 %v1846, %v1998
  %v2022 = vmul.f32 %v1848, %v2000
  %v2023 = vmul.f32 %v1850, %v2002
  %v2024 = vmul.f32 %v1852, %v2004
  %v2025 = vmul.f32 %v1854, %v2006
  %v2026 = vmul.f32 %v1856, %v2008
  %v2027 = vmul.f32 %v1858, %v2010
  %v2028 = vmul.f32 %v1860, %v2012
  %v2037 = vrot.slane %v2021, 5
  %v2038 = vrot.slane %v2022, 4
  %v2039 = vsel %vm351, %v2038, %v2037
  %v2040 = vrot.slane %v2023, 3
  %v2041 = vsel %vm354, %v2040, %v2039
  %v2042 = vrot.slane %v2024, 2
  %v2043 = vsel %vm357, %v2042, %v2041
  %v2044 = vrot.slane %v2025, 1
  %v2045 = vsel %vm360, %v2044, %v2043
  %v2046 = vsel %vm363, %v2026, %v2045
  %v2047 = vrot.slane %v2027, 7
  %v2048 = vsel %vm366, %v2047, %v2046
  %v2049 = vrot.slane %v2028, 6
  %v2050 = vsel %vm369, %v2049, %v2048
  %2051 = vrot.lane.b32.xlu0 %v2050, 32
  %v2052 = vpop.permute.xlu0 %2051
  %v2053 = vsel %vm52, %v2052, 0
  %2055 = vmatprep.subr.mxu0 0.0
  %2056 = vmatpush1.msra.mxu0 0.0
  %2057 = vmatprep.subr.mxu0 0.0
  %2058 = vmatpush1.msra.mxu0 0.0
  %2059 = vmatprep.subr.mxu0 0.0
  %2060 = vmatpush1.msra.mxu0 0.0
  %2061 = vmatprep.subr.mxu0 0.0
  %2062 = vmatpush1.msra.mxu0 0.0
  %2063 = vmatprep.subr.mxu0 0.0
  %2064 = vmatpush1.msra.mxu0 0.0
  %2065 = vmatprep.subr.mxu0 0.0
  %2066 = vmatpush1.msra.mxu0 0.0
  %2067 = vmatprep.subr.mxu0 0.0
  %2068 = vmatpush1.msra.mxu0 0.0
  %2069 = vmatprep.subr.mxu0 0.0
  %2070 = vmatpush1.msra.mxu0 0.0
  %2071 = vmatprep.subr.mxu0 0.0
  %2072 = vmatpush1.msra.mxu0 0.0
  %2073 = vmatprep.subr.mxu0 0.0
  %2074 = vmatpush1.msra.mxu0 0.0
  %2075 = vmatprep.subr.mxu0 0.0
  %2076 = vmatpush1.msra.mxu0 0.0
  %2077 = vmatprep.subr.mxu0 0.0
  %2078 = vmatpush1.msra.mxu0 0.0
  %2079 = vmatprep.subr.mxu0 0.0
  %2080 = vmatpush1.msra.mxu0 %v29
  %2081 = vmatprep.subr.mxu0 0.0
  %2082 = vmatpush1.msra.mxu0 %v28
  %2083 = vmatprep.subr.mxu0 0.0
  %2084 = vmatpush1.msra.mxu0 %v27
  %2085 = vmatprep.subr.mxu0 0.0
  %2086 = vmatpush1.msra.mxu0 %v26
  %2087 = vmatprep.subr.mxu0 0.0
  %2088 = vmatpush2.msra.mxu0 0.0
  %2089 = vmatprep.subr.mxu0 0.0
  %2090 = vmatpush2.msra.mxu0 0.0
  %2091 = vmatprep.subr.mxu0 0.0
  %2092 = vmatpush2.msra.mxu0 0.0
  %2093 = vmatprep.subr.mxu0 0.0
  %2094 = vmatpush2.msra.mxu0 0.0
  %2095 = vmatprep.subr.mxu0 0.0
  %2096 = vmatpush2.msra.mxu0 0.0
  %2097 = vmatprep.subr.mxu0 0.0
  %2098 = vmatpush2.msra.mxu0 0.0
  %2099 = vmatprep.subr.mxu0 0.0
  %2100 = vmatpush2.msra.mxu0 0.0
  %2101 = vmatprep.subr.mxu0 0.0
  %2102 = vmatpush2.msra.mxu0 0.0
  %2103 = vmatprep.subr.mxu0 0.0
  %2104 = vmatpush2.msra.mxu0 0.0
  %2105 = vmatprep.subr.mxu0 0.0
  %2106 = vmatpush2.msra.mxu0 0.0
  %2107 = vmatprep.subr.mxu0 0.0
  %2108 = vmatpush2.msra.mxu0 0.0
  %2109 = vmatprep.subr.mxu0 0.0
  %2110 = vmatpush2.msra.mxu0 0.0
  %2111 = vmatprep.subr.mxu0 0.0
  %2112 = vmatpush2.msra.mxu0 0.0
  %2113 = vmatprep.subr.mxu0 0.0
  %2114 = vmatpush2.msra.mxu0 0.0
  %2115 = vmatprep.subr.mxu0 0.0
  %2116 = vmatpush2.msra.mxu0 0.0
  %2117 = vmatprep.subr.mxu0 0.0
  %2118 = vmatpush2.msra.mxu0 0.0
  %2119 = vmatprep.mubr.f32.mxu0 0.0
  %2120 = vmatmul.mubr.f32.gmra.mxu0 %v2053
  %v2121 = vpop.f32.mrf.mxu0
  %v2122 = vadd.f32 0.0, %v2121
  %v2123 = vpop.f32.mrf.mxu0
  %2124 = vdwg.mxu0
  %v2126 = vrot.slane %v2122, 2
  %v2127 = vrot.slane %v2122, 3
  %v2128 = vrot.slane %v2122, 4
  %v2129 = vrot.slane %v2122, 5
  %v2130 = vrot.slane %v2122, 6
  %v2131 = vrot.slane %v2122, 7
  %v2132 = vrot.slane %v2122, 1
  %v2141 = vadd.f32 %v44, %v2126
  %v2142 = vadd.f32 %v45, %v2127
  %v2143 = vadd.f32 %v46, %v2128
  %v2144 = vadd.f32 %v47, %v2129
  %v2145 = vadd.f32 %v48, %v2130
  %v2146 = vadd.f32 %v49, %v2131
  %v2147 = vadd.f32 %v50, %v2122
  %v2148 = vadd.f32 %v51, %v2132
  %v2149 = vxor.u32 %v2141, 2147483648
  %v2150 = vxor.u32 %v2142, 2147483648
  %v2151 = vxor.u32 %v2143, 2147483648
  %v2152 = vxor.u32 %v2144, 2147483648
  %v2153 = vxor.u32 %v2145, 2147483648
  %v2154 = vxor.u32 %v2146, 2147483648
  %v2155 = vxor.u32 %v2147, 2147483648
  %v2156 = vxor.u32 %v2148, 2147483648
  %v2157 = vmul.f32 %v2149, 1.442695
  %v2158 = vpow.pop %v2157
  %v2159 = vmul.f32 %v2150, 1.442695
  %v2160 = vpow.pop %v2159
  %v2161 = vmul.f32 %v2151, 1.442695
  %v2162 = vpow.pop %v2161
  %v2163 = vmul.f32 %v2152, 1.442695
  %v2164 = vpow.pop %v2163
  %v2165 = vmul.f32 %v2153, 1.442695
  %v2166 = vpow.pop %v2165
  %v2167 = vmul.f32 %v2154, 1.442695
  %v2168 = vpow.pop %v2167
  %v2169 = vmul.f32 %v2155, 1.442695
  %v2170 = vpow.pop %v2169
  %v2171 = vmul.f32 %v2156, 1.442695
  %v2172 = vpow.pop %v2171
  %v2173 = vadd.f32 %v2158, 1.0
  %v2174 = vadd.f32 %v2160, 1.0
  %v2175 = vadd.f32 %v2162, 1.0
  %v2176 = vadd.f32 %v2164, 1.0
  %v2177 = vadd.f32 %v2166, 1.0
  %v2178 = vadd.f32 %v2168, 1.0
  %v2179 = vadd.f32 %v2170, 1.0
  %v2180 = vadd.f32 %v2172, 1.0
  %v2181 = vrcp.pop %v2173
  %v2182 = vmul.f32 1.0, %v2181
  %v2183 = vrcp.pop %v2174
  %v2184 = vmul.f32 1.0, %v2183
  %v2185 = vrcp.pop %v2175
  %v2186 = vmul.f32 1.0, %v2185
  %v2187 = vrcp.pop %v2176
  %v2188 = vmul.f32 1.0, %v2187
  %v2189 = vrcp.pop %v2177
  %v2190 = vmul.f32 1.0, %v2189
  %v2191 = vrcp.pop %v2178
  %v2192 = vmul.f32 1.0, %v2191
  %v2193 = vrcp.pop %v2179
  %v2194 = vmul.f32 1.0, %v2193
  %v2195 = vrcp.pop %v2180
  %v2196 = vmul.f32 1.0, %v2195
  %v2197 = vtanh.pop %v2141
  %v2198 = vtanh.pop %v2142
  %v2199 = vtanh.pop %v2143
  %v2200 = vtanh.pop %v2144
  %v2201 = vtanh.pop %v2145
  %v2202 = vtanh.pop %v2146
  %v2203 = vtanh.pop %v2147
  %v2204 = vtanh.pop %v2148
  %v2213 = vrot.slane %v1973, 7
  %v2214 = vrot.slane %v1974, 7
  %v2215 = vrot.slane %v1975, 7
  %v2216 = vrot.slane %v1976, 7
  %v2217 = vrot.slane %v1977, 7
  %v2218 = vrot.slane %v1978, 7
  %v2219 = vrot.slane %v1979, 7
  %v2220 = vrot.slane %v1980, 7
  %v2229 = vmul.f32 %v2182, %v2213
  %v2230 = vmul.f32 %v2184, %v2214
  %v2231 = vmul.f32 %v2186, %v2215
  %v2232 = vmul.f32 %v2188, %v2216
  %v2233 = vmul.f32 %v2190, %v2217
  %v2234 = vmul.f32 %v2192, %v2218
  %v2235 = vmul.f32 %v2194, %v2219
  %v2236 = vmul.f32 %v2196, %v2220
  %2245 = vrot.lane.b32.xlu0 %v2197, 64
  %v2246 = vpop.permute.xlu0 %2245
  %2247 = vrot.lane.b32.xlu0 %v2198, 64
  %v2248 = vpop.permute.xlu0 %2247
  %2249 = vrot.lane.b32.xlu0 %v2199, 64
  %v2250 = vpop.permute.xlu0 %2249
  %2251 = vrot.lane.b32.xlu0 %v2200, 64
  %v2252 = vpop.permute.xlu0 %2251
  %2253 = vrot.lane.b32.xlu0 %v2201, 64
  %v2254 = vpop.permute.xlu0 %2253
  %2255 = vrot.lane.b32.xlu0 %v2202, 64
  %v2256 = vpop.permute.xlu0 %2255
  %2257 = vrot.lane.b32.xlu0 %v2203, 64
  %v2258 = vpop.permute.xlu0 %2257
  %2259 = vrot.lane.b32.xlu0 %v2204, 64
  %v2260 = vpop.permute.xlu0 %2259
  %v2269 = vmul.f32 %v2182, %v2246
  %v2270 = vmul.f32 %v2184, %v2248
  %v2271 = vmul.f32 %v2186, %v2250
  %v2272 = vmul.f32 %v2188, %v2252
  %v2273 = vmul.f32 %v2190, %v2254
  %v2274 = vmul.f32 %v2192, %v2256
  %v2275 = vmul.f32 %v2194, %v2258
  %v2276 = vmul.f32 %v2196, %v2260
  %2285 = vrot.lane.b32.xlu0 %v2269, 32
  %v2286 = vpop.permute.xlu0 %2285
  %2287 = vrot.lane.b32.xlu0 %v2270, 32
  %v2288 = vpop.permute.xlu0 %2287
  %2289 = vrot.lane.b32.xlu0 %v2271, 32
  %v2290 = vpop.permute.xlu0 %2289
  %2291 = vrot.lane.b32.xlu0 %v2272, 32
  %v2292 = vpop.permute.xlu0 %2291
  %2293 = vrot.lane.b32.xlu0 %v2273, 32
  %v2294 = vpop.permute.xlu0 %2293
  %2295 = vrot.lane.b32.xlu0 %v2274, 32
  %v2296 = vpop.permute.xlu0 %2295
  %2297 = vrot.lane.b32.xlu0 %v2275, 32
  %v2298 = vpop.permute.xlu0 %2297
  %2299 = vrot.lane.b32.xlu0 %v2276, 32
  %v2300 = vpop.permute.xlu0 %2299
  %v2309 = vadd.f32 %v2229, %v2286
  %v2310 = vadd.f32 %v2230, %v2288
  %v2311 = vadd.f32 %v2231, %v2290
  %v2312 = vadd.f32 %v2232, %v2292
  %v2313 = vadd.f32 %v2233, %v2294
  %v2314 = vadd.f32 %v2234, %v2296
  %v2315 = vadd.f32 %v2235, %v2298
  %v2316 = vadd.f32 %v2236, %v2300
  %v2317 = vtanh.pop %v2309
  %v2318 = vtanh.pop %v2310
  %v2319 = vtanh.pop %v2311
  %v2320 = vtanh.pop %v2312
  %v2321 = vtanh.pop %v2313
  %v2322 = vtanh.pop %v2314
  %v2323 = vtanh.pop %v2315
  %v2324 = vtanh.pop %v2316
  %2333 = vrot.lane.b32.xlu0 %v2317, 64
  %v2334 = vpop.permute.xlu0 %2333
  %2335 = vrot.lane.b32.xlu0 %v2318, 64
  %v2336 = vpop.permute.xlu0 %2335
  %2337 = vrot.lane.b32.xlu0 %v2319, 64
  %v2338 = vpop.permute.xlu0 %2337
  %2339 = vrot.lane.b32.xlu0 %v2320, 64
  %v2340 = vpop.permute.xlu0 %2339
  %2341 = vrot.lane.b32.xlu0 %v2321, 64
  %v2342 = vpop.permute.xlu0 %2341
  %2343 = vrot.lane.b32.xlu0 %v2322, 64
  %v2344 = vpop.permute.xlu0 %2343
  %2345 = vrot.lane.b32.xlu0 %v2323, 64
  %v2346 = vpop.permute.xlu0 %2345
  %2347 = vrot.lane.b32.xlu0 %v2324, 64
  %v2348 = vpop.permute.xlu0 %2347
  %v2357 = vmul.f32 %v2182, %v2334
  %v2358 = vmul.f32 %v2184, %v2336
  %v2359 = vmul.f32 %v2186, %v2338
  %v2360 = vmul.f32 %v2188, %v2340
  %v2361 = vmul.f32 %v2190, %v2342
  %v2362 = vmul.f32 %v2192, %v2344
  %v2363 = vmul.f32 %v2194, %v2346
  %v2364 = vmul.f32 %v2196, %v2348
  %v2373 = vrot.slane %v2357, 6
  %v2374 = vrot.slane %v2358, 5
  %v2375 = vsel %vm351, %v2374, %v2373
  %v2376 = vrot.slane %v2359, 4
  %v2377 = vsel %vm354, %v2376, %v2375
  %v2378 = vrot.slane %v2360, 3
  %v2379 = vsel %vm357, %v2378, %v2377
  %v2380 = vrot.slane %v2361, 2
  %v2381 = vsel %vm360, %v2380, %v2379
  %v2382 = vrot.slane %v2362, 1
  %v2383 = vsel %vm363, %v2382, %v2381
  %v2384 = vsel %vm366, %v2363, %v2383
  %v2385 = vrot.slane %v2364, 7
  %v2386 = vsel %vm369, %v2385, %v2384
  %2387 = vrot.lane.b32.xlu0 %v2386, 32
  %v2388 = vpop.permute.xlu0 %2387
  %v2389 = vsel %vm52, %v2388, 0
  %2391 = vmatprep.subr.mxu0 0.0
  %2392 = vmatpush1.msra.mxu0 0.0
  %2393 = vmatprep.subr.mxu0 0.0
  %2394 = vmatpush1.msra.mxu0 0.0
  %2395 = vmatprep.subr.mxu0 0.0
  %2396 = vmatpush1.msra.mxu0 0.0
  %2397 = vmatprep.subr.mxu0 0.0
  %2398 = vmatpush1.msra.mxu0 0.0
  %2399 = vmatprep.subr.mxu0 0.0
  %2400 = vmatpush1.msra.mxu0 0.0
  %2401 = vmatprep.subr.mxu0 0.0
  %2402 = vmatpush1.msra.mxu0 0.0
  %2403 = vmatprep.subr.mxu0 0.0
  %2404 = vmatpush1.msra.mxu0 0.0
  %2405 = vmatprep.subr.mxu0 0.0
  %2406 = vmatpush1.msra.mxu0 0.0
  %2407 = vmatprep.subr.mxu0 0.0
  %2408 = vmatpush1.msra.mxu0 0.0
  %2409 = vmatprep.subr.mxu0 0.0
  %2410 = vmatpush1.msra.mxu0 0.0
  %2411 = vmatprep.subr.mxu0 0.0
  %2412 = vmatpush1.msra.mxu0 0.0
  %2413 = vmatprep.subr.mxu0 0.0
  %2414 = vmatpush1.msra.mxu0 0.0
  %2415 = vmatprep.subr.mxu0 0.0
  %2416 = vmatpush1.msra.mxu0 %v29
  %2417 = vmatprep.subr.mxu0 0.0
  %2418 = vmatpush1.msra.mxu0 %v28
  %2419 = vmatprep.subr.mxu0 0.0
  %2420 = vmatpush1.msra.mxu0 %v27
  %2421 = vmatprep.subr.mxu0 0.0
  %2422 = vmatpush1.msra.mxu0 %v26
  %2423 = vmatprep.subr.mxu0 0.0
  %2424 = vmatpush2.msra.mxu0 0.0
  %2425 = vmatprep.subr.mxu0 0.0
  %2426 = vmatpush2.msra.mxu0 0.0
  %2427 = vmatprep.subr.mxu0 0.0
  %2428 = vmatpush2.msra.mxu0 0.0
  %2429 = vmatprep.subr.mxu0 0.0
  %2430 = vmatpush2.msra.mxu0 0.0
  %2431 = vmatprep.subr.mxu0 0.0
  %2432 = vmatpush2.msra.mxu0 0.0
  %2433 = vmatprep.subr.mxu0 0.0
  %2434 = vmatpush2.msra.mxu0 0.0
  %2435 = vmatprep.subr.mxu0 0.0
  %2436 = vmatpush2.msra.mxu0 0.0
  %2437 = vmatprep.subr.mxu0 0.0
  %2438 = vmatpush2.msra.mxu0 0.0
  %2439 = vmatprep.subr.mxu0 0.0
  %2440 = vmatpush2.msra.mxu0 0.0
  %2441 = vmatprep.subr.mxu0 0.0
  %2442 = vmatpush2.msra.mxu0 0.0
  %2443 = vmatprep.subr.mxu0 0.0
  %2444 = vmatpush2.msra.mxu0 0.0
  %2445 = vmatprep.subr.mxu0 0.0
  %2446 = vmatpush2.msra.mxu0 0.0
  %2447 = vmatprep.subr.mxu0 0.0
  %2448 = vmatpush2.msra.mxu0 0.0
  %2449 = vmatprep.subr.mxu0 0.0
  %2450 = vmatpush2.msra.mxu0 0.0
  %2451 = vmatprep.subr.mxu0 0.0
  %2452 = vmatpush2.msra.mxu0 0.0
  %2453 = vmatprep.subr.mxu0 0.0
  %2454 = vmatpush2.msra.mxu0 0.0
  %2455 = vmatprep.mubr.f32.mxu0 0.0
  %2456 = vmatmul.mubr.f32.gmra.mxu0 %v2389
  %v2457 = vpop.f32.mrf.mxu0
  %v2458 = vadd.f32 0.0, %v2457
  %v2459 = vpop.f32.mrf.mxu0
  %2460 = vdwg.mxu0
  %v2462 = vrot.slane %v2458, 1
  %v2463 = vrot.slane %v2458, 2
  %v2464 = vrot.slane %v2458, 3
  %v2465 = vrot.slane %v2458, 4
  %v2466 = vrot.slane %v2458, 5
  %v2467 = vrot.slane %v2458, 6
  %v2468 = vrot.slane %v2458, 7
  %v2477 = vadd.f32 %v44, %v2462
  %v2478 = vadd.f32 %v45, %v2463
  %v2479 = vadd.f32 %v46, %v2464
  %v2480 = vadd.f32 %v47, %v2465
  %v2481 = vadd.f32 %v48, %v2466
  %v2482 = vadd.f32 %v49, %v2467
  %v2483 = vadd.f32 %v50, %v2468
  %v2484 = vadd.f32 %v51, %v2458
  %v2485 = vxor.u32 %v2477, 2147483648
  %v2486 = vxor.u32 %v2478, 2147483648
  %v2487 = vxor.u32 %v2479, 2147483648
  %v2488 = vxor.u32 %v2480, 2147483648
  %v2489 = vxor.u32 %v2481, 2147483648
  %v2490 = vxor.u32 %v2482, 2147483648
  %v2491 = vxor.u32 %v2483, 2147483648
  %v2492 = vxor.u32 %v2484, 2147483648
  %v2493 = vmul.f32 %v2485, 1.442695
  %v2494 = vpow.pop %v2493
  %v2495 = vmul.f32 %v2486, 1.442695
  %v2496 = vpow.pop %v2495
  %v2497 = vmul.f32 %v2487, 1.442695
  %v2498 = vpow.pop %v2497
  %v2499 = vmul.f32 %v2488, 1.442695
  %v2500 = vpow.pop %v2499
  %v2501 = vmul.f32 %v2489, 1.442695
  %v2502 = vpow.pop %v2501
  %v2503 = vmul.f32 %v2490, 1.442695
  %v2504 = vpow.pop %v2503
  %v2505 = vmul.f32 %v2491, 1.442695
  %v2506 = vpow.pop %v2505
  %v2507 = vmul.f32 %v2492, 1.442695
  %v2508 = vpow.pop %v2507
  %v2509 = vadd.f32 %v2494, 1.0
  %v2510 = vadd.f32 %v2496, 1.0
  %v2511 = vadd.f32 %v2498, 1.0
  %v2512 = vadd.f32 %v2500, 1.0
  %v2513 = vadd.f32 %v2502, 1.0
  %v2514 = vadd.f32 %v2504, 1.0
  %v2515 = vadd.f32 %v2506, 1.0
  %v2516 = vadd.f32 %v2508, 1.0
  %v2517 = vrcp.pop %v2509
  %v2518 = vmul.f32 1.0, %v2517
  %v2519 = vrcp.pop %v2510
  %v2520 = vmul.f32 1.0, %v2519
  %v2521 = vrcp.pop %v2511
  %v2522 = vmul.f32 1.0, %v2521
  %v2523 = vrcp.pop %v2512
  %v2524 = vmul.f32 1.0, %v2523
  %v2525 = vrcp.pop %v2513
  %v2526 = vmul.f32 1.0, %v2525
  %v2527 = vrcp.pop %v2514
  %v2528 = vmul.f32 1.0, %v2527
  %v2529 = vrcp.pop %v2515
  %v2530 = vmul.f32 1.0, %v2529
  %v2531 = vrcp.pop %v2516
  %v2532 = vmul.f32 1.0, %v2531
  %v2533 = vtanh.pop %v2477
  %v2534 = vtanh.pop %v2478
  %v2535 = vtanh.pop %v2479
  %v2536 = vtanh.pop %v2480
  %v2537 = vtanh.pop %v2481
  %v2538 = vtanh.pop %v2482
  %v2539 = vtanh.pop %v2483
  %v2540 = vtanh.pop %v2484
  %v2549 = vrot.slane %v2309, 7
  %v2550 = vrot.slane %v2310, 7
  %v2551 = vrot.slane %v2311, 7
  %v2552 = vrot.slane %v2312, 7
  %v2553 = vrot.slane %v2313, 7
  %v2554 = vrot.slane %v2314, 7
  %v2555 = vrot.slane %v2315, 7
  %v2556 = vrot.slane %v2316, 7
  %v2565 = vmul.f32 %v2518, %v2549
  %v2566 = vmul.f32 %v2520, %v2550
  %v2567 = vmul.f32 %v2522, %v2551
  %v2568 = vmul.f32 %v2524, %v2552
  %v2569 = vmul.f32 %v2526, %v2553
  %v2570 = vmul.f32 %v2528, %v2554
  %v2571 = vmul.f32 %v2530, %v2555
  %v2572 = vmul.f32 %v2532, %v2556
  %2581 = vrot.lane.b32.xlu0 %v2533, 64
  %v2582 = vpop.permute.xlu0 %2581
  %2583 = vrot.lane.b32.xlu0 %v2534, 64
  %v2584 = vpop.permute.xlu0 %2583
  %2585 = vrot.lane.b32.xlu0 %v2535, 64
  %v2586 = vpop.permute.xlu0 %2585
  %2587 = vrot.lane.b32.xlu0 %v2536, 64
  %v2588 = vpop.permute.xlu0 %2587
  %2589 = vrot.lane.b32.xlu0 %v2537, 64
  %v2590 = vpop.permute.xlu0 %2589
  %2591 = vrot.lane.b32.xlu0 %v2538, 64
  %v2592 = vpop.permute.xlu0 %2591
  %2593 = vrot.lane.b32.xlu0 %v2539, 64
  %v2594 = vpop.permute.xlu0 %2593
  %2595 = vrot.lane.b32.xlu0 %v2540, 64
  %v2596 = vpop.permute.xlu0 %2595
  %v2605 = vmul.f32 %v2518, %v2582
  %v2606 = vmul.f32 %v2520, %v2584
  %v2607 = vmul.f32 %v2522, %v2586
  %v2608 = vmul.f32 %v2524, %v2588
  %v2609 = vmul.f32 %v2526, %v2590
  %v2610 = vmul.f32 %v2528, %v2592
  %v2611 = vmul.f32 %v2530, %v2594
  %v2612 = vmul.f32 %v2532, %v2596
  %2621 = vrot.lane.b32.xlu0 %v2605, 32
  %v2622 = vpop.permute.xlu0 %2621
  %2623 = vrot.lane.b32.xlu0 %v2606, 32
  %v2624 = vpop.permute.xlu0 %2623
  %2625 = vrot.lane.b32.xlu0 %v2607, 32
  %v2626 = vpop.permute.xlu0 %2625
  %2627 = vrot.lane.b32.xlu0 %v2608, 32
  %v2628 = vpop.permute.xlu0 %2627
  %2629 = vrot.lane.b32.xlu0 %v2609, 32
  %v2630 = vpop.permute.xlu0 %2629
  %2631 = vrot.lane.b32.xlu0 %v2610, 32
  %v2632 = vpop.permute.xlu0 %2631
  %2633 = vrot.lane.b32.xlu0 %v2611, 32
  %v2634 = vpop.permute.xlu0 %2633
  %2635 = vrot.lane.b32.xlu0 %v2612, 32
  %v2636 = vpop.permute.xlu0 %2635
  %v2645 = vadd.f32 %v2565, %v2622
  %v2646 = vadd.f32 %v2566, %v2624
  %v2647 = vadd.f32 %v2567, %v2626
  %v2648 = vadd.f32 %v2568, %v2628
  %v2649 = vadd.f32 %v2569, %v2630
  %v2650 = vadd.f32 %v2570, %v2632
  %v2651 = vadd.f32 %v2571, %v2634
  %v2652 = vadd.f32 %v2572, %v2636
  %v2653 = vtanh.pop %v2645
  %v2654 = vtanh.pop %v2646
  %v2655 = vtanh.pop %v2647
  %v2656 = vtanh.pop %v2648
  %v2657 = vtanh.pop %v2649
  %v2658 = vtanh.pop %v2650
  %v2659 = vtanh.pop %v2651
  %v2660 = vtanh.pop %v2652
  %2669 = vrot.lane.b32.xlu0 %v2653, 64
  %v2670 = vpop.permute.xlu0 %2669
  %2671 = vrot.lane.b32.xlu0 %v2654, 64
  %v2672 = vpop.permute.xlu0 %2671
  %2673 = vrot.lane.b32.xlu0 %v2655, 64
  %v2674 = vpop.permute.xlu0 %2673
  %2675 = vrot.lane.b32.xlu0 %v2656, 64
  %v2676 = vpop.permute.xlu0 %2675
  %2677 = vrot.lane.b32.xlu0 %v2657, 64
  %v2678 = vpop.permute.xlu0 %2677
  %2679 = vrot.lane.b32.xlu0 %v2658, 64
  %v2680 = vpop.permute.xlu0 %2679
  %2681 = vrot.lane.b32.xlu0 %v2659, 64
  %v2682 = vpop.permute.xlu0 %2681
  %2683 = vrot.lane.b32.xlu0 %v2660, 64
  %v2684 = vpop.permute.xlu0 %2683
  %v2693 = vmul.f32 %v2518, %v2670
  %v2694 = vmul.f32 %v2520, %v2672
  %v2695 = vmul.f32 %v2522, %v2674
  %v2696 = vmul.f32 %v2524, %v2676
  %v2697 = vmul.f32 %v2526, %v2678
  %v2698 = vmul.f32 %v2528, %v2680
  %v2699 = vmul.f32 %v2530, %v2682
  %v2700 = vmul.f32 %v2532, %v2684
  %v2709 = vrot.slane %v2693, 7
  %v2710 = vrot.slane %v2694, 6
  %v2711 = vsel %vm351, %v2710, %v2709
  %v2712 = vrot.slane %v2695, 5
  %v2713 = vsel %vm354, %v2712, %v2711
  %v2714 = vrot.slane %v2696, 4
  %v2715 = vsel %vm357, %v2714, %v2713
  %v2716 = vrot.slane %v2697, 3
  %v2717 = vsel %vm360, %v2716, %v2715
  %v2718 = vrot.slane %v2698, 2
  %v2719 = vsel %vm363, %v2718, %v2717
  %v2720 = vrot.slane %v2699, 1
  %v2721 = vsel %vm366, %v2720, %v2719
  %v2722 = vsel %vm369, %v2700, %v2721
  %v2724 = vlaneseq
  %v2725 = vshrl.u32 %v2724, 7
  %v2726 = vsub.s32 0, %v2725
  %v2727 = vrot.slane %v38, %v2726
  %2729 = vrot.lane.b32.xlu0 %v2722, 32
  %v2730 = vpop.permute.xlu0 %2729
  %v2731 = vsel %vm52, %v2730, 0
  %2733 = vmatprep.subr.mxu0 0.0
  %2734 = vmatpush1.msra.mxu0 0.0
  %2735 = vmatprep.subr.mxu0 0.0
  %2736 = vmatpush1.msra.mxu0 0.0
  %2737 = vmatprep.subr.mxu0 0.0
  %2738 = vmatpush1.msra.mxu0 0.0
  %2739 = vmatprep.subr.mxu0 0.0
  %2740 = vmatpush1.msra.mxu0 0.0
  %2741 = vmatprep.subr.mxu0 0.0
  %2742 = vmatpush1.msra.mxu0 0.0
  %2743 = vmatprep.subr.mxu0 0.0
  %2744 = vmatpush1.msra.mxu0 0.0
  %2745 = vmatprep.subr.mxu0 0.0
  %2746 = vmatpush1.msra.mxu0 0.0
  %2747 = vmatprep.subr.mxu0 0.0
  %2748 = vmatpush1.msra.mxu0 0.0
  %2749 = vmatprep.subr.mxu0 0.0
  %2750 = vmatpush1.msra.mxu0 0.0
  %2751 = vmatprep.subr.mxu0 0.0
  %2752 = vmatpush1.msra.mxu0 0.0
  %2753 = vmatprep.subr.mxu0 0.0
  %2754 = vmatpush1.msra.mxu0 0.0
  %2755 = vmatprep.subr.mxu0 0.0
  %2756 = vmatpush1.msra.mxu0 0.0
  %2757 = vmatprep.subr.mxu0 0.0
  %2758 = vmatpush1.msra.mxu0 %v33
  %2759 = vmatprep.subr.mxu0 0.0
  %2760 = vmatpush1.msra.mxu0 %v32
  %2761 = vmatprep.subr.mxu0 0.0
  %2762 = vmatpush1.msra.mxu0 %v31
  %2763 = vmatprep.subr.mxu0 0.0
  %2764 = vmatpush1.msra.mxu0 %v30
  %2765 = vmatprep.subr.mxu0 0.0
  %2766 = vmatpush2.msra.mxu0 0.0
  %2767 = vmatprep.subr.mxu0 0.0
  %2768 = vmatpush2.msra.mxu0 0.0
  %2769 = vmatprep.subr.mxu0 0.0
  %2770 = vmatpush2.msra.mxu0 0.0
  %2771 = vmatprep.subr.mxu0 0.0
  %2772 = vmatpush2.msra.mxu0 0.0
  %2773 = vmatprep.subr.mxu0 0.0
  %2774 = vmatpush2.msra.mxu0 0.0
  %2775 = vmatprep.subr.mxu0 0.0
  %2776 = vmatpush2.msra.mxu0 0.0
  %2777 = vmatprep.subr.mxu0 0.0
  %2778 = vmatpush2.msra.mxu0 0.0
  %2779 = vmatprep.subr.mxu0 0.0
  %2780 = vmatpush2.msra.mxu0 0.0
  %2781 = vmatprep.subr.mxu0 0.0
  %2782 = vmatpush2.msra.mxu0 0.0
  %2783 = vmatprep.subr.mxu0 0.0
  %2784 = vmatpush2.msra.mxu0 0.0
  %2785 = vmatprep.subr.mxu0 0.0
  %2786 = vmatpush2.msra.mxu0 0.0
  %2787 = vmatprep.subr.mxu0 0.0
  %2788 = vmatpush2.msra.mxu0 0.0
  %2789 = vmatprep.subr.mxu0 0.0
  %2790 = vmatpush2.msra.mxu0 0.0
  %2791 = vmatprep.subr.mxu0 0.0
  %2792 = vmatpush2.msra.mxu0 0.0
  %2793 = vmatprep.subr.mxu0 0.0
  %2794 = vmatpush2.msra.mxu0 0.0
  %2795 = vmatprep.subr.mxu0 0.0
  %2796 = vmatpush2.msra.mxu0 0.0
  %2797 = vmatprep.mubr.f32.mxu0 0.0
  %2798 = vmatmul.mubr.f32.gmra.mxu0 %v373
  %v2799 = vpop.f32.mrf.mxu0
  %v2800 = vadd.f32 %v2727, %v2799
  %v2801 = vpop.f32.mrf.mxu0
  %2802 = vmatprep.mubr.f32.mxu0 0.0
  %2803 = vmatmul.mubr.f32.gmra.mxu0 %v709
  %v2804 = vpop.f32.mrf.mxu0
  %v2805 = vadd.f32 %v2727, %v2804
  %v2806 = vpop.f32.mrf.mxu0
  %2807 = vmatprep.mubr.f32.mxu0 0.0
  %2808 = vmatmul.mubr.f32.gmra.mxu0 %v1045
  %v2809 = vpop.f32.mrf.mxu0
  %v2810 = vadd.f32 %v2727, %v2809
  %v2811 = vpop.f32.mrf.mxu0
  %2812 = vmatprep.mubr.f32.mxu0 0.0
  %2813 = vmatmul.mubr.f32.gmra.mxu0 %v1381
  %v2814 = vpop.f32.mrf.mxu0
  %v2815 = vadd.f32 %v2727, %v2814
  %v2816 = vpop.f32.mrf.mxu0
  %2817 = vmatprep.mubr.f32.mxu0 0.0
  %2818 = vmatmul.mubr.f32.gmra.mxu0 %v1717
  %v2819 = vpop.f32.mrf.mxu0
  %v2820 = vadd.f32 %v2727, %v2819
  %v2821 = vpop.f32.mrf.mxu0
  %2822 = vmatprep.mubr.f32.mxu0 0.0
  %2823 = vmatmul.mubr.f32.gmra.mxu0 %v2053
  %v2824 = vpop.f32.mrf.mxu0
  %v2825 = vadd.f32 %v2727, %v2824
  %v2826 = vpop.f32.mrf.mxu0
  %2827 = vmatprep.mubr.f32.mxu0 0.0
  %2828 = vmatmul.mubr.f32.gmra.mxu0 %v2389
  %v2829 = vpop.f32.mrf.mxu0
  %v2830 = vadd.f32 %v2727, %v2829
  %v2831 = vpop.f32.mrf.mxu0
  %2832 = vmatprep.mubr.f32.mxu0 0.0
  %2833 = vmatmul.mubr.f32.gmra.mxu0 %v2731
  %v2834 = vpop.f32.mrf.mxu0
  %v2835 = vadd.f32 %v2727, %v2834
  %v2836 = vpop.f32.mrf.mxu0
  %2837 = vdwg.mxu0
  %2838 = vmatprep.subr.mxu0 0.0
  %2839 = vmatpush1.msra.mxu0 0.0
  %2840 = vmatprep.subr.mxu0 0.0
  %2841 = vmatpush1.msra.mxu0 0.0
  %2842 = vmatprep.subr.mxu0 0.0
  %2843 = vmatpush1.msra.mxu0 0.0
  %2844 = vmatprep.subr.mxu0 0.0
  %2845 = vmatpush1.msra.mxu0 0.0
  %2846 = vmatprep.subr.mxu0 0.0
  %2847 = vmatpush1.msra.mxu0 0.0
  %2848 = vmatprep.subr.mxu0 0.0
  %2849 = vmatpush1.msra.mxu0 0.0
  %2850 = vmatprep.subr.mxu0 0.0
  %2851 = vmatpush1.msra.mxu0 0.0
  %2852 = vmatprep.subr.mxu0 0.0
  %2853 = vmatpush1.msra.mxu0 0.0
  %2854 = vmatprep.subr.mxu0 0.0
  %2855 = vmatpush1.msra.mxu0 0.0
  %2856 = vmatprep.subr.mxu0 0.0
  %2857 = vmatpush1.msra.mxu0 0.0
  %2858 = vmatprep.subr.mxu0 0.0
  %2859 = vmatpush1.msra.mxu0 0.0
  %2860 = vmatprep.subr.mxu0 0.0
  %2861 = vmatpush1.msra.mxu0 0.0
  %2862 = vmatprep.subr.mxu0 0.0
  %2863 = vmatpush1.msra.mxu0 %v37
  %2864 = vmatprep.subr.mxu0 0.0
  %2865 = vmatpush1.msra.mxu0 %v36
  %2866 = vmatprep.subr.mxu0 0.0
  %2867 = vmatpush1.msra.mxu0 %v35
  %2868 = vmatprep.subr.mxu0 0.0
  %2869 = vmatpush1.msra.mxu0 %v34
  %2870 = vmatprep.subr.mxu0 0.0
  %2871 = vmatpush2.msra.mxu0 0.0
  %2872 = vmatprep.subr.mxu0 0.0
  %2873 = vmatpush2.msra.mxu0 0.0
  %2874 = vmatprep.subr.mxu0 0.0
  %2875 = vmatpush2.msra.mxu0 0.0
  %2876 = vmatprep.subr.mxu0 0.0
  %2877 = vmatpush2.msra.mxu0 0.0
  %2878 = vmatprep.subr.mxu0 0.0
  %2879 = vmatpush2.msra.mxu0 0.0
  %2880 = vmatprep.subr.mxu0 0.0
  %2881 = vmatpush2.msra.mxu0 0.0
  %2882 = vmatprep.subr.mxu0 0.0
  %2883 = vmatpush2.msra.mxu0 0.0
  %2884 = vmatprep.subr.mxu0 0.0
  %2885 = vmatpush2.msra.mxu0 0.0
  %2886 = vmatprep.subr.mxu0 0.0
  %2887 = vmatpush2.msra.mxu0 0.0
  %2888 = vmatprep.subr.mxu0 0.0
  %2889 = vmatpush2.msra.mxu0 0.0
  %2890 = vmatprep.subr.mxu0 0.0
  %2891 = vmatpush2.msra.mxu0 0.0
  %2892 = vmatprep.subr.mxu0 0.0
  %2893 = vmatpush2.msra.mxu0 0.0
  %2894 = vmatprep.subr.mxu0 0.0
  %2895 = vmatpush2.msra.mxu0 0.0
  %2896 = vmatprep.subr.mxu0 0.0
  %2897 = vmatpush2.msra.mxu0 0.0
  %2898 = vmatprep.subr.mxu0 0.0
  %2899 = vmatpush2.msra.mxu0 0.0
  %2900 = vmatprep.subr.mxu0 0.0
  %2901 = vmatpush2.msra.mxu0 0.0
  %2902 = vmatprep.mubr.f32.mxu0 0.0
  %2903 = vmatmul.mubr.f32.gmra.mxu0 %v54
  %v2904 = vpop.f32.mrf.mxu0
  %v2905 = vadd.f32 0.0, %v2904
  %v2906 = vpop.f32.mrf.mxu0
  %2907 = vdwg.mxu0
  %v2908 = vadd.f32 %v2800, %v2905
  %v2909 = vxor.u32 %v2908, 2147483648
  %v2910 = vmul.f32 %v2909, 1.442695
  %v2911 = vpow.pop %v2910
  %v2912 = vadd.f32 %v2911, 1.0
  %v2913 = vrcp.pop %v2912
  %v2914 = vmul.f32 1.0, %v2913
  %v2915 = vtanh.pop %v2908
  %v2916 = vmul.f32 %v2914, 0.0
  %2918 = vrot.lane.b32.xlu0 %v2915, 64
  %v2919 = vpop.permute.xlu0 %2918
  %v2921 = vmul.f32 %v2914, %v2919
  %2923 = vrot.lane.b32.xlu0 %v2921, 32
  %v2924 = vpop.permute.xlu0 %2923
  %v2926 = vadd.f32 %v2916, %v2924
  %v2927 = vtanh.pop %v2926
  %2929 = vrot.lane.b32.xlu0 %v2927, 64
  %v2930 = vpop.permute.xlu0 %2929
  %v2932 = vmul.f32 %v2914, %v2930
  %2934 = vrot.lane.b32.xlu0 %v2932, 32
  %v2935 = vpop.permute.xlu0 %2934
  %v2936 = vsel %vm52, %v2935, 0
  %2938 = vmatprep.subr.mxu0 0.0
  %2939 = vmatpush1.msra.mxu0 0.0
  %2940 = vmatprep.subr.mxu0 0.0
  %2941 = vmatpush1.msra.mxu0 0.0
  %2942 = vmatprep.subr.mxu0 0.0
  %2943 = vmatpush1.msra.mxu0 0.0
  %2944 = vmatprep.subr.mxu0 0.0
  %2945 = vmatpush1.msra.mxu0 0.0
  %2946 = vmatprep.subr.mxu0 0.0
  %2947 = vmatpush1.msra.mxu0 0.0
  %2948 = vmatprep.subr.mxu0 0.0
  %2949 = vmatpush1.msra.mxu0 0.0
  %2950 = vmatprep.subr.mxu0 0.0
  %2951 = vmatpush1.msra.mxu0 0.0
  %2952 = vmatprep.subr.mxu0 0.0
  %2953 = vmatpush1.msra.mxu0 0.0
  %2954 = vmatprep.subr.mxu0 0.0
  %2955 = vmatpush1.msra.mxu0 0.0
  %2956 = vmatprep.subr.mxu0 0.0
  %2957 = vmatpush1.msra.mxu0 0.0
  %2958 = vmatprep.subr.mxu0 0.0
  %2959 = vmatpush1.msra.mxu0 0.0
  %2960 = vmatprep.subr.mxu0 0.0
  %2961 = vmatpush1.msra.mxu0 0.0
  %2962 = vmatprep.subr.mxu0 0.0
  %2963 = vmatpush1.msra.mxu0 %v37
  %2964 = vmatprep.subr.mxu0 0.0
  %2965 = vmatpush1.msra.mxu0 %v36
  %2966 = vmatprep.subr.mxu0 0.0
  %2967 = vmatpush1.msra.mxu0 %v35
  %2968 = vmatprep.subr.mxu0 0.0
  %2969 = vmatpush1.msra.mxu0 %v34
  %2970 = vmatprep.subr.mxu0 0.0
  %2971 = vmatpush2.msra.mxu0 0.0
  %2972 = vmatprep.subr.mxu0 0.0
  %2973 = vmatpush2.msra.mxu0 0.0
  %2974 = vmatprep.subr.mxu0 0.0
  %2975 = vmatpush2.msra.mxu0 0.0
  %2976 = vmatprep.subr.mxu0 0.0
  %2977 = vmatpush2.msra.mxu0 0.0
  %2978 = vmatprep.subr.mxu0 0.0
  %2979 = vmatpush2.msra.mxu0 0.0
  %2980 = vmatprep.subr.mxu0 0.0
  %2981 = vmatpush2.msra.mxu0 0.0
  %2982 = vmatprep.subr.mxu0 0.0
  %2983 = vmatpush2.msra.mxu0 0.0
  %2984 = vmatprep.subr.mxu0 0.0
  %2985 = vmatpush2.msra.mxu0 0.0
  %2986 = vmatprep.subr.mxu0 0.0
  %2987 = vmatpush2.msra.mxu0 0.0
  %2988 = vmatprep.subr.mxu0 0.0
  %2989 = vmatpush2.msra.mxu0 0.0
  %2990 = vmatprep.subr.mxu0 0.0
  %2991 = vmatpush2.msra.mxu0 0.0
  %2992 = vmatprep.subr.mxu0 0.0
  %2993 = vmatpush2.msra.mxu0 0.0
  %2994 = vmatprep.subr.mxu0 0.0
  %2995 = vmatpush2.msra.mxu0 0.0
  %2996 = vmatprep.subr.mxu0 0.0
  %2997 = vmatpush2.msra.mxu0 0.0
  %2998 = vmatprep.subr.mxu0 0.0
  %2999 = vmatpush2.msra.mxu0 0.0
  %3000 = vmatprep.subr.mxu0 0.0
  %3001 = vmatpush2.msra.mxu0 0.0
  %3002 = vmatprep.mubr.f32.mxu0 0.0
  %3003 = vmatmul.mubr.f32.gmra.mxu0 %v2936
  %v3004 = vpop.f32.mrf.mxu0
  %v3005 = vadd.f32 0.0, %v3004
  %v3006 = vpop.f32.mrf.mxu0
  %3007 = vdwg.mxu0
  %v3008 = vadd.f32 %v2805, %v3005
  %v3009 = vxor.u32 %v3008, 2147483648
  %v3010 = vmul.f32 %v3009, 1.442695
  %v3011 = vpow.pop %v3010
  %v3012 = vadd.f32 %v3011, 1.0
  %v3013 = vrcp.pop %v3012
  %v3014 = vmul.f32 1.0, %v3013
  %v3015 = vtanh.pop %v3008
  %v3016 = vmul.f32 %v3014, %v2926
  %3018 = vrot.lane.b32.xlu0 %v3015, 64
  %v3019 = vpop.permute.xlu0 %3018
  %v3021 = vmul.f32 %v3014, %v3019
  %3023 = vrot.lane.b32.xlu0 %v3021, 32
  %v3024 = vpop.permute.xlu0 %3023
  %v3026 = vadd.f32 %v3016, %v3024
  %v3027 = vtanh.pop %v3026
  %3029 = vrot.lane.b32.xlu0 %v3027, 64
  %v3030 = vpop.permute.xlu0 %3029
  %v3032 = vmul.f32 %v3014, %v3030
  %3034 = vrot.lane.b32.xlu0 %v3032, 32
  %v3035 = vpop.permute.xlu0 %3034
  %v3036 = vsel %vm52, %v3035, 0
  %3038 = vmatprep.subr.mxu0 0.0
  %3039 = vmatpush1.msra.mxu0 0.0
  %3040 = vmatprep.subr.mxu0 0.0
  %3041 = vmatpush1.msra.mxu0 0.0
  %3042 = vmatprep.subr.mxu0 0.0
  %3043 = vmatpush1.msra.mxu0 0.0
  %3044 = vmatprep.subr.mxu0 0.0
  %3045 = vmatpush1.msra.mxu0 0.0
  %3046 = vmatprep.subr.mxu0 0.0
  %3047 = vmatpush1.msra.mxu0 0.0
  %3048 = vmatprep.subr.mxu0 0.0
  %3049 = vmatpush1.msra.mxu0 0.0
  %3050 = vmatprep.subr.mxu0 0.0
  %3051 = vmatpush1.msra.mxu0 0.0
  %3052 = vmatprep.subr.mxu0 0.0
  %3053 = vmatpush1.msra.mxu0 0.0
  %3054 = vmatprep.subr.mxu0 0.0
  %3055 = vmatpush1.msra.mxu0 0.0
  %3056 = vmatprep.subr.mxu0 0.0
  %3057 = vmatpush1.msra.mxu0 0.0
  %3058 = vmatprep.subr.mxu0 0.0
  %3059 = vmatpush1.msra.mxu0 0.0
  %3060 = vmatprep.subr.mxu0 0.0
  %3061 = vmatpush1.msra.mxu0 0.0
  %3062 = vmatprep.subr.mxu0 0.0
  %3063 = vmatpush1.msra.mxu0 %v37
  %3064 = vmatprep.subr.mxu0 0.0
  %3065 = vmatpush1.msra.mxu0 %v36
  %3066 = vmatprep.subr.mxu0 0.0
  %3067 = vmatpush1.msra.mxu0 %v35
  %3068 = vmatprep.subr.mxu0 0.0
  %3069 = vmatpush1.msra.mxu0 %v34
  %3070 = vmatprep.subr.mxu0 0.0
  %3071 = vmatpush2.msra.mxu0 0.0
  %3072 = vmatprep.subr.mxu0 0.0
  %3073 = vmatpush2.msra.mxu0 0.0
  %3074 = vmatprep.subr.mxu0 0.0
  %3075 = vmatpush2.msra.mxu0 0.0
  %3076 = vmatprep.subr.mxu0 0.0
  %3077 = vmatpush2.msra.mxu0 0.0
  %3078 = vmatprep.subr.mxu0 0.0
  %3079 = vmatpush2.msra.mxu0 0.0
  %3080 = vmatprep.subr.mxu0 0.0
  %3081 = vmatpush2.msra.mxu0 0.0
  %3082 = vmatprep.subr.mxu0 0.0
  %3083 = vmatpush2.msra.mxu0 0.0
  %3084 = vmatprep.subr.mxu0 0.0
  %3085 = vmatpush2.msra.mxu0 0.0
  %3086 = vmatprep.subr.mxu0 0.0
  %3087 = vmatpush2.msra.mxu0 0.0
  %3088 = vmatprep.subr.mxu0 0.0
  %3089 = vmatpush2.msra.mxu0 0.0
  %3090 = vmatprep.subr.mxu0 0.0
  %3091 = vmatpush2.msra.mxu0 0.0
  %3092 = vmatprep.subr.mxu0 0.0
  %3093 = vmatpush2.msra.mxu0 0.0
  %3094 = vmatprep.subr.mxu0 0.0
  %3095 = vmatpush2.msra.mxu0 0.0
  %3096 = vmatprep.subr.mxu0 0.0
  %3097 = vmatpush2.msra.mxu0 0.0
  %3098 = vmatprep.subr.mxu0 0.0
  %3099 = vmatpush2.msra.mxu0 0.0
  %3100 = vmatprep.subr.mxu0 0.0
  %3101 = vmatpush2.msra.mxu0 0.0
  %3102 = vmatprep.mubr.f32.mxu0 0.0
  %3103 = vmatmul.mubr.f32.gmra.mxu0 %v3036
  %v3104 = vpop.f32.mrf.mxu0
  %v3105 = vadd.f32 0.0, %v3104
  %v3106 = vpop.f32.mrf.mxu0
  %3107 = vdwg.mxu0
  %v3108 = vadd.f32 %v2810, %v3105
  %v3109 = vxor.u32 %v3108, 2147483648
  %v3110 = vmul.f32 %v3109, 1.442695
  %v3111 = vpow.pop %v3110
  %v3112 = vadd.f32 %v3111, 1.0
  %v3113 = vrcp.pop %v3112
  %v3114 = vmul.f32 1.0, %v3113
  %v3115 = vtanh.pop %v3108
  %v3116 = vmul.f32 %v3114, %v3026
  %3118 = vrot.lane.b32.xlu0 %v3115, 64
  %v3119 = vpop.permute.xlu0 %3118
  %v3121 = vmul.f32 %v3114, %v3119
  %3123 = vrot.lane.b32.xlu0 %v3121, 32
  %v3124 = vpop.permute.xlu0 %3123
  %v3126 = vadd.f32 %v3116, %v3124
  %v3127 = vtanh.pop %v3126
  %3129 = vrot.lane.b32.xlu0 %v3127, 64
  %v3130 = vpop.permute.xlu0 %3129
  %v3132 = vmul.f32 %v3114, %v3130
  %3134 = vrot.lane.b32.xlu0 %v3132, 32
  %v3135 = vpop.permute.xlu0 %3134
  %v3136 = vsel %vm52, %v3135, 0
  %3138 = vmatprep.subr.mxu0 0.0
  %3139 = vmatpush1.msra.mxu0 0.0
  %3140 = vmatprep.subr.mxu0 0.0
  %3141 = vmatpush1.msra.mxu0 0.0
  %3142 = vmatprep.subr.mxu0 0.0
  %3143 = vmatpush1.msra.mxu0 0.0
  %3144 = vmatprep.subr.mxu0 0.0
  %3145 = vmatpush1.msra.mxu0 0.0
  %3146 = vmatprep.subr.mxu0 0.0
  %3147 = vmatpush1.msra.mxu0 0.0
  %3148 = vmatprep.subr.mxu0 0.0
  %3149 = vmatpush1.msra.mxu0 0.0
  %3150 = vmatprep.subr.mxu0 0.0
  %3151 = vmatpush1.msra.mxu0 0.0
  %3152 = vmatprep.subr.mxu0 0.0
  %3153 = vmatpush1.msra.mxu0 0.0
  %3154 = vmatprep.subr.mxu0 0.0
  %3155 = vmatpush1.msra.mxu0 0.0
  %3156 = vmatprep.subr.mxu0 0.0
  %3157 = vmatpush1.msra.mxu0 0.0
  %3158 = vmatprep.subr.mxu0 0.0
  %3159 = vmatpush1.msra.mxu0 0.0
  %3160 = vmatprep.subr.mxu0 0.0
  %3161 = vmatpush1.msra.mxu0 0.0
  %3162 = vmatprep.subr.mxu0 0.0
  %3163 = vmatpush1.msra.mxu0 %v37
  %3164 = vmatprep.subr.mxu0 0.0
  %3165 = vmatpush1.msra.mxu0 %v36
  %3166 = vmatprep.subr.mxu0 0.0
  %3167 = vmatpush1.msra.mxu0 %v35
  %3168 = vmatprep.subr.mxu0 0.0
  %3169 = vmatpush1.msra.mxu0 %v34
  %3170 = vmatprep.subr.mxu0 0.0
  %3171 = vmatpush2.msra.mxu0 0.0
  %3172 = vmatprep.subr.mxu0 0.0
  %3173 = vmatpush2.msra.mxu0 0.0
  %3174 = vmatprep.subr.mxu0 0.0
  %3175 = vmatpush2.msra.mxu0 0.0
  %3176 = vmatprep.subr.mxu0 0.0
  %3177 = vmatpush2.msra.mxu0 0.0
  %3178 = vmatprep.subr.mxu0 0.0
  %3179 = vmatpush2.msra.mxu0 0.0
  %3180 = vmatprep.subr.mxu0 0.0
  %3181 = vmatpush2.msra.mxu0 0.0
  %3182 = vmatprep.subr.mxu0 0.0
  %3183 = vmatpush2.msra.mxu0 0.0
  %3184 = vmatprep.subr.mxu0 0.0
  %3185 = vmatpush2.msra.mxu0 0.0
  %3186 = vmatprep.subr.mxu0 0.0
  %3187 = vmatpush2.msra.mxu0 0.0
  %3188 = vmatprep.subr.mxu0 0.0
  %3189 = vmatpush2.msra.mxu0 0.0
  %3190 = vmatprep.subr.mxu0 0.0
  %3191 = vmatpush2.msra.mxu0 0.0
  %3192 = vmatprep.subr.mxu0 0.0
  %3193 = vmatpush2.msra.mxu0 0.0
  %3194 = vmatprep.subr.mxu0 0.0
  %3195 = vmatpush2.msra.mxu0 0.0
  %3196 = vmatprep.subr.mxu0 0.0
  %3197 = vmatpush2.msra.mxu0 0.0
  %3198 = vmatprep.subr.mxu0 0.0
  %3199 = vmatpush2.msra.mxu0 0.0
  %3200 = vmatprep.subr.mxu0 0.0
  %3201 = vmatpush2.msra.mxu0 0.0
  %3202 = vmatprep.mubr.f32.mxu0 0.0
  %3203 = vmatmul.mubr.f32.gmra.mxu0 %v3136
  %v3204 = vpop.f32.mrf.mxu0
  %v3205 = vadd.f32 0.0, %v3204
  %v3206 = vpop.f32.mrf.mxu0
  %3207 = vdwg.mxu0
  %v3208 = vadd.f32 %v2815, %v3205
  %v3209 = vxor.u32 %v3208, 2147483648
  %v3210 = vmul.f32 %v3209, 1.442695
  %v3211 = vpow.pop %v3210
  %v3212 = vadd.f32 %v3211, 1.0
  %v3213 = vrcp.pop %v3212
  %v3214 = vmul.f32 1.0, %v3213
  %v3215 = vtanh.pop %v3208
  %v3216 = vmul.f32 %v3214, %v3126
  %3218 = vrot.lane.b32.xlu0 %v3215, 64
  %v3219 = vpop.permute.xlu0 %3218
  %v3221 = vmul.f32 %v3214, %v3219
  %3223 = vrot.lane.b32.xlu0 %v3221, 32
  %v3224 = vpop.permute.xlu0 %3223
  %v3226 = vadd.f32 %v3216, %v3224
  %v3227 = vtanh.pop %v3226
  %3229 = vrot.lane.b32.xlu0 %v3227, 64
  %v3230 = vpop.permute.xlu0 %3229
  %v3232 = vmul.f32 %v3214, %v3230
  %3234 = vrot.lane.b32.xlu0 %v3232, 32
  %v3235 = vpop.permute.xlu0 %3234
  %v3236 = vsel %vm52, %v3235, 0
  %3238 = vmatprep.subr.mxu0 0.0
  %3239 = vmatpush1.msra.mxu0 0.0
  %3240 = vmatprep.subr.mxu0 0.0
  %3241 = vmatpush1.msra.mxu0 0.0
  %3242 = vmatprep.subr.mxu0 0.0
  %3243 = vmatpush1.msra.mxu0 0.0
  %3244 = vmatprep.subr.mxu0 0.0
  %3245 = vmatpush1.msra.mxu0 0.0
  %3246 = vmatprep.subr.mxu0 0.0
  %3247 = vmatpush1.msra.mxu0 0.0
  %3248 = vmatprep.subr.mxu0 0.0
  %3249 = vmatpush1.msra.mxu0 0.0
  %3250 = vmatprep.subr.mxu0 0.0
  %3251 = vmatpush1.msra.mxu0 0.0
  %3252 = vmatprep.subr.mxu0 0.0
  %3253 = vmatpush1.msra.mxu0 0.0
  %3254 = vmatprep.subr.mxu0 0.0
  %3255 = vmatpush1.msra.mxu0 0.0
  %3256 = vmatprep.subr.mxu0 0.0
  %3257 = vmatpush1.msra.mxu0 0.0
  %3258 = vmatprep.subr.mxu0 0.0
  %3259 = vmatpush1.msra.mxu0 0.0
  %3260 = vmatprep.subr.mxu0 0.0
  %3261 = vmatpush1.msra.mxu0 0.0
  %3262 = vmatprep.subr.mxu0 0.0
  %3263 = vmatpush1.msra.mxu0 %v37
  %3264 = vmatprep.subr.mxu0 0.0
  %3265 = vmatpush1.msra.mxu0 %v36
  %3266 = vmatprep.subr.mxu0 0.0
  %3267 = vmatpush1.msra.mxu0 %v35
  %3268 = vmatprep.subr.mxu0 0.0
  %3269 = vmatpush1.msra.mxu0 %v34
  %3270 = vmatprep.subr.mxu0 0.0
  %3271 = vmatpush2.msra.mxu0 0.0
  %3272 = vmatprep.subr.mxu0 0.0
  %3273 = vmatpush2.msra.mxu0 0.0
  %3274 = vmatprep.subr.mxu0 0.0
  %3275 = vmatpush2.msra.mxu0 0.0
  %3276 = vmatprep.subr.mxu0 0.0
  %3277 = vmatpush2.msra.mxu0 0.0
  %3278 = vmatprep.subr.mxu0 0.0
  %3279 = vmatpush2.msra.mxu0 0.0
  %3280 = vmatprep.subr.mxu0 0.0
  %3281 = vmatpush2.msra.mxu0 0.0
  %3282 = vmatprep.subr.mxu0 0.0
  %3283 = vmatpush2.msra.mxu0 0.0
  %3284 = vmatprep.subr.mxu0 0.0
  %3285 = vmatpush2.msra.mxu0 0.0
  %3286 = vmatprep.subr.mxu0 0.0
  %3287 = vmatpush2.msra.mxu0 0.0
  %3288 = vmatprep.subr.mxu0 0.0
  %3289 = vmatpush2.msra.mxu0 0.0
  %3290 = vmatprep.subr.mxu0 0.0
  %3291 = vmatpush2.msra.mxu0 0.0
  %3292 = vmatprep.subr.mxu0 0.0
  %3293 = vmatpush2.msra.mxu0 0.0
  %3294 = vmatprep.subr.mxu0 0.0
  %3295 = vmatpush2.msra.mxu0 0.0
  %3296 = vmatprep.subr.mxu0 0.0
  %3297 = vmatpush2.msra.mxu0 0.0
  %3298 = vmatprep.subr.mxu0 0.0
  %3299 = vmatpush2.msra.mxu0 0.0
  %3300 = vmatprep.subr.mxu0 0.0
  %3301 = vmatpush2.msra.mxu0 0.0
  %3302 = vmatprep.mubr.f32.mxu0 0.0
  %3303 = vmatmul.mubr.f32.gmra.mxu0 %v3236
  %v3304 = vpop.f32.mrf.mxu0
  %v3305 = vadd.f32 0.0, %v3304
  %v3306 = vpop.f32.mrf.mxu0
  %3307 = vdwg.mxu0
  %v3308 = vadd.f32 %v2820, %v3305
  %v3309 = vxor.u32 %v3308, 2147483648
  %v3310 = vmul.f32 %v3309, 1.442695
  %v3311 = vpow.pop %v3310
  %v3312 = vadd.f32 %v3311, 1.0
  %v3313 = vrcp.pop %v3312
  %v3314 = vmul.f32 1.0, %v3313
  %v3315 = vtanh.pop %v3308
  %v3316 = vmul.f32 %v3314, %v3226
  %3318 = vrot.lane.b32.xlu0 %v3315, 64
  %v3319 = vpop.permute.xlu0 %3318
  %v3321 = vmul.f32 %v3314, %v3319
  %3323 = vrot.lane.b32.xlu0 %v3321, 32
  %v3324 = vpop.permute.xlu0 %3323
  %v3326 = vadd.f32 %v3316, %v3324
  %v3327 = vtanh.pop %v3326
  %3329 = vrot.lane.b32.xlu0 %v3327, 64
  %v3330 = vpop.permute.xlu0 %3329
  %v3332 = vmul.f32 %v3314, %v3330
  %3334 = vrot.lane.b32.xlu0 %v3332, 32
  %v3335 = vpop.permute.xlu0 %3334
  %v3336 = vsel %vm52, %v3335, 0
  %3338 = vmatprep.subr.mxu0 0.0
  %3339 = vmatpush1.msra.mxu0 0.0
  %3340 = vmatprep.subr.mxu0 0.0
  %3341 = vmatpush1.msra.mxu0 0.0
  %3342 = vmatprep.subr.mxu0 0.0
  %3343 = vmatpush1.msra.mxu0 0.0
  %3344 = vmatprep.subr.mxu0 0.0
  %3345 = vmatpush1.msra.mxu0 0.0
  %3346 = vmatprep.subr.mxu0 0.0
  %3347 = vmatpush1.msra.mxu0 0.0
  %3348 = vmatprep.subr.mxu0 0.0
  %3349 = vmatpush1.msra.mxu0 0.0
  %3350 = vmatprep.subr.mxu0 0.0
  %3351 = vmatpush1.msra.mxu0 0.0
  %3352 = vmatprep.subr.mxu0 0.0
  %3353 = vmatpush1.msra.mxu0 0.0
  %3354 = vmatprep.subr.mxu0 0.0
  %3355 = vmatpush1.msra.mxu0 0.0
  %3356 = vmatprep.subr.mxu0 0.0
  %3357 = vmatpush1.msra.mxu0 0.0
  %3358 = vmatprep.subr.mxu0 0.0
  %3359 = vmatpush1.msra.mxu0 0.0
  %3360 = vmatprep.subr.mxu0 0.0
  %3361 = vmatpush1.msra.mxu0 0.0
  %3362 = vmatprep.subr.mxu0 0.0
  %3363 = vmatpush1.msra.mxu0 %v37
  %3364 = vmatprep.subr.mxu0 0.0
  %3365 = vmatpush1.msra.mxu0 %v36
  %3366 = vmatprep.subr.mxu0 0.0
  %3367 = vmatpush1.msra.mxu0 %v35
  %3368 = vmatprep.subr.mxu0 0.0
  %3369 = vmatpush1.msra.mxu0 %v34
  %3370 = vmatprep.subr.mxu0 0.0
  %3371 = vmatpush2.msra.mxu0 0.0
  %3372 = vmatprep.subr.mxu0 0.0
  %3373 = vmatpush2.msra.mxu0 0.0
  %3374 = vmatprep.subr.mxu0 0.0
  %3375 = vmatpush2.msra.mxu0 0.0
  %3376 = vmatprep.subr.mxu0 0.0
  %3377 = vmatpush2.msra.mxu0 0.0
  %3378 = vmatprep.subr.mxu0 0.0
  %3379 = vmatpush2.msra.mxu0 0.0
  %3380 = vmatprep.subr.mxu0 0.0
  %3381 = vmatpush2.msra.mxu0 0.0
  %3382 = vmatprep.subr.mxu0 0.0
  %3383 = vmatpush2.msra.mxu0 0.0
  %3384 = vmatprep.subr.mxu0 0.0
  %3385 = vmatpush2.msra.mxu0 0.0
  %3386 = vmatprep.subr.mxu0 0.0
  %3387 = vmatpush2.msra.mxu0 0.0
  %3388 = vmatprep.subr.mxu0 0.0
  %3389 = vmatpush2.msra.mxu0 0.0
  %3390 = vmatprep.subr.mxu0 0.0
  %3391 = vmatpush2.msra.mxu0 0.0
  %3392 = vmatprep.subr.mxu0 0.0
  %3393 = vmatpush2.msra.mxu0 0.0
  %3394 = vmatprep.subr.mxu0 0.0
  %3395 = vmatpush2.msra.mxu0 0.0
  %3396 = vmatprep.subr.mxu0 0.0
  %3397 = vmatpush2.msra.mxu0 0.0
  %3398 = vmatprep.subr.mxu0 0.0
  %3399 = vmatpush2.msra.mxu0 0.0
  %3400 = vmatprep.subr.mxu0 0.0
  %3401 = vmatpush2.msra.mxu0 0.0
  %3402 = vmatprep.mubr.f32.mxu0 0.0
  %3403 = vmatmul.mubr.f32.gmra.mxu0 %v3336
  %v3404 = vpop.f32.mrf.mxu0
  %v3405 = vadd.f32 0.0, %v3404
  %v3406 = vpop.f32.mrf.mxu0
  %3407 = vdwg.mxu0
  %v3408 = vadd.f32 %v2825, %v3405
  %v3409 = vxor.u32 %v3408, 2147483648
  %v3410 = vmul.f32 %v3409, 1.442695
  %v3411 = vpow.pop %v3410
  %v3412 = vadd.f32 %v3411, 1.0
  %v3413 = vrcp.pop %v3412
  %v3414 = vmul.f32 1.0, %v3413
  %v3415 = vtanh.pop %v3408
  %v3416 = vmul.f32 %v3414, %v3326
  %3418 = vrot.lane.b32.xlu0 %v3415, 64
  %v3419 = vpop.permute.xlu0 %3418
  %v3421 = vmul.f32 %v3414, %v3419
  %3423 = vrot.lane.b32.xlu0 %v3421, 32
  %v3424 = vpop.permute.xlu0 %3423
  %v3426 = vadd.f32 %v3416, %v3424
  %v3427 = vtanh.pop %v3426
  %3429 = vrot.lane.b32.xlu0 %v3427, 64
  %v3430 = vpop.permute.xlu0 %3429
  %v3432 = vmul.f32 %v3414, %v3430
  %3434 = vrot.lane.b32.xlu0 %v3432, 32
  %v3435 = vpop.permute.xlu0 %3434
  %v3436 = vsel %vm52, %v3435, 0
  %3438 = vmatprep.subr.mxu0 0.0
  %3439 = vmatpush1.msra.mxu0 0.0
  %3440 = vmatprep.subr.mxu0 0.0
  %3441 = vmatpush1.msra.mxu0 0.0
  %3442 = vmatprep.subr.mxu0 0.0
  %3443 = vmatpush1.msra.mxu0 0.0
  %3444 = vmatprep.subr.mxu0 0.0
  %3445 = vmatpush1.msra.mxu0 0.0
  %3446 = vmatprep.subr.mxu0 0.0
  %3447 = vmatpush1.msra.mxu0 0.0
  %3448 = vmatprep.subr.mxu0 0.0
  %3449 = vmatpush1.msra.mxu0 0.0
  %3450 = vmatprep.subr.mxu0 0.0
  %3451 = vmatpush1.msra.mxu0 0.0
  %3452 = vmatprep.subr.mxu0 0.0
  %3453 = vmatpush1.msra.mxu0 0.0
  %3454 = vmatprep.subr.mxu0 0.0
  %3455 = vmatpush1.msra.mxu0 0.0
  %3456 = vmatprep.subr.mxu0 0.0
  %3457 = vmatpush1.msra.mxu0 0.0
  %3458 = vmatprep.subr.mxu0 0.0
  %3459 = vmatpush1.msra.mxu0 0.0
  %3460 = vmatprep.subr.mxu0 0.0
  %3461 = vmatpush1.msra.mxu0 0.0
  %3462 = vmatprep.subr.mxu0 0.0
  %3463 = vmatpush1.msra.mxu0 %v37
  %3464 = vmatprep.subr.mxu0 0.0
  %3465 = vmatpush1.msra.mxu0 %v36
  %3466 = vmatprep.subr.mxu0 0.0
  %3467 = vmatpush1.msra.mxu0 %v35
  %3468 = vmatprep.subr.mxu0 0.0
  %3469 = vmatpush1.msra.mxu0 %v34
  %3470 = vmatprep.subr.mxu0 0.0
  %3471 = vmatpush2.msra.mxu0 0.0
  %3472 = vmatprep.subr.mxu0 0.0
  %3473 = vmatpush2.msra.mxu0 0.0
  %3474 = vmatprep.subr.mxu0 0.0
  %3475 = vmatpush2.msra.mxu0 0.0
  %3476 = vmatprep.subr.mxu0 0.0
  %3477 = vmatpush2.msra.mxu0 0.0
  %3478 = vmatprep.subr.mxu0 0.0
  %3479 = vmatpush2.msra.mxu0 0.0
  %3480 = vmatprep.subr.mxu0 0.0
  %3481 = vmatpush2.msra.mxu0 0.0
  %3482 = vmatprep.subr.mxu0 0.0
  %3483 = vmatpush2.msra.mxu0 0.0
  %3484 = vmatprep.subr.mxu0 0.0
  %3485 = vmatpush2.msra.mxu0 0.0
  %3486 = vmatprep.subr.mxu0 0.0
  %3487 = vmatpush2.msra.mxu0 0.0
  %3488 = vmatprep.subr.mxu0 0.0
  %3489 = vmatpush2.msra.mxu0 0.0
  %3490 = vmatprep.subr.mxu0 0.0
  %3491 = vmatpush2.msra.mxu0 0.0
  %3492 = vmatprep.subr.mxu0 0.0
  %3493 = vmatpush2.msra.mxu0 0.0
  %3494 = vmatprep.subr.mxu0 0.0
  %3495 = vmatpush2.msra.mxu0 0.0
  %3496 = vmatprep.subr.mxu0 0.0
  %3497 = vmatpush2.msra.mxu0 0.0
  %3498 = vmatprep.subr.mxu0 0.0
  %3499 = vmatpush2.msra.mxu0 0.0
  %3500 = vmatprep.subr.mxu0 0.0
  %3501 = vmatpush2.msra.mxu0 0.0
  %3502 = vmatprep.mubr.f32.mxu0 0.0
  %3503 = vmatmul.mubr.f32.gmra.mxu0 %v3436
  %v3504 = vpop.f32.mrf.mxu0
  %v3505 = vadd.f32 0.0, %v3504
  %v3506 = vpop.f32.mrf.mxu0
  %3507 = vdwg.mxu0
  %v3508 = vadd.f32 %v2830, %v3505
  %v3509 = vxor.u32 %v3508, 2147483648
  %v3510 = vmul.f32 %v3509, 1.442695
  %v3511 = vpow.pop %v3510
  %v3512 = vadd.f32 %v3511, 1.0
  %v3513 = vrcp.pop %v3512
  %v3514 = vmul.f32 1.0, %v3513
  %v3515 = vtanh.pop %v3508
  %v3516 = vmul.f32 %v3514, %v3426
  %3518 = vrot.lane.b32.xlu0 %v3515, 64
  %v3519 = vpop.permute.xlu0 %3518
  %v3521 = vmul.f32 %v3514, %v3519
  %3523 = vrot.lane.b32.xlu0 %v3521, 32
  %v3524 = vpop.permute.xlu0 %3523
  %v3526 = vadd.f32 %v3516, %v3524
  %v3527 = vtanh.pop %v3526
  %3529 = vrot.lane.b32.xlu0 %v3527, 64
  %v3530 = vpop.permute.xlu0 %3529
  %v3532 = vmul.f32 %v3514, %v3530
  %3534 = vrot.lane.b32.xlu0 %v3532, 32
  %v3535 = vpop.permute.xlu0 %3534
  %v3536 = vsel %vm52, %v3535, 0
  %3538 = vmatprep.subr.mxu0 0.0
  %3539 = vmatpush1.msra.mxu0 0.0
  %3540 = vmatprep.subr.mxu0 0.0
  %3541 = vmatpush1.msra.mxu0 0.0
  %3542 = vmatprep.subr.mxu0 0.0
  %3543 = vmatpush1.msra.mxu0 0.0
  %3544 = vmatprep.subr.mxu0 0.0
  %3545 = vmatpush1.msra.mxu0 0.0
  %3546 = vmatprep.subr.mxu0 0.0
  %3547 = vmatpush1.msra.mxu0 0.0
  %3548 = vmatprep.subr.mxu0 0.0
  %3549 = vmatpush1.msra.mxu0 0.0
  %3550 = vmatprep.subr.mxu0 0.0
  %3551 = vmatpush1.msra.mxu0 0.0
  %3552 = vmatprep.subr.mxu0 0.0
  %3553 = vmatpush1.msra.mxu0 0.0
  %3554 = vmatprep.subr.mxu0 0.0
  %3555 = vmatpush1.msra.mxu0 0.0
  %3556 = vmatprep.subr.mxu0 0.0
  %3557 = vmatpush1.msra.mxu0 0.0
  %3558 = vmatprep.subr.mxu0 0.0
  %3559 = vmatpush1.msra.mxu0 0.0
  %3560 = vmatprep.subr.mxu0 0.0
  %3561 = vmatpush1.msra.mxu0 0.0
  %3562 = vmatprep.subr.mxu0 0.0
  %3563 = vmatpush1.msra.mxu0 %v37
  %3564 = vmatprep.subr.mxu0 0.0
  %3565 = vmatpush1.msra.mxu0 %v36
  %3566 = vmatprep.subr.mxu0 0.0
  %3567 = vmatpush1.msra.mxu0 %v35
  %3568 = vmatprep.subr.mxu0 0.0
  %3569 = vmatpush1.msra.mxu0 %v34
  %3570 = vmatprep.subr.mxu0 0.0
  %3571 = vmatpush2.msra.mxu0 0.0
  %3572 = vmatprep.subr.mxu0 0.0
  %3573 = vmatpush2.msra.mxu0 0.0
  %3574 = vmatprep.subr.mxu0 0.0
  %3575 = vmatpush2.msra.mxu0 0.0
  %3576 = vmatprep.subr.mxu0 0.0
  %3577 = vmatpush2.msra.mxu0 0.0
  %3578 = vmatprep.subr.mxu0 0.0
  %3579 = vmatpush2.msra.mxu0 0.0
  %3580 = vmatprep.subr.mxu0 0.0
  %3581 = vmatpush2.msra.mxu0 0.0
  %3582 = vmatprep.subr.mxu0 0.0
  %3583 = vmatpush2.msra.mxu0 0.0
  %3584 = vmatprep.subr.mxu0 0.0
  %3585 = vmatpush2.msra.mxu0 0.0
  %3586 = vmatprep.subr.mxu0 0.0
  %3587 = vmatpush2.msra.mxu0 0.0
  %3588 = vmatprep.subr.mxu0 0.0
  %3589 = vmatpush2.msra.mxu0 0.0
  %3590 = vmatprep.subr.mxu0 0.0
  %3591 = vmatpush2.msra.mxu0 0.0
  %3592 = vmatprep.subr.mxu0 0.0
  %3593 = vmatpush2.msra.mxu0 0.0
  %3594 = vmatprep.subr.mxu0 0.0
  %3595 = vmatpush2.msra.mxu0 0.0
  %3596 = vmatprep.subr.mxu0 0.0
  %3597 = vmatpush2.msra.mxu0 0.0
  %3598 = vmatprep.subr.mxu0 0.0
  %3599 = vmatpush2.msra.mxu0 0.0
  %3600 = vmatprep.subr.mxu0 0.0
  %3601 = vmatpush2.msra.mxu0 0.0
  %3602 = vmatprep.mubr.f32.mxu0 0.0
  %3603 = vmatmul.mubr.f32.gmra.mxu0 %v3536
  %v3604 = vpop.f32.mrf.mxu0
  %v3605 = vadd.f32 0.0, %v3604
  %v3606 = vpop.f32.mrf.mxu0
  %3607 = vdwg.mxu0
  %v3608 = vadd.f32 %v2835, %v3605
  %v3609 = vxor.u32 %v3608, 2147483648
  %v3610 = vmul.f32 %v3609, 1.442695
  %v3611 = vpow.pop %v3610
  %v3612 = vadd.f32 %v3611, 1.0
  %v3613 = vrcp.pop %v3612
  %v3614 = vmul.f32 1.0, %v3613
  %v3615 = vtanh.pop %v3608
  %v3616 = vmul.f32 %v3614, %v3526
  %3618 = vrot.lane.b32.xlu0 %v3615, 64
  %v3619 = vpop.permute.xlu0 %3618
  %v3621 = vmul.f32 %v3614, %v3619
  %3623 = vrot.lane.b32.xlu0 %v3621, 32
  %v3624 = vpop.permute.xlu0 %3623
  %v3626 = vadd.f32 %v3616, %v3624
  %v3627 = vtanh.pop %v3626
  %3629 = vrot.lane.b32.xlu0 %v3627, 64
  %v3630 = vpop.permute.xlu0 %3629
  %v3632 = vmul.f32 %v3614, %v3630
  %v3634 = vlaneseq
  %v3635 = vshrl.u32 %v3634, 7
  %v3636 = vsub.s32 0, %v3635
  %v3637 = vrot.slane %v43, %v3636
  %3640 = vrot.lane.b32.xlu0 %v3632, 32
  %v3641 = vpop.permute.xlu0 %3640
  %v3642 = vsel %vm52, %v3641, 0
  %3644 = vmatprep.subr.mxu0 0.0
  %3645 = vmatpush1.msra.mxu0 0.0
  %3646 = vmatprep.subr.mxu0 0.0
  %3647 = vmatpush1.msra.mxu0 0.0
  %3648 = vmatprep.subr.mxu0 0.0
  %3649 = vmatpush1.msra.mxu0 0.0
  %3650 = vmatprep.subr.mxu0 0.0
  %3651 = vmatpush1.msra.mxu0 0.0
  %3652 = vmatprep.subr.mxu0 0.0
  %3653 = vmatpush1.msra.mxu0 0.0
  %3654 = vmatprep.subr.mxu0 0.0
  %3655 = vmatpush1.msra.mxu0 0.0
  %3656 = vmatprep.subr.mxu0 0.0
  %3657 = vmatpush1.msra.mxu0 0.0
  %3658 = vmatprep.subr.mxu0 0.0
  %3659 = vmatpush1.msra.mxu0 0.0
  %3660 = vmatprep.subr.mxu0 0.0
  %3661 = vmatpush1.msra.mxu0 0.0
  %3662 = vmatprep.subr.mxu0 0.0
  %3663 = vmatpush1.msra.mxu0 0.0
  %3664 = vmatprep.subr.mxu0 0.0
  %3665 = vmatpush1.msra.mxu0 0.0
  %3666 = vmatprep.subr.mxu0 0.0
  %3667 = vmatpush1.msra.mxu0 0.0
  %3668 = vmatprep.subr.mxu0 0.0
  %3669 = vmatpush1.msra.mxu0 %v42
  %3670 = vmatprep.subr.mxu0 0.0
  %3671 = vmatpush1.msra.mxu0 %v41
  %3672 = vmatprep.subr.mxu0 0.0
  %3673 = vmatpush1.msra.mxu0 %v40
  %3674 = vmatprep.subr.mxu0 0.0
  %3675 = vmatpush1.msra.mxu0 %v39
  %3676 = vmatprep.subr.mxu0 0.0
  %3677 = vmatpush2.msra.mxu0 0.0
  %3678 = vmatprep.subr.mxu0 0.0
  %3679 = vmatpush2.msra.mxu0 0.0
  %3680 = vmatprep.subr.mxu0 0.0
  %3681 = vmatpush2.msra.mxu0 0.0
  %3682 = vmatprep.subr.mxu0 0.0
  %3683 = vmatpush2.msra.mxu0 0.0
  %3684 = vmatprep.subr.mxu0 0.0
  %3685 = vmatpush2.msra.mxu0 0.0
  %3686 = vmatprep.subr.mxu0 0.0
  %3687 = vmatpush2.msra.mxu0 0.0
  %3688 = vmatprep.subr.mxu0 0.0
  %3689 = vmatpush2.msra.mxu0 0.0
  %3690 = vmatprep.subr.mxu0 0.0
  %3691 = vmatpush2.msra.mxu0 0.0
  %3692 = vmatprep.subr.mxu0 0.0
  %3693 = vmatpush2.msra.mxu0 0.0
  %3694 = vmatprep.subr.mxu0 0.0
  %3695 = vmatpush2.msra.mxu0 0.0
  %3696 = vmatprep.subr.mxu0 0.0
  %3697 = vmatpush2.msra.mxu0 0.0
  %3698 = vmatprep.subr.mxu0 0.0
  %3699 = vmatpush2.msra.mxu0 0.0
  %3700 = vmatprep.subr.mxu0 0.0
  %3701 = vmatpush2.msra.mxu0 0.0
  %3702 = vmatprep.subr.mxu0 0.0
  %3703 = vmatpush2.msra.mxu0 0.0
  %3704 = vmatprep.subr.mxu0 0.0
  %3705 = vmatpush2.msra.mxu0 0.0
  %3706 = vmatprep.subr.mxu0 0.0
  %3707 = vmatpush2.msra.mxu0 0.0
  %3708 = vmatprep.mubr.f32.mxu0 0.0
  %3709 = vmatmul.mubr.f32.gmra.mxu0 %v3642
  %v3710 = vpop.f32.mrf.mxu0
  %v3711 = vadd.f32 %v3637, %v3710
  %v3712 = vpop.f32.mrf.mxu0
  %3713 = vdwg.mxu0
  %vm3714 = vcmask 31744
  %3715 = vst.msk [vmem:[%s7] sm:$0xff] %vm3714, %v3711
  // Predicated region
  $region30: #{prediction_model_forward.1} parent=0 // pred_check
    _
  $region31: #{prediction_model_forward.1} parent=0 // pred_check_branch
    %3717 = sbr.rel (0) target = $region33
  $region32: #{prediction_model_forward.1} parent=0 // pred_region
    _
  $region33: #{prediction_model_forward.1} parent=0 // pred_fallthru
    _
  // Predicated region
  $region34: #{prediction_model_forward.1} parent=0 // pred_check
    _
  $region35: #{prediction_model_forward.1} parent=0 // pred_check_branch
    %3719 = sbr.rel (0) target = $region37
  $region36: #{prediction_model_forward.1} parent=0 // pred_region
    _
  $region37: #{prediction_model_forward.1} parent=0 // pred_fallthru
    _

</llo_original>
